<compile_context>
chip_gen: v5e
topology: v5e:2x2
jax: 0.10.0
libtpu: 0.0.40
codegen_flags: <defaults>
</compile_context>

<pallas_src>
import functools

import jax
import jax.numpy as jnp
from jax import lax
from jax.experimental import pallas as pl
from jax.experimental.pallas import tpu as pltpu

C = 64            # conv channel count
H1, W1 = 6, 6     # input spatial (model-implied)
H2, W2 = 3, 3     # spatial after first pool
PAD_CLS = 128     # lane-dense padded class dimension


# ------------------------------ fused kernel --------------------------------

def _conv3x3_rowband(in_ref, w_ref, b_ref, pre_ref, h):
    """3x3 'same' conv + bias + ReLU on a (h, w*cin) slab via 3 banded matmuls.

    in_ref : (h, w*cin)        rows = y, lanes = x*cin + c
    w_ref  : (3, w*cin, w*cout) one banded (block-Toeplitz) matrix per dy
    b_ref  : (1, w*cout)       bias tiled over x
    pre_ref: (h, w*cout)       output slab (fully overwritten)
    """
    # dy = 1 (no vertical shift) covers every output row -> initializes pre.
    pre_ref[...] = jnp.dot(in_ref[...], w_ref[1],
                           preferred_element_type=jnp.float32)
    # dy = 0: output row y reads input row y-1 (valid for y = 1..h-1).
    pre_ref[1:h, :] += jnp.dot(in_ref[0:h - 1, :], w_ref[0],
                               preferred_element_type=jnp.float32)
    # dy = 2: output row y reads input row y+1 (valid for y = 0..h-2).
    pre_ref[0:h - 1, :] += jnp.dot(in_ref[1:h, :], w_ref[2],
                                   preferred_element_type=jnp.float32)
    pre_ref[...] = jnp.maximum(pre_ref[...] + b_ref[...], 0.0)


def _pool_block(pre_ref, yo, xo, c):
    """Max over the 2x2 window (rows 2yo..2yo+1, x-blocks 2xo..2xo+1)."""
    y0, x0 = 2 * yo, 2 * xo * c
    a = pre_ref[y0:y0 + 1, x0:x0 + c]
    b = pre_ref[y0:y0 + 1, x0 + c:x0 + 2 * c]
    d = pre_ref[y0 + 1:y0 + 2, x0:x0 + c]
    e = pre_ref[y0 + 1:y0 + 2, x0 + c:x0 + 2 * c]
    return jnp.maximum(jnp.maximum(a, b), jnp.maximum(d, e))   # (1, c)


def resnet1_kernel(x_ref, w1_ref, b1_ref, w2_ref, b2_ref, w3_ref, b3_ref,
                   wd1_ref, bd1_ref, wd2_ref, bd2_ref,
                   out_ref, feat_ref,
                   pre1_ref, s1_ref, pre_ref, s2_ref, s3_ref):
    # -------- stage 1: conv(3->64) + ReLU + maxpool(2): 6x6 -> 3x3 ----------
    _conv3x3_rowband(x_ref, w1_ref, b1_ref, pre1_ref, H1)
    for yo in range(H2):
        for xo in range(W2):
            s1_ref[yo:yo + 1, xo * C:(xo + 1) * C] = _pool_block(pre1_ref, yo, xo, C)

    # -------- stage 2: conv + ReLU + pool(3x3 -> 1x1) + broadcast residual --
    _conv3x3_rowband(s1_ref, w2_ref, b2_ref, pre_ref, H2)
    pooled = _pool_block(pre_ref, 0, 0, C)            # (1, 64), floor pooling
    for xo in range(W2):
        s2_ref[:, xo * C:(xo + 1) * C] = s1_ref[:, xo * C:(xo + 1) * C] + pooled

    # -------- stage 3: same as stage 2 --------------------------------------
    _conv3x3_rowband(s2_ref, w3_ref, b3_ref, pre_ref, H2)
    pooled = _pool_block(pre_ref, 0, 0, C)
    for xo in range(W2):
        s3_ref[:, xo * C:(xo + 1) * C] = s2_ref[:, xo * C:(xo + 1) * C] + pooled

    # -------- dense head (wd1 rows pre-permuted to the NHWC slab layout) ----
    feats = bd1_ref[...]                               # (1, 128)
    for y in range(H2):
        feats = feats + jnp.dot(s3_ref[y:y + 1, :], wd1_ref[y],
                                preferred_element_type=jnp.float32)
    feat_ref[...] = feats                              # pre-ReLU features
    out_ref[...] = jnp.dot(jnp.maximum(feats, 0.0), wd2_ref[...],
                           preferred_element_type=jnp.float32) + bd2_ref[...]


# --------------------------- parameter preparation --------------------------

def _banded_conv_weight(w_hwio, w_spatial):
    """HWIO (3,3,cin,cout) -> (3, w*cin, w*cout) block-Toeplitz matrices."""
    kh, kw, cin, cout = w_hwio.shape
    band = jnp.zeros((kh, w_spatial * cin, w_spatial * cout), jnp.float32)
    for dy in range(kh):
        for xo in range(w_spatial):
            for dx in range(kw):
                xi = xo + dx - 1
                if 0 <= xi < w_spatial:
                    band = band.at[dy,
                                   xi * cin:(xi + 1) * cin,
                                   xo * cout:(xo + 1) * cout].set(w_hwio[dy, dx])
    return band


def prepare_params(params, num_classes):
    """One-time weight transform so the fused kernel needs no in-kernel reshapes."""
    assert num_classes <= PAD_CLS
    (w1, b1), (w2, b2), (w3, b3), (wd1, bd1), (wd2, bd2) = params
    w1b = _banded_conv_weight(w1, W1)                         # (3, 18, 384)
    w2b = _banded_conv_weight(w2, W2)                         # (3, 192, 192)
    w3b = _banded_conv_weight(w3, W2)                         # (3, 192, 192)
    b1r = jnp.tile(b1, (W1,)).reshape(1, W1 * C)              # (1, 384)
    b2r = jnp.tile(b2, (W2,)).reshape(1, W2 * C)              # (1, 192)
    b3r = jnp.tile(b3, (W2,)).reshape(1, W2 * C)              # (1, 192)
    # torch flattens (N, 64, 3, 3) as c*9 + y*3 + x; permute wd1 rows so the
    # kernel's (y, x*64 + c) slab hits the right weight rows directly.
    hidden = wd1.shape[1]
    wd1p = jnp.transpose(wd1.reshape(C, H2, W2, hidden), (1, 2, 0, 3))
    wd1p = wd1p.reshape(H2, W2 * C, hidden)                   # (3, 192, 128)
    bd1r = bd1.reshape(1, hidden)
    # pad classifier to 128 lanes -> lane-dense final store.
    wd2p = jnp.zeros((hidden, PAD_CLS), jnp.float32).at[:, :num_classes].set(wd2)
    bd2p = jnp.zeros((1, PAD_CLS), jnp.float32).at[:, :num_classes].set(bd2)
    return (w1b, b1r, w2b, b2r, w3b, b3r, wd1p, bd1r, wd2p, bd2p)


# --------------------------------- forward ----------------------------------

@functools.partial(jax.jit, static_argnames=("num_classes",))
def resnet1_forward(x_nchw, prep, num_classes):
    """Eval-mode forward: returns (out, features) like the PyTorch module."""
    (w1b, b1r, w2b, b2r, w3b, b3r, wd1p, bd1r, wd2p, bd2p) = prep
    n, cin = x_nchw.shape[0], x_nchw.shape[1]
    hidden = wd1p.shape[-1]
    # NCHW -> per-image 2-D slab: rows = y, lanes = x*cin + c (tiny, one-time).
    x_slab = jnp.transpose(x_nchw, (0, 2, 3, 1)).reshape(n, H1, W1 * cin)

    grid_spec = pltpu.PrefetchScalarGridSpec(
        num_scalar_prefetch=0,
        grid=(n,),
        in_specs=[
            pl.BlockSpec((None, H1, W1 * cin), lambda b: (b, 0, 0)),   # x slab
            pl.BlockSpec(w1b.shape, lambda b: (0, 0, 0)),
            pl.BlockSpec(b1r.shape, lambda b: (0, 0)),
            pl.BlockSpec(w2b.shape, lambda b: (0, 0, 0)),
            pl.BlockSpec(b2r.shape, lambda b: (0, 0)),
            pl.BlockSpec(w3b.shape, lambda b: (0, 0, 0)),
            pl.BlockSpec(b3r.shape, lambda b: (0, 0)),
            pl.BlockSpec(wd1p.shape, lambda b: (0, 0, 0)),
            pl.BlockSpec(bd1r.shape, lambda b: (0, 0)),
            pl.BlockSpec(wd2p.shape, lambda b: (0, 0)),
            pl.BlockSpec(bd2p.shape, lambda b: (0, 0)),
        ],
        out_specs=(
            pl.BlockSpec((None, 1, PAD_CLS), lambda b: (b, 0, 0)),     # logits
            pl.BlockSpec((None, 1, hidden), lambda b: (b, 0, 0)),      # features
        ),
        scratch_shapes=[
            pltpu.VMEM((H1, W1 * C), jnp.float32),   # pre1 (6, 384)
            pltpu.VMEM((H2, W2 * C), jnp.float32),   # s1   (3, 192)
            pltpu.VMEM((H2, W2 * C), jnp.float32),   # pre2/pre3
            pltpu.VMEM((H2, W2 * C), jnp.float32),   # s2
            pltpu.VMEM((H2, W2 * C), jnp.float32),   # s3
        ],
    )

    out_pad, feats = pl.pallas_call(
        resnet1_kernel,
        out_shape=(jax.ShapeDtypeStruct((n, 1, PAD_CLS), jnp.float32),
                   jax.ShapeDtypeStruct((n, 1, hidden), jnp.float32)),
        grid_spec=grid_spec,
        compiler_params=pltpu.CompilerParams(
            dimension_semantics=("parallel",)),      # shards batch on v7x's 2 TCs
    )(x_slab, w1b, b1r, w2b, b2r, w3b, b3r, wd1p, bd1r, wd2p, bd2p)

    out = out_pad.reshape(n, PAD_CLS)[:, :num_classes]
    features = feats.reshape(n, hidden)
    return out, features


# ---------------------------- pure-JAX reference ----------------------------

def reference_forward(x_nchw, params):
    (w1c, b1c), (w2c, b2c), (w3c, b3c), (wd1, bd1), (wd2, bd2) = params
    x = jnp.transpose(x_nchw, (0, 2, 3, 1))

    def stage(x, w, b):
        y = lax.conv_general_dilated(x, w, (1, 1), 'SAME',
                                     dimension_numbers=('NHWC', 'HWIO', 'NHWC')) + b
        y = jnp.maximum(y, 0.0)
        return lax.reduce_window(y, -jnp.inf, lax.max,
                                 (1, 2, 2, 1), (1, 2, 2, 1), 'VALID')

    c1 = stage(x, w1c, b1c)
    c2 = stage(c1, w2c, b2c) + c1
    c3 = stage(c2, w3c, b3c) + c2
    res = jnp.transpose(c3, (0, 3, 1, 2)).reshape(x.shape[0], -1)
    feats = res @ wd1 + bd1
    out = jnp.maximum(feats, 0.0) @ wd2 + bd2
    return out, feats


# ----------------------------------- main ------------------------------------

if __name__ == "__main__":
    N, C_IN, HW, NUM_CLASSES = 2, 3, 6, 10   # 6x6 input -> 3x3 -> 1x1, flatten 576

    key = jax.random.PRNGKey(0)
    ks = jax.random.split(key, 11)

    def init(k, shape, scale):
        return (jax.random.normal(k, shape, jnp.float32) * scale).astype(jnp.float32)

    params = (
        (init(ks[0], (3, 3, 3, 64), 0.10), init(ks[1], (64,), 0.05)),       # conv1
        (init(ks[2], (3, 3, 64, 64), 0.05), init(ks[3], (64,), 0.05)),      # conv2
        (init(ks[4], (3, 3, 64, 64), 0.05), init(ks[5], (64,), 0.05)),      # conv3
        (init(ks[6], (64 * 3 * 3, 128), 0.05), init(ks[7], (128,), 0.05)),  # dense[0]
        (init(ks[8], (128, NUM_CLASSES), 0.05), init(ks[9], (NUM_CLASSES,), 0.05)),  # dense[2]
    )
    x = jax.random.normal(ks[10], (N, C_IN, HW, HW), jnp.float32)

    prep = prepare_params(params, NUM_CLASSES)
    out, features = resnet1_forward(x, prep, NUM_CLASSES)
    out, features = jax.block_until_ready((out, features))

    ref_out, ref_feat = reference_forward(x, params)
    assert out.shape == (N, NUM_CLASSES) and features.shape == (N, 128)
    assert jnp.allclose(out, ref_out, atol=1e-4, rtol=1e-4)
    assert jnp.allclose(features, ref_feat, atol=1e-4, rtol=1e-4)

    print("KERNEL_OK")
</pallas_src>

<mosaic_0001>
module attributes {stable_mosaic.version = 11 : i64} {
  func.func @resnet1_kernel(%arg0: i32, %arg1: memref<1x6x18xf32, #tpu.memory_space<vmem>>, %arg2: memref<3x18x384xf32, #tpu.memory_space<vmem>>, %arg3: memref<1x384xf32, #tpu.memory_space<vmem>>, %arg4: memref<3x192x192xf32, #tpu.memory_space<vmem>>, %arg5: memref<1x192xf32, #tpu.memory_space<vmem>>, %arg6: memref<3x192x192xf32, #tpu.memory_space<vmem>>, %arg7: memref<1x192xf32, #tpu.memory_space<vmem>>, %arg8: memref<3x192x128xf32, #tpu.memory_space<vmem>>, %arg9: memref<1x128xf32, #tpu.memory_space<vmem>>, %arg10: memref<128x128xf32, #tpu.memory_space<vmem>>, %arg11: memref<1x128xf32, #tpu.memory_space<vmem>>, %arg12: memref<1x1x128xf32, #tpu.memory_space<vmem>>, %arg13: memref<1x1x128xf32, #tpu.memory_space<vmem>>, %arg14: memref<6x384xf32, #tpu.memory_space<vmem>>, %arg15: memref<3x192xf32, #tpu.memory_space<vmem>>, %arg16: memref<3x192xf32, #tpu.memory_space<vmem>>, %arg17: memref<3x192xf32, #tpu.memory_space<vmem>>, %arg18: memref<3x192xf32, #tpu.memory_space<vmem>>) attributes {dimension_semantics = [#tpu.dimension_semantics<parallel>], iteration_bounds = array<i64: 2>, scalar_prefetch = 0 : i64, scratch_operands = 5 : i64, tpu.core_type = #tpu.core_type<tc>, window_params = [{transform_indices = @transform_0, window_bounds = array<i64: 1, 6, 18>}, {pipeline_mode = #tpu.pipeline_mode<synchronous>, transform_indices = @transform_1, window_bounds = array<i64: 3, 18, 384>}, {pipeline_mode = #tpu.pipeline_mode<synchronous>, transform_indices = @transform_2, window_bounds = array<i64: 1, 384>}, {pipeline_mode = #tpu.pipeline_mode<synchronous>, transform_indices = @transform_3, window_bounds = array<i64: 3, 192, 192>}, {pipeline_mode = #tpu.pipeline_mode<synchronous>, transform_indices = @transform_4, window_bounds = array<i64: 1, 192>}, {pipeline_mode = #tpu.pipeline_mode<synchronous>, transform_indices = @transform_5, window_bounds = array<i64: 3, 192, 192>}, {pipeline_mode = #tpu.pipeline_mode<synchronous>, transform_indices = @transform_6, window_bounds = array<i64: 1, 192>}, {pipeline_mode = #tpu.pipeline_mode<synchronous>, transform_indices = @transform_7, window_bounds = array<i64: 3, 192, 128>}, {pipeline_mode = #tpu.pipeline_mode<synchronous>, transform_indices = @transform_8, window_bounds = array<i64: 1, 128>}, {pipeline_mode = #tpu.pipeline_mode<synchronous>, transform_indices = @transform_9, window_bounds = array<i64: 128, 128>}, {pipeline_mode = #tpu.pipeline_mode<synchronous>, transform_indices = @transform_10, window_bounds = array<i64: 1, 128>}, {transform_indices = @transform_11, window_bounds = array<i64: 1, 1, 128>}, {transform_indices = @transform_12, window_bounds = array<i64: 1, 1, 128>}]} {
    %c0 = arith.constant 0 : index
    %c0_0 = arith.constant 0 : index
    %c0_1 = arith.constant 0 : index
    %0 = vector.load %arg1[%c0, %c0_0, %c0_1] : memref<1x6x18xf32, #tpu.memory_space<vmem>>, vector<1x6x18xf32>
    %1 = vector.shape_cast %0 : vector<1x6x18xf32> to vector<6x18xf32>
    %c1 = arith.constant 1 : index
    %c0_2 = arith.constant 0 : index
    %c0_3 = arith.constant 0 : index
    %2 = vector.load %arg2[%c1, %c0_2, %c0_3] : memref<3x18x384xf32, #tpu.memory_space<vmem>>, vector<1x18x384xf32>
    %3 = vector.shape_cast %2 : vector<1x18x384xf32> to vector<18x384xf32>
    %cst = arith.constant dense<0.000000e+00> : vector<6x384xf32>
    %4 = tpu.matmul %1, %3, %cst {dimension_numbers = #tpu.dot_dimension_numbers<[1], [0], [0], [1], [0, 0, 1, 1], [], []>} : vector<6x18xf32>, vector<18x384xf32>, vector<6x384xf32> -> vector<6x384xf32>
    %c0_4 = arith.constant 0 : index
    %c0_5 = arith.constant 0 : index
    %5 = vector.load %arg14[%c0_4, %c0_5] : memref<6x384xf32, #tpu.memory_space<vmem>>, vector<6x384xf32>
    tpu.vector_store %arg14[%c0_4, %c0_5], %4 {strides = array<i32>} : memref<6x384xf32, #tpu.memory_space<vmem>>, vector<6x384xf32>,
    %c1_6 = arith.constant 1 : index
    %c0_7 = arith.constant 0 : index
    %6 = vector.load %arg14[%c1_6, %c0_7] : memref<6x384xf32, #tpu.memory_space<vmem>>, vector<5x384xf32>
    %c0_8 = arith.constant 0 : index
    %c0_9 = arith.constant 0 : index
    %c0_10 = arith.constant 0 : index
    %7 = vector.load %arg1[%c0_8, %c0_9, %c0_10] : memref<1x6x18xf32, #tpu.memory_space<vmem>>, vector<1x5x18xf32>
    %8 = vector.shape_cast %7 : vector<1x5x18xf32> to vector<5x18xf32>
    %c0_11 = arith.constant 0 : index
    %c0_12 = arith.constant 0 : index
    %c0_13 = arith.constant 0 : index
    %9 = vector.load %arg2[%c0_11, %c0_12, %c0_13] : memref<3x18x384xf32, #tpu.memory_space<vmem>>, vector<1x18x384xf32>
    %10 = vector.shape_cast %9 : vector<1x18x384xf32> to vector<18x384xf32>
    %cst_14 = arith.constant dense<0.000000e+00> : vector<5x384xf32>
    %11 = tpu.matmul %8, %10, %cst_14 {dimension_numbers = #tpu.dot_dimension_numbers<[1], [0], [0], [1], [0, 0, 1, 1], [], []>} : vector<5x18xf32>, vector<18x384xf32>, vector<5x384xf32> -> vector<5x384xf32>
    %12 = arith.addf %6, %11 : vector<5x384xf32>
    %c1_15 = arith.constant 1 : index
    %c0_16 = arith.constant 0 : index
    %13 = vector.load %arg14[%c1_15, %c0_16] : memref<6x384xf32, #tpu.memory_space<vmem>>, vector<5x384xf32>
    tpu.vector_store %arg14[%c1_15, %c0_16], %12 {strides = array<i32>} : memref<6x384xf32, #tpu.memory_space<vmem>>, vector<5x384xf32>,
    %c0_17 = arith.constant 0 : index
    %c0_18 = arith.constant 0 : index
    %14 = vector.load %arg14[%c0_17, %c0_18] : memref<6x384xf32, #tpu.memory_space<vmem>>, vector<5x384xf32>
    %c0_19 = arith.constant 0 : index
    %c1_20 = arith.constant 1 : index
    %c0_21 = arith.constant 0 : index
    %15 = vector.load %arg1[%c0_19, %c1_20, %c0_21] : memref<1x6x18xf32, #tpu.memory_space<vmem>>, vector<1x5x18xf32>
    %16 = vector.shape_cast %15 : vector<1x5x18xf32> to vector<5x18xf32>
    %c2 = arith.constant 2 : index
    %c0_22 = arith.constant 0 : index
    %c0_23 = arith.constant 0 : index
    %17 = vector.load %arg2[%c2, %c0_22, %c0_23] : memref<3x18x384xf32, #tpu.memory_space<vmem>>, vector<1x18x384xf32>
    %18 = vector.shape_cast %17 : vector<1x18x384xf32> to vector<18x384xf32>
    %cst_24 = arith.constant dense<0.000000e+00> : vector<5x384xf32>
    %19 = tpu.matmul %16, %18, %cst_24 {dimension_numbers = #tpu.dot_dimension_numbers<[1], [0], [0], [1], [0, 0, 1, 1], [], []>} : vector<5x18xf32>, vector<18x384xf32>, vector<5x384xf32> -> vector<5x384xf32>
    %20 = arith.addf %14, %19 : vector<5x384xf32>
    %c0_25 = arith.constant 0 : index
    %c0_26 = arith.constant 0 : index
    %21 = vector.load %arg14[%c0_25, %c0_26] : memref<6x384xf32, #tpu.memory_space<vmem>>, vector<5x384xf32>
    tpu.vector_store %arg14[%c0_25, %c0_26], %20 {strides = array<i32>} : memref<6x384xf32, #tpu.memory_space<vmem>>, vector<5x384xf32>,
    %c0_27 = arith.constant 0 : index
    %c0_28 = arith.constant 0 : index
    %22 = vector.load %arg14[%c0_27, %c0_28] : memref<6x384xf32, #tpu.memory_space<vmem>>, vector<6x384xf32>
    %c0_29 = arith.constant 0 : index
    %c0_30 = arith.constant 0 : index
    %23 = vector.load %arg3[%c0_29, %c0_30] : memref<1x384xf32, #tpu.memory_space<vmem>>, vector<1x384xf32>
    %24 = vector.broadcast %23 : vector<1x384xf32> to vector<6x384xf32>
    %25 = arith.addf %22, %24 : vector<6x384xf32>
    %cst_31 = arith.constant 0.000000e+00 : f32
    %26 = vector.broadcast %cst_31 : f32 to vector<6x384xf32>
    %27 = arith.maximumf %25, %26 : vector<6x384xf32>
    %c0_32 = arith.constant 0 : index
    %c0_33 = arith.constant 0 : index
    %28 = vector.load %arg14[%c0_32, %c0_33] : memref<6x384xf32, #tpu.memory_space<vmem>>, vector<6x384xf32>
    tpu.vector_store %arg14[%c0_32, %c0_33], %27 {strides = array<i32>} : memref<6x384xf32, #tpu.memory_space<vmem>>, vector<6x384xf32>,
    %c0_34 = arith.constant 0 : index
    %c0_35 = arith.constant 0 : index
    %29 = vector.load %arg14[%c0_34, %c0_35] : memref<6x384xf32, #tpu.memory_space<vmem>>, vector<1x64xf32>
    %c0_36 = arith.constant 0 : index
    %c64 = arith.constant 64 : index
    %30 = vector.load %arg14[%c0_36, %c64] : memref<6x384xf32, #tpu.memory_space<vmem>>, vector<1x64xf32>
    %c1_37 = arith.constant 1 : index
    %c0_38 = arith.constant 0 : index
    %31 = vector.load %arg14[%c1_37, %c0_38] : memref<6x384xf32, #tpu.memory_space<vmem>>, vector<1x64xf32>
    %c1_39 = arith.constant 1 : index
    %c64_40 = arith.constant 64 : index
    %32 = vector.load %arg14[%c1_39, %c64_40] : memref<6x384xf32, #tpu.memory_space<vmem>>, vector<1x64xf32>
    %33 = arith.maximumf %29, %30 : vector<1x64xf32>
    %34 = arith.maximumf %31, %32 : vector<1x64xf32>
    %35 = arith.maximumf %33, %34 : vector<1x64xf32>
    %c0_41 = arith.constant 0 : index
    %c0_42 = arith.constant 0 : index
    %36 = vector.load %arg15[%c0_41, %c0_42] : memref<3x192xf32, #tpu.memory_space<vmem>>, vector<1x64xf32>
    tpu.vector_store %arg15[%c0_41, %c0_42], %35 {strides = array<i32>} : memref<3x192xf32, #tpu.memory_space<vmem>>, vector<1x64xf32>,
    %c0_43 = arith.constant 0 : index
    %c128 = arith.constant 128 : index
    %37 = vector.load %arg14[%c0_43, %c128] : memref<6x384xf32, #tpu.memory_space<vmem>>, vector<1x64xf32>
    %c0_44 = arith.constant 0 : index
    %c192 = arith.constant 192 : index
    %38 = vector.load %arg14[%c0_44, %c192] : memref<6x384xf32, #tpu.memory_space<vmem>>, vector<1x64xf32>
    %c1_45 = arith.constant 1 : index
    %c128_46 = arith.constant 128 : index
    %39 = vector.load %arg14[%c1_45, %c128_46] : memref<6x384xf32, #tpu.memory_space<vmem>>, vector<1x64xf32>
    %c1_47 = arith.constant 1 : index
    %c192_48 = arith.constant 192 : index
    %40 = vector.load %arg14[%c1_47, %c192_48] : memref<6x384xf32, #tpu.memory_space<vmem>>, vector<1x64xf32>
    %41 = arith.maximumf %37, %38 : vector<1x64xf32>
    %42 = arith.maximumf %39, %40 : vector<1x64xf32>
    %43 = arith.maximumf %41, %42 : vector<1x64xf32>
    %c0_49 = arith.constant 0 : index
    %c64_50 = arith.constant 64 : index
    %44 = vector.load %arg15[%c0_49, %c64_50] : memref<3x192xf32, #tpu.memory_space<vmem>>, vector<1x64xf32>
    tpu.vector_store %arg15[%c0_49, %c64_50], %43 {strides = array<i32>} : memref<3x192xf32, #tpu.memory_space<vmem>>, vector<1x64xf32>,
    %c0_51 = arith.constant 0 : index
    %c256 = arith.constant 256 : index
    %45 = vector.load %arg14[%c0_51, %c256] : memref<6x384xf32, #tpu.memory_space<vmem>>, vector<1x64xf32>
    %c0_52 = arith.constant 0 : index
    %c320 = arith.constant 320 : index
    %46 = vector.load %arg14[%c0_52, %c320] : memref<6x384xf32, #tpu.memory_space<vmem>>, vector<1x64xf32>
    %c1_53 = arith.constant 1 : index
    %c256_54 = arith.constant 256 : index
    %47 = vector.load %arg14[%c1_53, %c256_54] : memref<6x384xf32, #tpu.memory_space<vmem>>, vector<1x64xf32>
    %c1_55 = arith.constant 1 : index
    %c320_56 = arith.constant 320 : index
    %48 = vector.load %arg14[%c1_55, %c320_56] : memref<6x384xf32, #tpu.memory_space<vmem>>, vector<1x64xf32>
    %49 = arith.maximumf %45, %46 : vector<1x64xf32>
    %50 = arith.maximumf %47, %48 : vector<1x64xf32>
    %51 = arith.maximumf %49, %50 : vector<1x64xf32>
    %c0_57 = arith.constant 0 : index
    %c128_58 = arith.constant 128 : index
    %52 = vector.load %arg15[%c0_57, %c128_58] : memref<3x192xf32, #tpu.memory_space<vmem>>, vector<1x64xf32>
    tpu.vector_store %arg15[%c0_57, %c128_58], %51 {strides = array<i32>} : memref<3x192xf32, #tpu.memory_space<vmem>>, vector<1x64xf32>,
    %c2_59 = arith.constant 2 : index
    %c0_60 = arith.constant 0 : index
    %53 = vector.load %arg14[%c2_59, %c0_60] : memref<6x384xf32, #tpu.memory_space<vmem>>, vector<1x64xf32>
    %c2_61 = arith.constant 2 : index
    %c64_62 = arith.constant 64 : index
    %54 = vector.load %arg14[%c2_61, %c64_62] : memref<6x384xf32, #tpu.memory_space<vmem>>, vector<1x64xf32>
    %c3 = arith.constant 3 : index
    %c0_63 = arith.constant 0 : index
    %55 = vector.load %arg14[%c3, %c0_63] : memref<6x384xf32, #tpu.memory_space<vmem>>, vector<1x64xf32>
    %c3_64 = arith.constant 3 : index
    %c64_65 = arith.constant 64 : index
    %56 = vector.load %arg14[%c3_64, %c64_65] : memref<6x384xf32, #tpu.memory_space<vmem>>, vector<1x64xf32>
    %57 = arith.maximumf %53, %54 : vector<1x64xf32>
    %58 = arith.maximumf %55, %56 : vector<1x64xf32>
    %59 = arith.maximumf %57, %58 : vector<1x64xf32>
    %c1_66 = arith.constant 1 : index
    %c0_67 = arith.constant 0 : index
    %60 = vector.load %arg15[%c1_66, %c0_67] : memref<3x192xf32, #tpu.memory_space<vmem>>, vector<1x64xf32>
    tpu.vector_store %arg15[%c1_66, %c0_67], %59 {strides = array<i32>} : memref<3x192xf32, #tpu.memory_space<vmem>>, vector<1x64xf32>,
    %c2_68 = arith.constant 2 : index
    %c128_69 = arith.constant 128 : index
    %61 = vector.load %arg14[%c2_68, %c128_69] : memref<6x384xf32, #tpu.memory_space<vmem>>, vector<1x64xf32>
    %c2_70 = arith.constant 2 : index
    %c192_71 = arith.constant 192 : index
    %62 = vector.load %arg14[%c2_70, %c192_71] : memref<6x384xf32, #tpu.memory_space<vmem>>, vector<1x64xf32>
    %c3_72 = arith.constant 3 : index
    %c128_73 = arith.constant 128 : index
    %63 = vector.load %arg14[%c3_72, %c128_73] : memref<6x384xf32, #tpu.memory_space<vmem>>, vector<1x64xf32>
    %c3_74 = arith.constant 3 : index
    %c192_75 = arith.constant 192 : index
    %64 = vector.load %arg14[%c3_74, %c192_75] : memref<6x384xf32, #tpu.memory_space<vmem>>, vector<1x64xf32>
    %65 = arith.maximumf %61, %62 : vector<1x64xf32>
    %66 = arith.maximumf %63, %64 : vector<1x64xf32>
    %67 = arith.maximumf %65, %66 : vector<1x64xf32>
    %c1_76 = arith.constant 1 : index
    %c64_77 = arith.constant 64 : index
    %68 = vector.load %arg15[%c1_76, %c64_77] : memref<3x192xf32, #tpu.memory_space<vmem>>, vector<1x64xf32>
    tpu.vector_store %arg15[%c1_76, %c64_77], %67 {strides = array<i32>} : memref<3x192xf32, #tpu.memory_space<vmem>>, vector<1x64xf32>,
    %c2_78 = arith.constant 2 : index
    %c256_79 = arith.constant 256 : index
    %69 = vector.load %arg14[%c2_78, %c256_79] : memref<6x384xf32, #tpu.memory_space<vmem>>, vector<1x64xf32>
    %c2_80 = arith.constant 2 : index
    %c320_81 = arith.constant 320 : index
    %70 = vector.load %arg14[%c2_80, %c320_81] : memref<6x384xf32, #tpu.memory_space<vmem>>, vector<1x64xf32>
    %c3_82 = arith.constant 3 : index
    %c256_83 = arith.constant 256 : index
    %71 = vector.load %arg14[%c3_82, %c256_83] : memref<6x384xf32, #tpu.memory_space<vmem>>, vector<1x64xf32>
    %c3_84 = arith.constant 3 : index
    %c320_85 = arith.constant 320 : index
    %72 = vector.load %arg14[%c3_84, %c320_85] : memref<6x384xf32, #tpu.memory_space<vmem>>, vector<1x64xf32>
    %73 = arith.maximumf %69, %70 : vector<1x64xf32>
    %74 = arith.maximumf %71, %72 : vector<1x64xf32>
    %75 = arith.maximumf %73, %74 : vector<1x64xf32>
    %c1_86 = arith.constant 1 : index
    %c128_87 = arith.constant 128 : index
    %76 = vector.load %arg15[%c1_86, %c128_87] : memref<3x192xf32, #tpu.memory_space<vmem>>, vector<1x64xf32>
    tpu.vector_store %arg15[%c1_86, %c128_87], %75 {strides = array<i32>} : memref<3x192xf32, #tpu.memory_space<vmem>>, vector<1x64xf32>,
    %c4 = arith.constant 4 : index
    %c0_88 = arith.constant 0 : index
    %77 = vector.load %arg14[%c4, %c0_88] : memref<6x384xf32, #tpu.memory_space<vmem>>, vector<1x64xf32>
    %c4_89 = arith.constant 4 : index
    %c64_90 = arith.constant 64 : index
    %78 = vector.load %arg14[%c4_89, %c64_90] : memref<6x384xf32, #tpu.memory_space<vmem>>, vector<1x64xf32>
    %c5 = arith.constant 5 : index
    %c0_91 = arith.constant 0 : index
    %79 = vector.load %arg14[%c5, %c0_91] : memref<6x384xf32, #tpu.memory_space<vmem>>, vector<1x64xf32>
    %c5_92 = arith.constant 5 : index
    %c64_93 = arith.constant 64 : index
    %80 = vector.load %arg14[%c5_92, %c64_93] : memref<6x384xf32, #tpu.memory_space<vmem>>, vector<1x64xf32>
    %81 = arith.maximumf %77, %78 : vector<1x64xf32>
    %82 = arith.maximumf %79, %80 : vector<1x64xf32>
    %83 = arith.maximumf %81, %82 : vector<1x64xf32>
    %c2_94 = arith.constant 2 : index
    %c0_95 = arith.constant 0 : index
    %84 = vector.load %arg15[%c2_94, %c0_95] : memref<3x192xf32, #tpu.memory_space<vmem>>, vector<1x64xf32>
    tpu.vector_store %arg15[%c2_94, %c0_95], %83 {strides = array<i32>} : memref<3x192xf32, #tpu.memory_space<vmem>>, vector<1x64xf32>,
    %c4_96 = arith.constant 4 : index
    %c128_97 = arith.constant 128 : index
    %85 = vector.load %arg14[%c4_96, %c128_97] : memref<6x384xf32, #tpu.memory_space<vmem>>, vector<1x64xf32>
    %c4_98 = arith.constant 4 : index
    %c192_99 = arith.constant 192 : index
    %86 = vector.load %arg14[%c4_98, %c192_99] : memref<6x384xf32, #tpu.memory_space<vmem>>, vector<1x64xf32>
    %c5_100 = arith.constant 5 : index
    %c128_101 = arith.constant 128 : index
    %87 = vector.load %arg14[%c5_100, %c128_101] : memref<6x384xf32, #tpu.memory_space<vmem>>, vector<1x64xf32>
    %c5_102 = arith.constant 5 : index
    %c192_103 = arith.constant 192 : index
    %88 = vector.load %arg14[%c5_102, %c192_103] : memref<6x384xf32, #tpu.memory_space<vmem>>, vector<1x64xf32>
    %89 = arith.maximumf %85, %86 : vector<1x64xf32>
    %90 = arith.maximumf %87, %88 : vector<1x64xf32>
    %91 = arith.maximumf %89, %90 : vector<1x64xf32>
    %c2_104 = arith.constant 2 : index
    %c64_105 = arith.constant 64 : index
    %92 = vector.load %arg15[%c2_104, %c64_105] : memref<3x192xf32, #tpu.memory_space<vmem>>, vector<1x64xf32>
    tpu.vector_store %arg15[%c2_104, %c64_105], %91 {strides = array<i32>} : memref<3x192xf32, #tpu.memory_space<vmem>>, vector<1x64xf32>,
    %c4_106 = arith.constant 4 : index
    %c256_107 = arith.constant 256 : index
    %93 = vector.load %arg14[%c4_106, %c256_107] : memref<6x384xf32, #tpu.memory_space<vmem>>, vector<1x64xf32>
    %c4_108 = arith.constant 4 : index
    %c320_109 = arith.constant 320 : index
    %94 = vector.load %arg14[%c4_108, %c320_109] : memref<6x384xf32, #tpu.memory_space<vmem>>, vector<1x64xf32>
    %c5_110 = arith.constant 5 : index
    %c256_111 = arith.constant 256 : index
    %95 = vector.load %arg14[%c5_110, %c256_111] : memref<6x384xf32, #tpu.memory_space<vmem>>, vector<1x64xf32>
    %c5_112 = arith.constant 5 : index
    %c320_113 = arith.constant 320 : index
    %96 = vector.load %arg14[%c5_112, %c320_113] : memref<6x384xf32, #tpu.memory_space<vmem>>, vector<1x64xf32>
    %97 = arith.maximumf %93, %94 : vector<1x64xf32>
    %98 = arith.maximumf %95, %96 : vector<1x64xf32>
    %99 = arith.maximumf %97, %98 : vector<1x64xf32>
    %c2_114 = arith.constant 2 : index
    %c128_115 = arith.constant 128 : index
    %100 = vector.load %arg15[%c2_114, %c128_115] : memref<3x192xf32, #tpu.memory_space<vmem>>, vector<1x64xf32>
    tpu.vector_store %arg15[%c2_114, %c128_115], %99 {strides = array<i32>} : memref<3x192xf32, #tpu.memory_space<vmem>>, vector<1x64xf32>,
    %c0_116 = arith.constant 0 : index
    %c0_117 = arith.constant 0 : index
    %101 = vector.load %arg15[%c0_116, %c0_117] : memref<3x192xf32, #tpu.memory_space<vmem>>, vector<3x192xf32>
    %c1_118 = arith.constant 1 : index
    %c0_119 = arith.constant 0 : index
    %c0_120 = arith.constant 0 : index
    %102 = vector.load %arg4[%c1_118, %c0_119, %c0_120] : memref<3x192x192xf32, #tpu.memory_space<vmem>>, vector<1x192x192xf32>
    %103 = vector.shape_cast %102 : vector<1x192x192xf32> to vector<192x192xf32>
    %cst_121 = arith.constant dense<0.000000e+00> : vector<3x192xf32>
    %104 = tpu.matmul %101, %103, %cst_121 {dimension_numbers = #tpu.dot_dimension_numbers<[1], [0], [0], [1], [0, 0, 1, 1], [], []>} : vector<3x192xf32>, vector<192x192xf32>, vector<3x192xf32> -> vector<3x192xf32>
    %c0_122 = arith.constant 0 : index
    %c0_123 = arith.constant 0 : index
    %105 = vector.load %arg16[%c0_122, %c0_123] : memref<3x192xf32, #tpu.memory_space<vmem>>, vector<3x192xf32>
    tpu.vector_store %arg16[%c0_122, %c0_123], %104 {strides = array<i32>} : memref<3x192xf32, #tpu.memory_space<vmem>>, vector<3x192xf32>,
    %c1_124 = arith.constant 1 : index
    %c0_125 = arith.constant 0 : index
    %106 = vector.load %arg16[%c1_124, %c0_125] : memref<3x192xf32, #tpu.memory_space<vmem>>, vector<2x192xf32>
    %c0_126 = arith.constant 0 : index
    %c0_127 = arith.constant 0 : index
    %107 = vector.load %arg15[%c0_126, %c0_127] : memref<3x192xf32, #tpu.memory_space<vmem>>, vector<2x192xf32>
    %c0_128 = arith.constant 0 : index
    %c0_129 = arith.constant 0 : index
    %c0_130 = arith.constant 0 : index
    %108 = vector.load %arg4[%c0_128, %c0_129, %c0_130] : memref<3x192x192xf32, #tpu.memory_space<vmem>>, vector<1x192x192xf32>
    %109 = vector.shape_cast %108 : vector<1x192x192xf32> to vector<192x192xf32>
    %cst_131 = arith.constant dense<0.000000e+00> : vector<2x192xf32>
    %110 = tpu.matmul %107, %109, %cst_131 {dimension_numbers = #tpu.dot_dimension_numbers<[1], [0], [0], [1], [0, 0, 1, 1], [], []>} : vector<2x192xf32>, vector<192x192xf32>, vector<2x192xf32> -> vector<2x192xf32>
    %111 = arith.addf %106, %110 : vector<2x192xf32>
    %c1_132 = arith.constant 1 : index
    %c0_133 = arith.constant 0 : index
    %112 = vector.load %arg16[%c1_132, %c0_133] : memref<3x192xf32, #tpu.memory_space<vmem>>, vector<2x192xf32>
    tpu.vector_store %arg16[%c1_132, %c0_133], %111 {strides = array<i32>} : memref<3x192xf32, #tpu.memory_space<vmem>>, vector<2x192xf32>,
    %c0_134 = arith.constant 0 : index
    %c0_135 = arith.constant 0 : index
    %113 = vector.load %arg16[%c0_134, %c0_135] : memref<3x192xf32, #tpu.memory_space<vmem>>, vector<2x192xf32>
    %c1_136 = arith.constant 1 : index
    %c0_137 = arith.constant 0 : index
    %114 = vector.load %arg15[%c1_136, %c0_137] : memref<3x192xf32, #tpu.memory_space<vmem>>, vector<2x192xf32>
    %c2_138 = arith.constant 2 : index
    %c0_139 = arith.constant 0 : index
    %c0_140 = arith.constant 0 : index
    %115 = vector.load %arg4[%c2_138, %c0_139, %c0_140] : memref<3x192x192xf32, #tpu.memory_space<vmem>>, vector<1x192x192xf32>
    %116 = vector.shape_cast %115 : vector<1x192x192xf32> to vector<192x192xf32>
    %cst_141 = arith.constant dense<0.000000e+00> : vector<2x192xf32>
    %117 = tpu.matmul %114, %116, %cst_141 {dimension_numbers = #tpu.dot_dimension_numbers<[1], [0], [0], [1], [0, 0, 1, 1], [], []>} : vector<2x192xf32>, vector<192x192xf32>, vector<2x192xf32> -> vector<2x192xf32>
    %118 = arith.addf %113, %117 : vector<2x192xf32>
    %c0_142 = arith.constant 0 : index
    %c0_143 = arith.constant 0 : index
    %119 = vector.load %arg16[%c0_142, %c0_143] : memref<3x192xf32, #tpu.memory_space<vmem>>, vector<2x192xf32>
    tpu.vector_store %arg16[%c0_142, %c0_143], %118 {strides = array<i32>} : memref<3x192xf32, #tpu.memory_space<vmem>>, vector<2x192xf32>,
    %c0_144 = arith.constant 0 : index
    %c0_145 = arith.constant 0 : index
    %120 = vector.load %arg16[%c0_144, %c0_145] : memref<3x192xf32, #tpu.memory_space<vmem>>, vector<3x192xf32>
    %c0_146 = arith.constant 0 : index
    %c0_147 = arith.constant 0 : index
    %121 = vector.load %arg5[%c0_146, %c0_147] : memref<1x192xf32, #tpu.memory_space<vmem>>, vector<1x192xf32>
    %122 = vector.broadcast %121 : vector<1x192xf32> to vector<3x192xf32>
    %123 = arith.addf %120, %122 : vector<3x192xf32>
    %cst_148 = arith.constant 0.000000e+00 : f32
    %124 = vector.broadcast %cst_148 : f32 to vector<3x192xf32>
    %125 = arith.maximumf %123, %124 : vector<3x192xf32>
    %c0_149 = arith.constant 0 : index
    %c0_150 = arith.constant 0 : index
    %126 = vector.load %arg16[%c0_149, %c0_150] : memref<3x192xf32, #tpu.memory_space<vmem>>, vector<3x192xf32>
    tpu.vector_store %arg16[%c0_149, %c0_150], %125 {strides = array<i32>} : memref<3x192xf32, #tpu.memory_space<vmem>>, vector<3x192xf32>,
    %c0_151 = arith.constant 0 : index
    %c0_152 = arith.constant 0 : index
    %127 = vector.load %arg16[%c0_151, %c0_152] : memref<3x192xf32, #tpu.memory_space<vmem>>, vector<1x64xf32>
    %c0_153 = arith.constant 0 : index
    %c64_154 = arith.constant 64 : index
    %128 = vector.load %arg16[%c0_153, %c64_154] : memref<3x192xf32, #tpu.memory_space<vmem>>, vector<1x64xf32>
    %c1_155 = arith.constant 1 : index
    %c0_156 = arith.constant 0 : index
    %129 = vector.load %arg16[%c1_155, %c0_156] : memref<3x192xf32, #tpu.memory_space<vmem>>, vector<1x64xf32>
    %c1_157 = arith.constant 1 : index
    %c64_158 = arith.constant 64 : index
    %130 = vector.load %arg16[%c1_157, %c64_158] : memref<3x192xf32, #tpu.memory_space<vmem>>, vector<1x64xf32>
    %131 = arith.maximumf %127, %128 : vector<1x64xf32>
    %132 = arith.maximumf %129, %130 : vector<1x64xf32>
    %133 = arith.maximumf %131, %132 : vector<1x64xf32>
    %c0_159 = arith.constant 0 : index
    %c0_160 = arith.constant 0 : index
    %134 = vector.load %arg15[%c0_159, %c0_160] : memref<3x192xf32, #tpu.memory_space<vmem>>, vector<3x64xf32>
    %135 = vector.broadcast %133 : vector<1x64xf32> to vector<3x64xf32>
    %136 = arith.addf %134, %135 : vector<3x64xf32>
    %c0_161 = arith.constant 0 : index
    %c0_162 = arith.constant 0 : index
    %137 = vector.load %arg17[%c0_161, %c0_162] : memref<3x192xf32, #tpu.memory_space<vmem>>, vector<3x64xf32>
    tpu.vector_store %arg17[%c0_161, %c0_162], %136 {strides = array<i32>} : memref<3x192xf32, #tpu.memory_space<vmem>>, vector<3x64xf32>,
    %c0_163 = arith.constant 0 : index
    %c64_164 = arith.constant 64 : index
    %138 = vector.load %arg15[%c0_163, %c64_164] : memref<3x192xf32, #tpu.memory_space<vmem>>, vector<3x64xf32>
    %139 = vector.broadcast %133 : vector<1x64xf32> to vector<3x64xf32>
    %140 = arith.addf %138, %139 : vector<3x64xf32>
    %c0_165 = arith.constant 0 : index
    %c64_166 = arith.constant 64 : index
    %141 = vector.load %arg17[%c0_165, %c64_166] : memref<3x192xf32, #tpu.memory_space<vmem>>, vector<3x64xf32>
    tpu.vector_store %arg17[%c0_165, %c64_166], %140 {strides = array<i32>} : memref<3x192xf32, #tpu.memory_space<vmem>>, vector<3x64xf32>,
    %c0_167 = arith.constant 0 : index
    %c128_168 = arith.constant 128 : index
    %142 = vector.load %arg15[%c0_167, %c128_168] : memref<3x192xf32, #tpu.memory_space<vmem>>, vector<3x64xf32>
    %143 = vector.broadcast %133 : vector<1x64xf32> to vector<3x64xf32>
    %144 = arith.addf %142, %143 : vector<3x64xf32>
    %c0_169 = arith.constant 0 : index
    %c128_170 = arith.constant 128 : index
    %145 = vector.load %arg17[%c0_169, %c128_170] : memref<3x192xf32, #tpu.memory_space<vmem>>, vector<3x64xf32>
    tpu.vector_store %arg17[%c0_169, %c128_170], %144 {strides = array<i32>} : memref<3x192xf32, #tpu.memory_space<vmem>>, vector<3x64xf32>,
    %c0_171 = arith.constant 0 : index
    %c0_172 = arith.constant 0 : index
    %146 = vector.load %arg17[%c0_171, %c0_172] : memref<3x192xf32, #tpu.memory_space<vmem>>, vector<3x192xf32>
    %c1_173 = arith.constant 1 : index
    %c0_174 = arith.constant 0 : index
    %c0_175 = arith.constant 0 : index
    %147 = vector.load %arg6[%c1_173, %c0_174, %c0_175] : memref<3x192x192xf32, #tpu.memory_space<vmem>>, vector<1x192x192xf32>
    %148 = vector.shape_cast %147 : vector<1x192x192xf32> to vector<192x192xf32>
    %cst_176 = arith.constant dense<0.000000e+00> : vector<3x192xf32>
    %149 = tpu.matmul %146, %148, %cst_176 {dimension_numbers = #tpu.dot_dimension_numbers<[1], [0], [0], [1], [0, 0, 1, 1], [], []>} : vector<3x192xf32>, vector<192x192xf32>, vector<3x192xf32> -> vector<3x192xf32>
    %c0_177 = arith.constant 0 : index
    %c0_178 = arith.constant 0 : index
    %150 = vector.load %arg16[%c0_177, %c0_178] : memref<3x192xf32, #tpu.memory_space<vmem>>, vector<3x192xf32>
    tpu.vector_store %arg16[%c0_177, %c0_178], %149 {strides = array<i32>} : memref<3x192xf32, #tpu.memory_space<vmem>>, vector<3x192xf32>,
    %c1_179 = arith.constant 1 : index
    %c0_180 = arith.constant 0 : index
    %151 = vector.load %arg16[%c1_179, %c0_180] : memref<3x192xf32, #tpu.memory_space<vmem>>, vector<2x192xf32>
    %c0_181 = arith.constant 0 : index
    %c0_182 = arith.constant 0 : index
    %152 = vector.load %arg17[%c0_181, %c0_182] : memref<3x192xf32, #tpu.memory_space<vmem>>, vector<2x192xf32>
    %c0_183 = arith.constant 0 : index
    %c0_184 = arith.constant 0 : index
    %c0_185 = arith.constant 0 : index
    %153 = vector.load %arg6[%c0_183, %c0_184, %c0_185] : memref<3x192x192xf32, #tpu.memory_space<vmem>>, vector<1x192x192xf32>
    %154 = vector.shape_cast %153 : vector<1x192x192xf32> to vector<192x192xf32>
    %cst_186 = arith.constant dense<0.000000e+00> : vector<2x192xf32>
    %155 = tpu.matmul %152, %154, %cst_186 {dimension_numbers = #tpu.dot_dimension_numbers<[1], [0], [0], [1], [0, 0, 1, 1], [], []>} : vector<2x192xf32>, vector<192x192xf32>, vector<2x192xf32> -> vector<2x192xf32>
    %156 = arith.addf %151, %155 : vector<2x192xf32>
    %c1_187 = arith.constant 1 : index
    %c0_188 = arith.constant 0 : index
    %157 = vector.load %arg16[%c1_187, %c0_188] : memref<3x192xf32, #tpu.memory_space<vmem>>, vector<2x192xf32>
    tpu.vector_store %arg16[%c1_187, %c0_188], %156 {strides = array<i32>} : memref<3x192xf32, #tpu.memory_space<vmem>>, vector<2x192xf32>,
    %c0_189 = arith.constant 0 : index
    %c0_190 = arith.constant 0 : index
    %158 = vector.load %arg16[%c0_189, %c0_190] : memref<3x192xf32, #tpu.memory_space<vmem>>, vector<2x192xf32>
    %c1_191 = arith.constant 1 : index
    %c0_192 = arith.constant 0 : index
    %159 = vector.load %arg17[%c1_191, %c0_192] : memref<3x192xf32, #tpu.memory_space<vmem>>, vector<2x192xf32>
    %c2_193 = arith.constant 2 : index
    %c0_194 = arith.constant 0 : index
    %c0_195 = arith.constant 0 : index
    %160 = vector.load %arg6[%c2_193, %c0_194, %c0_195] : memref<3x192x192xf32, #tpu.memory_space<vmem>>, vector<1x192x192xf32>
    %161 = vector.shape_cast %160 : vector<1x192x192xf32> to vector<192x192xf32>
    %cst_196 = arith.constant dense<0.000000e+00> : vector<2x192xf32>
    %162 = tpu.matmul %159, %161, %cst_196 {dimension_numbers = #tpu.dot_dimension_numbers<[1], [0], [0], [1], [0, 0, 1, 1], [], []>} : vector<2x192xf32>, vector<192x192xf32>, vector<2x192xf32> -> vector<2x192xf32>
    %163 = arith.addf %158, %162 : vector<2x192xf32>
    %c0_197 = arith.constant 0 : index
    %c0_198 = arith.constant 0 : index
    %164 = vector.load %arg16[%c0_197, %c0_198] : memref<3x192xf32, #tpu.memory_space<vmem>>, vector<2x192xf32>
    tpu.vector_store %arg16[%c0_197, %c0_198], %163 {strides = array<i32>} : memref<3x192xf32, #tpu.memory_space<vmem>>, vector<2x192xf32>,
    %c0_199 = arith.constant 0 : index
    %c0_200 = arith.constant 0 : index
    %165 = vector.load %arg16[%c0_199, %c0_200] : memref<3x192xf32, #tpu.memory_space<vmem>>, vector<3x192xf32>
    %c0_201 = arith.constant 0 : index
    %c0_202 = arith.constant 0 : index
    %166 = vector.load %arg7[%c0_201, %c0_202] : memref<1x192xf32, #tpu.memory_space<vmem>>, vector<1x192xf32>
    %167 = vector.broadcast %166 : vector<1x192xf32> to vector<3x192xf32>
    %168 = arith.addf %165, %167 : vector<3x192xf32>
    %cst_203 = arith.constant 0.000000e+00 : f32
    %169 = vector.broadcast %cst_203 : f32 to vector<3x192xf32>
    %170 = arith.maximumf %168, %169 : vector<3x192xf32>
    %c0_204 = arith.constant 0 : index
    %c0_205 = arith.constant 0 : index
    %171 = vector.load %arg16[%c0_204, %c0_205] : memref<3x192xf32, #tpu.memory_space<vmem>>, vector<3x192xf32>
    tpu.vector_store %arg16[%c0_204, %c0_205], %170 {strides = array<i32>} : memref<3x192xf32, #tpu.memory_space<vmem>>, vector<3x192xf32>,
    %c0_206 = arith.constant 0 : index
    %c0_207 = arith.constant 0 : index
    %172 = vector.load %arg16[%c0_206, %c0_207] : memref<3x192xf32, #tpu.memory_space<vmem>>, vector<1x64xf32>
    %c0_208 = arith.constant 0 : index
    %c64_209 = arith.constant 64 : index
    %173 = vector.load %arg16[%c0_208, %c64_209] : memref<3x192xf32, #tpu.memory_space<vmem>>, vector<1x64xf32>
    %c1_210 = arith.constant 1 : index
    %c0_211 = arith.constant 0 : index
    %174 = vector.load %arg16[%c1_210, %c0_211] : memref<3x192xf32, #tpu.memory_space<vmem>>, vector<1x64xf32>
    %c1_212 = arith.constant 1 : index
    %c64_213 = arith.constant 64 : index
    %175 = vector.load %arg16[%c1_212, %c64_213] : memref<3x192xf32, #tpu.memory_space<vmem>>, vector<1x64xf32>
    %176 = arith.maximumf %172, %173 : vector<1x64xf32>
    %177 = arith.maximumf %174, %175 : vector<1x64xf32>
    %178 = arith.maximumf %176, %177 : vector<1x64xf32>
    %c0_214 = arith.constant 0 : index
    %c0_215 = arith.constant 0 : index
    %179 = vector.load %arg17[%c0_214, %c0_215] : memref<3x192xf32, #tpu.memory_space<vmem>>, vector<3x64xf32>
    %180 = vector.broadcast %178 : vector<1x64xf32> to vector<3x64xf32>
    %181 = arith.addf %179, %180 : vector<3x64xf32>
    %c0_216 = arith.constant 0 : index
    %c0_217 = arith.constant 0 : index
    %182 = vector.load %arg18[%c0_216, %c0_217] : memref<3x192xf32, #tpu.memory_space<vmem>>, vector<3x64xf32>
    tpu.vector_store %arg18[%c0_216, %c0_217], %181 {strides = array<i32>} : memref<3x192xf32, #tpu.memory_space<vmem>>, vector<3x64xf32>,
    %c0_218 = arith.constant 0 : index
    %c64_219 = arith.constant 64 : index
    %183 = vector.load %arg17[%c0_218, %c64_219] : memref<3x192xf32, #tpu.memory_space<vmem>>, vector<3x64xf32>
    %184 = vector.broadcast %178 : vector<1x64xf32> to vector<3x64xf32>
    %185 = arith.addf %183, %184 : vector<3x64xf32>
    %c0_220 = arith.constant 0 : index
    %c64_221 = arith.constant 64 : index
    %186 = vector.load %arg18[%c0_220, %c64_221] : memref<3x192xf32, #tpu.memory_space<vmem>>, vector<3x64xf32>
    tpu.vector_store %arg18[%c0_220, %c64_221], %185 {strides = array<i32>} : memref<3x192xf32, #tpu.memory_space<vmem>>, vector<3x64xf32>,
    %c0_222 = arith.constant 0 : index
    %c128_223 = arith.constant 128 : index
    %187 = vector.load %arg17[%c0_222, %c128_223] : memref<3x192xf32, #tpu.memory_space<vmem>>, vector<3x64xf32>
    %188 = vector.broadcast %178 : vector<1x64xf32> to vector<3x64xf32>
    %189 = arith.addf %187, %188 : vector<3x64xf32>
    %c0_224 = arith.constant 0 : index
    %c128_225 = arith.constant 128 : index
    %190 = vector.load %arg18[%c0_224, %c128_225] : memref<3x192xf32, #tpu.memory_space<vmem>>, vector<3x64xf32>
    tpu.vector_store %arg18[%c0_224, %c128_225], %189 {strides = array<i32>} : memref<3x192xf32, #tpu.memory_space<vmem>>, vector<3x64xf32>,
    %c0_226 = arith.constant 0 : index
    %c0_227 = arith.constant 0 : index
    %191 = vector.load %arg9[%c0_226, %c0_227] : memref<1x128xf32, #tpu.memory_space<vmem>>, vector<1x128xf32>
    %c0_228 = arith.constant 0 : index
    %c0_229 = arith.constant 0 : index
    %192 = vector.load %arg18[%c0_228, %c0_229] : memref<3x192xf32, #tpu.memory_space<vmem>>, vector<1x192xf32>
    %c0_230 = arith.constant 0 : index
    %c0_231 = arith.constant 0 : index
    %c0_232 = arith.constant 0 : index
    %193 = vector.load %arg8[%c0_230, %c0_231, %c0_232] : memref<3x192x128xf32, #tpu.memory_space<vmem>>, vector<1x192x128xf32>
    %194 = vector.shape_cast %193 : vector<1x192x128xf32> to vector<192x128xf32>
    %cst_233 = arith.constant dense<0.000000e+00> : vector<1x128xf32>
    %195 = tpu.matmul %192, %194, %cst_233 {dimension_numbers = #tpu.dot_dimension_numbers<[1], [0], [0], [1], [0, 0, 1, 1], [], []>} : vector<1x192xf32>, vector<192x128xf32>, vector<1x128xf32> -> vector<1x128xf32>
    %196 = arith.addf %191, %195 : vector<1x128xf32>
    %c1_234 = arith.constant 1 : index
    %c0_235 = arith.constant 0 : index
    %197 = vector.load %arg18[%c1_234, %c0_235] : memref<3x192xf32, #tpu.memory_space<vmem>>, vector<1x192xf32>
    %c1_236 = arith.constant 1 : index
    %c0_237 = arith.constant 0 : index
    %c0_238 = arith.constant 0 : index
    %198 = vector.load %arg8[%c1_236, %c0_237, %c0_238] : memref<3x192x128xf32, #tpu.memory_space<vmem>>, vector<1x192x128xf32>
    %199 = vector.shape_cast %198 : vector<1x192x128xf32> to vector<192x128xf32>
    %cst_239 = arith.constant dense<0.000000e+00> : vector<1x128xf32>
    %200 = tpu.matmul %197, %199, %cst_239 {dimension_numbers = #tpu.dot_dimension_numbers<[1], [0], [0], [1], [0, 0, 1, 1], [], []>} : vector<1x192xf32>, vector<192x128xf32>, vector<1x128xf32> -> vector<1x128xf32>
    %201 = arith.addf %196, %200 : vector<1x128xf32>
    %c2_240 = arith.constant 2 : index
    %c0_241 = arith.constant 0 : index
    %202 = vector.load %arg18[%c2_240, %c0_241] : memref<3x192xf32, #tpu.memory_space<vmem>>, vector<1x192xf32>
    %c2_242 = arith.constant 2 : index
    %c0_243 = arith.constant 0 : index
    %c0_244 = arith.constant 0 : index
    %203 = vector.load %arg8[%c2_242, %c0_243, %c0_244] : memref<3x192x128xf32, #tpu.memory_space<vmem>>, vector<1x192x128xf32>
    %204 = vector.shape_cast %203 : vector<1x192x128xf32> to vector<192x128xf32>
    %cst_245 = arith.constant dense<0.000000e+00> : vector<1x128xf32>
    %205 = tpu.matmul %202, %204, %cst_245 {dimension_numbers = #tpu.dot_dimension_numbers<[1], [0], [0], [1], [0, 0, 1, 1], [], []>} : vector<1x192xf32>, vector<192x128xf32>, vector<1x128xf32> -> vector<1x128xf32>
    %206 = arith.addf %201, %205 : vector<1x128xf32>
    %c0_246 = arith.constant 0 : index
    %c0_247 = arith.constant 0 : index
    %c0_248 = arith.constant 0 : index
    %207 = vector.load %arg13[%c0_246, %c0_247, %c0_248] : memref<1x1x128xf32, #tpu.memory_space<vmem>>, vector<1x1x128xf32>
    %208 = vector.shape_cast %207 : vector<1x1x128xf32> to vector<1x128xf32>
    %209 = vector.shape_cast %206 : vector<1x128xf32> to vector<1x1x128xf32>
    tpu.vector_store %arg13[%c0_246, %c0_247, %c0_248], %209 {strides = array<i32>} : memref<1x1x128xf32, #tpu.memory_space<vmem>>, vector<1x1x128xf32>,
    %cst_249 = arith.constant 0.000000e+00 : f32
    %210 = vector.broadcast %cst_249 : f32 to vector<1x128xf32>
    %211 = arith.maximumf %206, %210 : vector<1x128xf32>
    %c0_250 = arith.constant 0 : index
    %c0_251 = arith.constant 0 : index
    %212 = vector.load %arg10[%c0_250, %c0_251] : memref<128x128xf32, #tpu.memory_space<vmem>>, vector<128x128xf32>
    %cst_252 = arith.constant dense<0.000000e+00> : vector<1x128xf32>
    %213 = tpu.matmul %211, %212, %cst_252 {dimension_numbers = #tpu.dot_dimension_numbers<[1], [0], [0], [1], [0, 0, 1, 1], [], []>} : vector<1x128xf32>, vector<128x128xf32>, vector<1x128xf32> -> vector<1x128xf32>
    %c0_253 = arith.constant 0 : index
    %c0_254 = arith.constant 0 : index
    %214 = vector.load %arg11[%c0_253, %c0_254] : memref<1x128xf32, #tpu.memory_space<vmem>>, vector<1x128xf32>
    %215 = arith.addf %213, %214 : vector<1x128xf32>
    %c0_255 = arith.constant 0 : index
    %c0_256 = arith.constant 0 : index
    %c0_257 = arith.constant 0 : index
    %216 = vector.load %arg12[%c0_255, %c0_256, %c0_257] : memref<1x1x128xf32, #tpu.memory_space<vmem>>, vector<1x1x128xf32>
    %217 = vector.shape_cast %216 : vector<1x1x128xf32> to vector<1x128xf32>
    %218 = vector.shape_cast %215 : vector<1x128xf32> to vector<1x1x128xf32>
    tpu.vector_store %arg12[%c0_255, %c0_256, %c0_257], %218 {strides = array<i32>} : memref<1x1x128xf32, #tpu.memory_space<vmem>>, vector<1x1x128xf32>,
    return
  }
  func.func @transform_0(%arg0: i32) -> (i32, i32, i32) {
    %c0_i32 = arith.constant 0 : i32
    %c0_i32_0 = arith.constant 0 : i32
    %c0_i32_1 = arith.constant 0 : i32
    return %arg0, %c0_i32, %c0_i32_0 : i32, i32, i32
  }
  func.func @transform_1(%arg0: i32) -> (i32, i32, i32) {
    %c0_i32 = arith.constant 0 : i32
    %c0_i32_0 = arith.constant 0 : i32
    %c0_i32_1 = arith.constant 0 : i32
    %c0_i32_2 = arith.constant 0 : i32
    return %c0_i32, %c0_i32_0, %c0_i32_1 : i32, i32, i32
  }
  func.func @transform_2(%arg0: i32) -> (i32, i32) {
    %c0_i32 = arith.constant 0 : i32
    %c0_i32_0 = arith.constant 0 : i32
    %c0_i32_1 = arith.constant 0 : i32
    return %c0_i32, %c0_i32_0 : i32, i32
  }
  func.func @transform_3(%arg0: i32) -> (i32, i32, i32) {
    %c0_i32 = arith.constant 0 : i32
    %c0_i32_0 = arith.constant 0 : i32
    %c0_i32_1 = arith.constant 0 : i32
    %c0_i32_2 = arith.constant 0 : i32
    return %c0_i32, %c0_i32_0, %c0_i32_1 : i32, i32, i32
  }
  func.func @transform_4(%arg0: i32) -> (i32, i32) {
    %c0_i32 = arith.constant 0 : i32
    %c0_i32_0 = arith.constant 0 : i32
    %c0_i32_1 = arith.constant 0 : i32
    return %c0_i32, %c0_i32_0 : i32, i32
  }
  func.func @transform_5(%arg0: i32) -> (i32, i32, i32) {
    %c0_i32 = arith.constant 0 : i32
    %c0_i32_0 = arith.constant 0 : i32
    %c0_i32_1 = arith.constant 0 : i32
    %c0_i32_2 = arith.constant 0 : i32
    return %c0_i32, %c0_i32_0, %c0_i32_1 : i32, i32, i32
  }
  func.func @transform_6(%arg0: i32) -> (i32, i32) {
    %c0_i32 = arith.constant 0 : i32
    %c0_i32_0 = arith.constant 0 : i32
    %c0_i32_1 = arith.constant 0 : i32
    return %c0_i32, %c0_i32_0 : i32, i32
  }
  func.func @transform_7(%arg0: i32) -> (i32, i32, i32) {
    %c0_i32 = arith.constant 0 : i32
    %c0_i32_0 = arith.constant 0 : i32
    %c0_i32_1 = arith.constant 0 : i32
    %c0_i32_2 = arith.constant 0 : i32
    return %c0_i32, %c0_i32_0, %c0_i32_1 : i32, i32, i32
  }
  func.func @transform_8(%arg0: i32) -> (i32, i32) {
    %c0_i32 = arith.constant 0 : i32
    %c0_i32_0 = arith.constant 0 : i32
    %c0_i32_1 = arith.constant 0 : i32
    return %c0_i32, %c0_i32_0 : i32, i32
  }
  func.func @transform_9(%arg0: i32) -> (i32, i32) {
    %c0_i32 = arith.constant 0 : i32
    %c0_i32_0 = arith.constant 0 : i32
    %c0_i32_1 = arith.constant 0 : i32
    return %c0_i32, %c0_i32_0 : i32, i32
  }
  func.func @transform_10(%arg0: i32) -> (i32, i32) {
    %c0_i32 = arith.constant 0 : i32
    %c0_i32_0 = arith.constant 0 : i32
    %c0_i32_1 = arith.constant 0 : i32
    return %c0_i32, %c0_i32_0 : i32, i32
  }
  func.func @transform_11(%arg0: i32) -> (i32, i32, i32) {
    %c0_i32 = arith.constant 0 : i32
    %c0_i32_0 = arith.constant 0 : i32
    %c0_i32_1 = arith.constant 0 : i32
    return %arg0, %c0_i32, %c0_i32_0 : i32, i32, i32
  }
  func.func @transform_12(%arg0: i32) -> (i32, i32, i32) {
    %c0_i32 = arith.constant 0 : i32
    %c0_i32_0 = arith.constant 0 : i32
    %c0_i32_1 = arith.constant 0 : i32
    return %arg0, %c0_i32, %c0_i32_0 : i32, i32, i32
  }
}

</mosaic_0001>

<llo_original>
// kernel: resnet1_forward.1
$region0: #{resnet1_forward.1}
  #allocation0 [shape = 'u32[]', space=smem, size = 0x4, offset = 0x4, fixed_abs, tag = 'smem constant byte address 0x4 - core index']
  #allocation1 [shape = 'u32[72,128]{1,0:T(1,128)}', space=vmem, size = 0x9000, scoped, tag = 'internal scratch']
  #allocation2 [shape = 'f32[6,384]{1,0:T(8,128)}', space=vmem, size = 0x3000, scoped, tag = 'scratch operand']
  #allocation3 [shape = 'f32[3,192]{1,0:T(4,128)}', space=vmem, size = 0x1000, scoped, tag = 'scratch operand']
  #allocation4 [shape = 'f32[3,192]{1,0:T(4,128)}', space=vmem, size = 0x1000, scoped, tag = 'scratch operand']
  #allocation5 [shape = 'f32[3,192]{1,0:T(4,128)}', space=vmem, size = 0x1000, scoped, tag = 'scratch operand']
  #allocation6 [shape = 'f32[3,192]{1,0:T(4,128)}', space=vmem, size = 0x1000, scoped, tag = 'scratch operand']
  %s0 = inlined_call_operand.vmem [shape: f32[2,6,18], index: 0, kind: input, shape index: {}]
  %s1 = inlined_call_operand.hbm [shape: f32[3,18,384], index: 1, kind: input, shape index: {}]
  %s2 = inlined_call_operand.vmem [shape: f32[1,384], index: 2, kind: input, shape index: {}]
  %s3 = inlined_call_operand.hbm [shape: f32[3,192,192], index: 3, kind: input, shape index: {}]
  %s4 = inlined_call_operand.vmem [shape: f32[1,192], index: 4, kind: input, shape index: {}]
  %s5 = inlined_call_operand.hbm [shape: f32[3,192,192], index: 5, kind: input, shape index: {}]
  %s6 = inlined_call_operand.hbm [shape: f32[1,192], index: 6, kind: input, shape index: {}]
  %s7 = inlined_call_operand.hbm [shape: f32[3,192,128], index: 7, kind: input, shape index: {}]
  %s8 = inlined_call_operand.vmem [shape: f32[1,128], index: 8, kind: input, shape index: {}]
  %s9 = inlined_call_operand.vmem [shape: f32[128,128], index: 9, kind: input, shape index: {}]
  %s10 = inlined_call_operand.hbm [shape: f32[1,128], index: 10, kind: input, shape index: {}]
  %s11 = inlined_call_operand.hbm [shape: f32[2,1,128], index: 11, kind: output, shape index: {0}]
  %s12 = inlined_call_operand.hbm [shape: f32[2,1,128], index: 12, kind: output, shape index: {1}]
  %13 = xla_tuple %s11, %s12
  %s14 = sld [smem:[#allocation0]]
  $region109: #{resnet1_forward.1} parent=0
    _
  %s16 = ssub.s32 1, %s14
  %s17 = scalar_select 0, %s16, %s14
  $region1: #{resnet1_forward.1} parent=0
    #allocation7 [shape = 'u8[110592]{0}', space=vmem, size = 0x1b000, scoped, tag = 'input window, operand 1, single buffered']
    #allocation8 [shape = 's32[2]{0}', space=sflag, size = 0x8, scoped, tag = 'scoped memory for resnet1_forward.1']
    #allocation9 [shape = 's32[2]{0}', space=sflag, size = 0x8, scoped, tag = 'scoped memory for resnet1_forward.1']
    #allocation10 [shape = 'u8[589824]{0}', space=vmem, size = 0x90000, scoped, tag = 'input window, operand 3, single buffered']
    #allocation11 [shape = 's32[1]{0}', space=sflag, size = 0x4, scoped, tag = 'scoped memory for resnet1_forward.1']
    #allocation12 [shape = 'u8[589824]{0}', space=vmem, size = 0x90000, scoped, tag = 'input window, operand 5, single buffered']
    #allocation13 [shape = 'u8[1024]{0}', space=vmem, size = 0x400, scoped, tag = 'input window, operand 6, single buffered']
    #allocation14 [shape = 's32[1]{0}', space=sflag, size = 0x4, scoped, tag = 'scoped memory for resnet1_forward.1']
    #allocation15 [shape = 'u8[294912]{0}', space=vmem, size = 0x48000, scoped, tag = 'input window, operand 7, single buffered']
    #allocation16 [shape = 'u8[512]{0}', space=vmem, size = 0x400, scoped, tag = 'input window, operand 10, single buffered']
    #allocation17 [shape = 's32[1]{0}', space=sflag, size = 0x4, scoped, tag = 'scoped memory for resnet1_forward.1']
    #allocation18 [shape = 'u8[1024]{0}', space=vmem, size = 0x400, scoped, tag = 'output window, operand 0']
    #allocation19 [shape = 'u8[1024]{0}', space=vmem, size = 0x400, scoped, tag = 'output window, operand 1']
    #allocation20 [shape = 's32[2]{0}', space=sflag, size = 0x8, scoped, tag = 'scoped memory for resnet1_forward.1']
    %18 = vsyncpa [#allocation8], 0
    %19 = vsyncpa [#allocation11], 0
    %20 = vsyncpa [#allocation14], 0
    %21 = vsyncpa [#allocation17], 0
    %22 = vsyncpa [#allocation9], 0
    %s23 = scalar_lea.sflag [#allocation9], 1
    %24 = vsyncpa %s23, 0
    %25 = vsyncpa [#allocation20], 0
    %s26 = scalar_lea.sflag [#allocation20], 1
    %27 = vsyncpa %s26, 0
    loop: start=0, step=1, limit=4
    $region2: #{resnet1_forward.1} parent=1 // loop_pre_header
      _
    $region3: #{resnet1_forward.1} parent=1 // loop_header
      %s29 = sphi 0, %s33
      %p30 = scmp.ge.s32.totalorder %s29, 4
      %s39 = sphi 0, %s41
      %s42 = sphi 0, %s39
      %s43 = sphi 0, %s42
      %s59 = sphi 0, %s43
      %s63 = sphi 0, %s63
      %s65 = sphi 0, %s63
      %s66 = sphi 0, %s65
      %s80 = sphi 0, %s66
      %s84 = sphi 0, %s84
      %s86 = sphi 0, %s84
      %s87 = sphi 0, %s86
      %s101 = sphi 0, %s87
      %s105 = sphi 0, %s105
      %s107 = sphi 0, %s105
      %s108 = sphi 0, %s107
      %s122 = sphi 0, %s108
      %s126 = sphi 0, %s126
      %s128 = sphi 0, %s126
      %s129 = sphi 0, %s128
      %s143 = sphi 0, %s129
      %s147 = sphi 0, %s147
      %s149 = sphi 0, %s147
      %s150 = sphi 0, %s149
      %s164 = sphi 0, %s150
      %s168 = sphi 0, %s168
      %s170 = sphi 0, %s168
      %s171 = sphi 0, %s170
      %s185 = sphi 0, %s171
      %s189 = sphi 0, %s189
      %s191 = sphi 0, %s189
      %s192 = sphi 0, %s191
      %s206 = sphi 0, %s192
      %s210 = sphi 0, %s210
      %s212 = sphi 0, %s210
      %s213 = sphi 0, %s212
      %s227 = sphi 0, %s213
      %s231 = sphi 0, %s231
      %s233 = sphi 0, %s231
      %s234 = sphi 0, %s233
      %s248 = sphi 0, %s234
      %s252 = sphi 0, %s252
      %s254 = sphi 0, %s252
      %s255 = sphi 0, %s254
      %s269 = sphi 0, %s255
      %s275 = sphi 0, %s277
      %s278 = sphi 0, %s275
      %s279 = sphi 0, %s278
      %s295 = sphi 0, %s279
      %s301 = sphi 0, %s303
      %s304 = sphi 0, %s301
      %s305 = sphi 0, %s304
      %s321 = sphi 0, %s305
    $region4: #{resnet1_forward.1} parent=1 // loop_header_branch
      %32 = sbr.rel (%p30) target = $region8
    $region5: #{resnet1_forward.1} parent=1 // loop_body
      %s34 = ssub.s32 %s29, 1
      %s35 = ssub.s32 %s29, 2
      %s36 = sadd.s32 %s29, 1
      %s37 = ssub.s32 %s29, %s36
      %p38 = scmp.eq.s32.totalorder %s37, 0
      %s40 = sadd.s32 %s39, 1
      %s41 = scalar_select %p38, %s39, %s40
      %p44 = pneg %p38
      %p45 = scmp.eq.s32.totalorder %s29, 1
      %p46 = por %p44, %p45
      %p47 = scmp.ne.s32.totalorder %s39, %s42
      %p48 = scmp.eq.s32.totalorder %s29, 0
      %p49 = por %p47, %p48
      %p50 = scmp.ne.s32.totalorder %s39, %s42
      %p51 = scmp.eq.s32.totalorder %s34, 1
      %p52 = por %p50, %p51
      %p53 = scmp.ne.s32.totalorder %s42, %s43
      %p54 = scmp.eq.s32.totalorder %s34, 0
      %p55 = por %p53, %p54
      %p56 = scmp.ne.s32.totalorder %s42, %s43
      %p57 = scmp.eq.s32.totalorder %s35, 1
      %p58 = por %p56, %p57
      %p60 = scmp.ne.s32.totalorder %s43, %s59
      %p61 = scmp.eq.s32.totalorder %s35, 0
      %p62 = por %p60, %p61
      %s64 = sadd.s32 %s63, 1
      %p67 = scmp.eq.s32.totalorder %s29, 1
      %p68 = scmp.ne.s32.totalorder %s63, %s65
      %p69 = scmp.eq.s32.totalorder %s29, 0
      %p70 = por %p68, %p69
      %p71 = scmp.ne.s32.totalorder %s63, %s65
      %p72 = scmp.eq.s32.totalorder %s34, 1
      %p73 = por %p71, %p72
      %p74 = scmp.ne.s32.totalorder %s65, %s66
      %p75 = scmp.eq.s32.totalorder %s34, 0
      %p76 = por %p74, %p75
      %p77 = scmp.ne.s32.totalorder %s65, %s66
      %p78 = scmp.eq.s32.totalorder %s35, 1
      %p79 = por %p77, %p78
      %p81 = scmp.ne.s32.totalorder %s66, %s80
      %p82 = scmp.eq.s32.totalorder %s35, 0
      %p83 = por %p81, %p82
      %s85 = sadd.s32 %s84, 1
      %p88 = scmp.eq.s32.totalorder %s29, 1
      %p89 = scmp.ne.s32.totalorder %s84, %s86
      %p90 = scmp.eq.s32.totalorder %s29, 0
      %p91 = por %p89, %p90
      %p92 = scmp.ne.s32.totalorder %s84, %s86
      %p93 = scmp.eq.s32.totalorder %s34, 1
      %p94 = por %p92, %p93
      %p95 = scmp.ne.s32.totalorder %s86, %s87
      %p96 = scmp.eq.s32.totalorder %s34, 0
      %p97 = por %p95, %p96
      %p98 = scmp.ne.s32.totalorder %s86, %s87
      %p99 = scmp.eq.s32.totalorder %s35, 1
      %p100 = por %p98, %p99
      %p102 = scmp.ne.s32.totalorder %s87, %s101
      %p103 = scmp.eq.s32.totalorder %s35, 0
      %p104 = por %p102, %p103
      %s106 = sadd.s32 %s105, 1
      %p109 = scmp.eq.s32.totalorder %s29, 1
      %p110 = scmp.ne.s32.totalorder %s105, %s107
      %p111 = scmp.eq.s32.totalorder %s29, 0
      %p112 = por %p110, %p111
      %p113 = scmp.ne.s32.totalorder %s105, %s107
      %p114 = scmp.eq.s32.totalorder %s34, 1
      %p115 = por %p113, %p114
      %p116 = scmp.ne.s32.totalorder %s107, %s108
      %p117 = scmp.eq.s32.totalorder %s34, 0
      %p118 = por %p116, %p117
      %p119 = scmp.ne.s32.totalorder %s107, %s108
      %p120 = scmp.eq.s32.totalorder %s35, 1
      %p121 = por %p119, %p120
      %p123 = scmp.ne.s32.totalorder %s108, %s122
      %p124 = scmp.eq.s32.totalorder %s35, 0
      %p125 = por %p123, %p124
      %s127 = sadd.s32 %s126, 1
      %p130 = scmp.eq.s32.totalorder %s29, 1
      %p131 = scmp.ne.s32.totalorder %s126, %s128
      %p132 = scmp.eq.s32.totalorder %s29, 0
      %p133 = por %p131, %p132
      %p134 = scmp.ne.s32.totalorder %s126, %s128
      %p135 = scmp.eq.s32.totalorder %s34, 1
      %p136 = por %p134, %p135
      %p137 = scmp.ne.s32.totalorder %s128, %s129
      %p138 = scmp.eq.s32.totalorder %s34, 0
      %p139 = por %p137, %p138
      %p140 = scmp.ne.s32.totalorder %s128, %s129
      %p141 = scmp.eq.s32.totalorder %s35, 1
      %p142 = por %p140, %p141
      %p144 = scmp.ne.s32.totalorder %s129, %s143
      %p145 = scmp.eq.s32.totalorder %s35, 0
      %p146 = por %p144, %p145
      %s148 = sadd.s32 %s147, 1
      %p151 = scmp.eq.s32.totalorder %s29, 1
      %p152 = scmp.ne.s32.totalorder %s147, %s149
      %p153 = scmp.eq.s32.totalorder %s29, 0
      %p154 = por %p152, %p153
      %p155 = scmp.ne.s32.totalorder %s147, %s149
      %p156 = scmp.eq.s32.totalorder %s34, 1
      %p157 = por %p155, %p156
      %p158 = scmp.ne.s32.totalorder %s149, %s150
      %p159 = scmp.eq.s32.totalorder %s34, 0
      %p160 = por %p158, %p159
      %p161 = scmp.ne.s32.totalorder %s149, %s150
      %p162 = scmp.eq.s32.totalorder %s35, 1
      %p163 = por %p161, %p162
      %p165 = scmp.ne.s32.totalorder %s150, %s164
      %p166 = scmp.eq.s32.totalorder %s35, 0
      %p167 = por %p165, %p166
      %s169 = sadd.s32 %s168, 1
      %p172 = scmp.eq.s32.totalorder %s29, 1
      %p173 = scmp.ne.s32.totalorder %s168, %s170
      %p174 = scmp.eq.s32.totalorder %s29, 0
      %p175 = por %p173, %p174
      %p176 = scmp.ne.s32.totalorder %s168, %s170
      %p177 = scmp.eq.s32.totalorder %s34, 1
      %p178 = por %p176, %p177
      %p179 = scmp.ne.s32.totalorder %s170, %s171
      %p180 = scmp.eq.s32.totalorder %s34, 0
      %p181 = por %p179, %p180
      %p182 = scmp.ne.s32.totalorder %s170, %s171
      %p183 = scmp.eq.s32.totalorder %s35, 1
      %p184 = por %p182, %p183
      %p186 = scmp.ne.s32.totalorder %s171, %s185
      %p187 = scmp.eq.s32.totalorder %s35, 0
      %p188 = por %p186, %p187
      %s190 = sadd.s32 %s189, 1
      %p193 = scmp.eq.s32.totalorder %s29, 1
      %p194 = scmp.ne.s32.totalorder %s189, %s191
      %p195 = scmp.eq.s32.totalorder %s29, 0
      %p196 = por %p194, %p195
      %p197 = scmp.ne.s32.totalorder %s189, %s191
      %p198 = scmp.eq.s32.totalorder %s34, 1
      %p199 = por %p197, %p198
      %p200 = scmp.ne.s32.totalorder %s191, %s192
      %p201 = scmp.eq.s32.totalorder %s34, 0
      %p202 = por %p200, %p201
      %p203 = scmp.ne.s32.totalorder %s191, %s192
      %p204 = scmp.eq.s32.totalorder %s35, 1
      %p205 = por %p203, %p204
      %p207 = scmp.ne.s32.totalorder %s192, %s206
      %p208 = scmp.eq.s32.totalorder %s35, 0
      %p209 = por %p207, %p208
      %s211 = sadd.s32 %s210, 1
      %p214 = scmp.eq.s32.totalorder %s29, 1
      %p215 = scmp.ne.s32.totalorder %s210, %s212
      %p216 = scmp.eq.s32.totalorder %s29, 0
      %p217 = por %p215, %p216
      %p218 = scmp.ne.s32.totalorder %s210, %s212
      %p219 = scmp.eq.s32.totalorder %s34, 1
      %p220 = por %p218, %p219
      %p221 = scmp.ne.s32.totalorder %s212, %s213
      %p222 = scmp.eq.s32.totalorder %s34, 0
      %p223 = por %p221, %p222
      %p224 = scmp.ne.s32.totalorder %s212, %s213
      %p225 = scmp.eq.s32.totalorder %s35, 1
      %p226 = por %p224, %p225
      %p228 = scmp.ne.s32.totalorder %s213, %s227
      %p229 = scmp.eq.s32.totalorder %s35, 0
      %p230 = por %p228, %p229
      %s232 = sadd.s32 %s231, 1
      %p235 = scmp.eq.s32.totalorder %s29, 1
      %p236 = scmp.ne.s32.totalorder %s231, %s233
      %p237 = scmp.eq.s32.totalorder %s29, 0
      %p238 = por %p236, %p237
      %p239 = scmp.ne.s32.totalorder %s231, %s233
      %p240 = scmp.eq.s32.totalorder %s34, 1
      %p241 = por %p239, %p240
      %p242 = scmp.ne.s32.totalorder %s233, %s234
      %p243 = scmp.eq.s32.totalorder %s34, 0
      %p244 = por %p242, %p243
      %p245 = scmp.ne.s32.totalorder %s233, %s234
      %p246 = scmp.eq.s32.totalorder %s35, 1
      %p247 = por %p245, %p246
      %p249 = scmp.ne.s32.totalorder %s234, %s248
      %p250 = scmp.eq.s32.totalorder %s35, 0
      %p251 = por %p249, %p250
      %s253 = sadd.s32 %s252, 1
      %p256 = scmp.eq.s32.totalorder %s29, 1
      %p257 = scmp.ne.s32.totalorder %s252, %s254
      %p258 = scmp.eq.s32.totalorder %s29, 0
      %p259 = por %p257, %p258
      %p260 = scmp.ne.s32.totalorder %s252, %s254
      %p261 = scmp.eq.s32.totalorder %s34, 1
      %p262 = por %p260, %p261
      %p263 = scmp.ne.s32.totalorder %s254, %s255
      %p264 = scmp.eq.s32.totalorder %s34, 0
      %p265 = por %p263, %p264
      %p266 = scmp.ne.s32.totalorder %s254, %s255
      %p267 = scmp.eq.s32.totalorder %s35, 1
      %p268 = por %p266, %p267
      %p270 = scmp.ne.s32.totalorder %s255, %s269
      %p271 = scmp.eq.s32.totalorder %s35, 0
      %p272 = por %p270, %p271
      %s273 = ssub.s32 %s29, %s36
      %p274 = scmp.eq.s32.totalorder %s273, 0
      %s276 = sadd.s32 %s275, 1
      %s277 = scalar_select %p274, %s275, %s276
      %p280 = pneg %p274
      %p281 = scmp.eq.s32.totalorder %s29, 1
      %p282 = por %p280, %p281
      %p283 = scmp.ne.s32.totalorder %s275, %s278
      %p284 = scmp.eq.s32.totalorder %s29, 0
      %p285 = por %p283, %p284
      %p286 = scmp.ne.s32.totalorder %s275, %s278
      %p287 = scmp.eq.s32.totalorder %s34, 1
      %p288 = por %p286, %p287
      %p289 = scmp.ne.s32.totalorder %s278, %s279
      %p290 = scmp.eq.s32.totalorder %s34, 0
      %p291 = por %p289, %p290
      %p292 = scmp.ne.s32.totalorder %s278, %s279
      %p293 = scmp.eq.s32.totalorder %s35, 1
      %p294 = por %p292, %p293
      %p296 = scmp.ne.s32.totalorder %s279, %s295
      %p297 = scmp.eq.s32.totalorder %s35, 0
      %p298 = por %p296, %p297
      %s299 = ssub.s32 %s29, %s36
      %p300 = scmp.eq.s32.totalorder %s299, 0
      %s302 = sadd.s32 %s301, 1
      %s303 = scalar_select %p300, %s301, %s302
      %p306 = pneg %p300
      %p307 = scmp.eq.s32.totalorder %s29, 1
      %p308 = por %p306, %p307
      %p309 = scmp.ne.s32.totalorder %s301, %s304
      %p310 = scmp.eq.s32.totalorder %s29, 0
      %p311 = por %p309, %p310
      %p312 = scmp.ne.s32.totalorder %s301, %s304
      %p313 = scmp.eq.s32.totalorder %s34, 1
      %p314 = por %p312, %p313
      %p315 = scmp.ne.s32.totalorder %s304, %s305
      %p316 = scmp.eq.s32.totalorder %s34, 0
      %p317 = por %p315, %p316
      %p318 = scmp.ne.s32.totalorder %s304, %s305
      %p319 = scmp.eq.s32.totalorder %s35, 1
      %p320 = por %p318, %p319
      %p322 = scmp.ne.s32.totalorder %s305, %s321
      %p323 = scmp.eq.s32.totalorder %s35, 0
      %p324 = por %p322, %p323
      %p325 = scmp.le.s32.totalorder 1, %s29
      %p326 = scmp.lt.s32.totalorder %s29, 3
      %p327 = pnand %p325, %p326
      %p328 = pneg %p327
      // Predicated region
      $region9: #{resnet1_forward.1} parent=5 // pred_check
        _
      $region10: #{resnet1_forward.1} parent=5 // pred_check_branch
        %330 = sbr.rel (%p327) target = $region12
      $region11: #{resnet1_forward.1} parent=5 // pred_region
        %s331 = ssub.s32 %s29, 1
        // Predicated region
        $region13: #{resnet1_forward.1} parent=11 // pred_check
          %p332 = pneg %p76
        $region14: #{resnet1_forward.1} parent=11 // pred_check_branch
          %334 = sbr.rel (%p332) target = $region16
        $region15: #{resnet1_forward.1} parent=11 // pred_region
          %336 = vsyncadd [#allocation8], 0
          %s337 = sshll.u32 %s1, 4
          %s338 = int_to_ptr.hbm [resolvable:$true] %s337
          %s339 = sshll.u32 [#allocation7], 4
          %s340 = int_to_ptr.vmem [resolvable:$true] %s339
          %345 = dma.hbm_to_vmem [thread:$0]  %s338, 3456, %s340, [#allocation8], 384, 384, 24
        $region16: #{resnet1_forward.1} parent=11 // pred_fallthru
          _
        // Predicated region
        $region17: #{resnet1_forward.1} parent=11 // pred_check
          %p346 = pneg %p97
        $region18: #{resnet1_forward.1} parent=11 // pred_check_branch
          %348 = sbr.rel (%p346) target = $region20
        $region19: #{resnet1_forward.1} parent=11 // pred_region
          _
        $region20: #{resnet1_forward.1} parent=11 // pred_fallthru
          _
        // Predicated region
        $region21: #{resnet1_forward.1} parent=11 // pred_check
          %p349 = pneg %p118
        $region22: #{resnet1_forward.1} parent=11 // pred_check_branch
          %351 = sbr.rel (%p349) target = $region24
        $region23: #{resnet1_forward.1} parent=11 // pred_region
          %353 = vsyncadd [#allocation11], 0
          %s354 = sshll.u32 %s3, 4
          %s355 = int_to_ptr.hbm [resolvable:$true] %s354
          %s356 = sshll.u32 [#allocation10], 4
          %s357 = int_to_ptr.vmem [resolvable:$true] %s356
          %362 = dma.hbm_to_vmem [thread:$0]  %s355, 18432, %s357, [#allocation11], 256, 256, 16
        $region24: #{resnet1_forward.1} parent=11 // pred_fallthru
          _
        // Predicated region
        $region25: #{resnet1_forward.1} parent=11 // pred_check
          %p363 = pneg %p139
        $region26: #{resnet1_forward.1} parent=11 // pred_check_branch
          %365 = sbr.rel (%p363) target = $region28
        $region27: #{resnet1_forward.1} parent=11 // pred_region
          _
        $region28: #{resnet1_forward.1} parent=11 // pred_fallthru
          _
        // Predicated region
        $region29: #{resnet1_forward.1} parent=11 // pred_check
          %p366 = pneg %p160
        $region30: #{resnet1_forward.1} parent=11 // pred_check_branch
          %368 = sbr.rel (%p366) target = $region32
        $region31: #{resnet1_forward.1} parent=11 // pred_region
          %370 = vsyncadd [#allocation11], 0
          %s371 = sshll.u32 %s5, 4
          %s372 = int_to_ptr.hbm [resolvable:$true] %s371
          %s373 = sshll.u32 [#allocation12], 4
          %s374 = int_to_ptr.vmem [resolvable:$true] %s373
          %379 = dma.hbm_to_vmem [thread:$0]  %s372, 18432, %s374, [#allocation11], 256, 256, 16
        $region32: #{resnet1_forward.1} parent=11 // pred_fallthru
          _
        // Predicated region
        $region33: #{resnet1_forward.1} parent=11 // pred_check
          %p380 = pneg %p181
        $region34: #{resnet1_forward.1} parent=11 // pred_check_branch
          %382 = sbr.rel (%p380) target = $region36
        $region35: #{resnet1_forward.1} parent=11 // pred_region
          %384 = vsyncadd [#allocation14], 0
          %s386 = sshll.u32 %s6, 4
          %s387 = int_to_ptr.hbm [resolvable:$true] %s386
          %s388 = sshll.u32 [#allocation13], 4
          %s389 = int_to_ptr.vmem [resolvable:$true] %s388
          %391 = dma.hbm_to_vmem [thread:$0]  %s387, 32, %s389, [#allocation14]
        $region36: #{resnet1_forward.1} parent=11 // pred_fallthru
          _
        // Predicated region
        $region37: #{resnet1_forward.1} parent=11 // pred_check
          %p392 = pneg %p202
        $region38: #{resnet1_forward.1} parent=11 // pred_check_branch
          %394 = sbr.rel (%p392) target = $region40
        $region39: #{resnet1_forward.1} parent=11 // pred_region
          %396 = vsyncadd [#allocation14], 0
          %s397 = sshll.u32 %s7, 4
          %s398 = int_to_ptr.hbm [resolvable:$true] %s397
          %s399 = sshll.u32 [#allocation15], 4
          %s400 = int_to_ptr.vmem [resolvable:$true] %s399
          %405 = dma.hbm_to_vmem [thread:$0]  %s398, 9216, %s400, [#allocation14], 128, 128, 8
        $region40: #{resnet1_forward.1} parent=11 // pred_fallthru
          _
        // Predicated region
        $region41: #{resnet1_forward.1} parent=11 // pred_check
          %p406 = pneg %p223
        $region42: #{resnet1_forward.1} parent=11 // pred_check_branch
          %408 = sbr.rel (%p406) target = $region44
        $region43: #{resnet1_forward.1} parent=11 // pred_region
          _
        $region44: #{resnet1_forward.1} parent=11 // pred_fallthru
          _
        // Predicated region
        $region45: #{resnet1_forward.1} parent=11 // pred_check
          %p409 = pneg %p244
        $region46: #{resnet1_forward.1} parent=11 // pred_check_branch
          %411 = sbr.rel (%p409) target = $region48
        $region47: #{resnet1_forward.1} parent=11 // pred_region
          _
        $region48: #{resnet1_forward.1} parent=11 // pred_fallthru
          _
        // Predicated region
        $region49: #{resnet1_forward.1} parent=11 // pred_check
          %p412 = pneg %p265
        $region50: #{resnet1_forward.1} parent=11 // pred_check_branch
          %414 = sbr.rel (%p412) target = $region52
        $region51: #{resnet1_forward.1} parent=11 // pred_region
          %416 = vsyncadd [#allocation17], 0
          %s418 = sshll.u32 %s10, 4
          %s419 = int_to_ptr.hbm [resolvable:$true] %s418
          %s420 = sshll.u32 [#allocation16], 4
          %s421 = int_to_ptr.vmem [resolvable:$true] %s420
          %423 = dma.hbm_to_vmem [thread:$0]  %s419, 16, %s421, [#allocation17]
        $region52: #{resnet1_forward.1} parent=11 // pred_fallthru
          _
      $region12: #{resnet1_forward.1} parent=5 // pred_fallthru
        _
      %p424 = scmp.lt.s32.totalorder %s29, 2
      // Predicated region
      $region53: #{resnet1_forward.1} parent=5 // pred_check
        %p425 = pneg %p424
      $region54: #{resnet1_forward.1} parent=5 // pred_check_branch
        %427 = sbr.rel (%p425) target = $region56
      $region55: #{resnet1_forward.1} parent=5 // pred_region
        // Predicated region
        $region57: #{resnet1_forward.1} parent=55 // pred_check
          %p428 = pneg %p49
        $region58: #{resnet1_forward.1} parent=55 // pred_check_branch
          %430 = sbr.rel (%p428) target = $region60
        $region59: #{resnet1_forward.1} parent=55 // pred_region
          %p431 = scmp.lt.s32.totalorder %s29, 1
          %s432 = scalar_select %p431, %s29, 1
          %s433 = smul.addr %s432, 8
          %s434 = scalar_lea.vmem %s0, %s433
        $region60: #{resnet1_forward.1} parent=55 // pred_fallthru
          _
      $region56: #{resnet1_forward.1} parent=5 // pred_fallthru
        _
      %p435 = scmp.le.s32.totalorder 1, %s29
      %p436 = scmp.lt.s32.totalorder %s29, 3
      %p437 = pnand %p435, %p436
      %p438 = pneg %p437
      // Predicated region
      $region61: #{resnet1_forward.1} parent=5 // pred_check
        _
      $region62: #{resnet1_forward.1} parent=5 // pred_check_branch
        %440 = sbr.rel (%p437) target = $region64
      $region63: #{resnet1_forward.1} parent=5 // pred_region
        %s441 = ssub.s32 %s29, 1
        // Predicated region
        $region65: #{resnet1_forward.1} parent=63 // pred_check
          %p442 = pneg %p76
        $region66: #{resnet1_forward.1} parent=63 // pred_check_branch
          %444 = sbr.rel (%p442) target = $region68
        $region67: #{resnet1_forward.1} parent=63 // pred_region
          %446 = dma.done [#allocation8], 3456
        $region68: #{resnet1_forward.1} parent=63 // pred_fallthru
          _
        // Predicated region
        $region69: #{resnet1_forward.1} parent=63 // pred_check
          %p447 = pneg %p118
        $region70: #{resnet1_forward.1} parent=63 // pred_check_branch
          %449 = sbr.rel (%p447) target = $region72
        $region71: #{resnet1_forward.1} parent=63 // pred_region
          %451 = dma.done [#allocation11], 18432
        $region72: #{resnet1_forward.1} parent=63 // pred_fallthru
          _
        // Predicated region
        $region73: #{resnet1_forward.1} parent=63 // pred_check
          %p452 = pneg %p160
        $region74: #{resnet1_forward.1} parent=63 // pred_check_branch
          %454 = sbr.rel (%p452) target = $region76
        $region75: #{resnet1_forward.1} parent=63 // pred_region
          %456 = dma.done [#allocation11], 18432
        $region76: #{resnet1_forward.1} parent=63 // pred_fallthru
          _
        // Predicated region
        $region77: #{resnet1_forward.1} parent=63 // pred_check
          %p457 = pneg %p181
        $region78: #{resnet1_forward.1} parent=63 // pred_check_branch
          %459 = sbr.rel (%p457) target = $region80
        $region79: #{resnet1_forward.1} parent=63 // pred_region
          %461 = dma.done [#allocation14], 32
        $region80: #{resnet1_forward.1} parent=63 // pred_fallthru
          _
        // Predicated region
        $region81: #{resnet1_forward.1} parent=63 // pred_check
          %p462 = pneg %p202
        $region82: #{resnet1_forward.1} parent=63 // pred_check_branch
          %464 = sbr.rel (%p462) target = $region84
        $region83: #{resnet1_forward.1} parent=63 // pred_region
          %466 = dma.done [#allocation14], 9216
        $region84: #{resnet1_forward.1} parent=63 // pred_fallthru
          _
        // Predicated region
        $region85: #{resnet1_forward.1} parent=63 // pred_check
          %p467 = pneg %p265
        $region86: #{resnet1_forward.1} parent=63 // pred_check_branch
          %469 = sbr.rel (%p467) target = $region88
        $region87: #{resnet1_forward.1} parent=63 // pred_region
          %471 = dma.done [#allocation17], 16
        $region88: #{resnet1_forward.1} parent=63 // pred_fallthru
          _
        %p472 = scmp.lt.s32.totalorder %s34, 1
        %s473 = scalar_select %p472, %s34, 1
        %s474 = smul.addr %s473, 8
        %s475 = scalar_lea.vmem %s0, %s474
        %p476 = pneg %p55
        %p477 = pneg %p52
        %p478 = pneg %p76
        %p479 = pneg %p73
        %p480 = pneg %p97
        %p481 = pneg %p94
        %p482 = pneg %p118
        %p483 = pneg %p115
        %p484 = pneg %p139
        %p485 = pneg %p136
        %p486 = pneg %p160
        %p487 = pneg %p157
        %p488 = pneg %p181
        %p489 = pneg %p178
        %p490 = pneg %p202
        %p491 = pneg %p199
        %p492 = pneg %p223
        %p493 = pneg %p220
        %p494 = pneg %p244
        %p495 = pneg %p241
        %p496 = pneg %p265
        %p497 = pneg %p262
        %p498 = pneg %p291
        %p499 = pneg %p288
        %s500 = sand.u32 %s278, 1
        %s501 = scalar_lea.sflag [#allocation9], %s500
        %s502 = sand.u32 %s278, 1
        %s503 = scalar_lea.vmem [#allocation18], %s502
        %p504 = pneg %p317
        %p505 = pneg %p314
        %s506 = sand.u32 %s304, 1
        %s507 = scalar_lea.sflag [#allocation20], %s506
        %s508 = sand.u32 %s304, 1
        %s509 = scalar_lea.vmem [#allocation19], %s508
        %p510 = scmp.lt.s32.totalorder %s34, 1
        %s511 = scalar_select %p510, %s34, 1
        %s512 = smul.addr %s511, 8
        %s513 = scalar_lea.vmem %s0, %s512
        %v514 = vld [vmem:[%s513] sm:$0x3f]
        %s515 = scalar_lea.vmem [#allocation7], 72
        %v516 = vld [vmem:[%s515] sm:$0xff]
        %v517 = vld [vmem:[%s515 + $0x8] sm:$0xff]
        %v518 = vld [vmem:[%s515 + $0x10] sm:$0xff]
        %v519 = vld [vmem:[%s515 + $0x18] sm:$0xff]
        %v520 = vld [vmem:[%s515 + $0x20] sm:$0xff]
        %v521 = vld [vmem:[%s515 + $0x28] sm:$0xff]
        %v522 = vld [vmem:[%s515 + $0x30] sm:$0x3]
        %v523 = vld [vmem:[%s515 + $0x38] sm:$0x3]
        %v524 = vld [vmem:[%s515 + $0x40] sm:$0x3]
        %vm525 = vcmask 146432
        %v527 = vsel %vm525, %v514, 0
        %vm529 = vcmask 1041408
        %v531 = vsel %vm529, %v522, 0
        %v534 = vsel %vm529, %v523, 0
        %v537 = vsel %vm529, %v524, 0
        %539 = vmatpush.msra.mxu0 0.0
        %540 = vmatpush.msra.mxu0 0.0
        %541 = vmatpush.msra.mxu0 0.0
        %542 = vmatpush.msra.mxu0 0.0
        %543 = vmatpush.msra.mxu0 0.0
        %544 = vmatpush.msra.mxu0 0.0
        %545 = vmatpush.msra.mxu0 0.0
        %546 = vmatpush.msra.mxu0 0.0
        %547 = vmatpush.msra.mxu0 0.0
        %548 = vmatpush.msra.mxu0 0.0
        %549 = vmatpush.msra.mxu0 0.0
        %550 = vmatpush.msra.mxu0 0.0
        %551 = vmatpush.msra.mxu0 0.0
        %552 = vmatpush.msra.mxu0 %v531
        %553 = vmatpush.msra.mxu0 %v519
        %554 = vmatpush.msra.mxu0 %v516
        %555 = vmatmul.f32.gmra.mxu0 %v527
        %v556 = vpop.f32.mrf.mxu0
        %v557 = vadd.f32 0.0, %v556
        %558 = vdwg.mxu0
        %559 = vmatpush.msra.mxu0 0.0
        %560 = vmatpush.msra.mxu0 0.0
        %561 = vmatpush.msra.mxu0 0.0
        %562 = vmatpush.msra.mxu0 0.0
        %563 = vmatpush.msra.mxu0 0.0
        %564 = vmatpush.msra.mxu0 0.0
        %565 = vmatpush.msra.mxu0 0.0
        %566 = vmatpush.msra.mxu0 0.0
        %567 = vmatpush.msra.mxu0 0.0
        %568 = vmatpush.msra.mxu0 0.0
        %569 = vmatpush.msra.mxu0 0.0
        %570 = vmatpush.msra.mxu0 0.0
        %571 = vmatpush.msra.mxu0 0.0
        %572 = vmatpush.msra.mxu0 %v534
        %573 = vmatpush.msra.mxu0 %v520
        %574 = vmatpush.msra.mxu0 %v517
        %575 = vmatmul.f32.gmra.mxu0 %v527
        %v576 = vpop.f32.mrf.mxu0
        %v577 = vadd.f32 0.0, %v576
        %578 = vdwg.mxu0
        %579 = vmatpush.msra.mxu0 0.0
        %580 = vmatpush.msra.mxu0 0.0
        %581 = vmatpush.msra.mxu0 0.0
        %582 = vmatpush.msra.mxu0 0.0
        %583 = vmatpush.msra.mxu0 0.0
        %584 = vmatpush.msra.mxu0 0.0
        %585 = vmatpush.msra.mxu0 0.0
        %586 = vmatpush.msra.mxu0 0.0
        %587 = vmatpush.msra.mxu0 0.0
        %588 = vmatpush.msra.mxu0 0.0
        %589 = vmatpush.msra.mxu0 0.0
        %590 = vmatpush.msra.mxu0 0.0
        %591 = vmatpush.msra.mxu0 0.0
        %592 = vmatpush.msra.mxu0 %v537
        %593 = vmatpush.msra.mxu0 %v521
        %594 = vmatpush.msra.mxu0 %v518
        %595 = vmatmul.f32.gmra.mxu0 %v527
        %v596 = vpop.f32.mrf.mxu0
        %v597 = vadd.f32 0.0, %v596
        %598 = vdwg.mxu0
        %599 = vst [vmem:[#allocation2] sm:$0x3f] %v557
        %600 = vst [vmem:[#allocation2 + $0x8] sm:$0x3f] %v577
        %601 = vst [vmem:[#allocation2 + $0x10] sm:$0x3f] %v597
        %v602 = vld [vmem:[#allocation2] sm:$0x3e]
        %v603 = vld [vmem:[#allocation2 + $0x8] sm:$0x3e]
        %v604 = vld [vmem:[#allocation2 + $0x10] sm:$0x3e]
        %v605 = vld [vmem:[%s513] sm:$0x1f]
        %v606 = vld [vmem:[#allocation7] sm:$0xff]
        %v607 = vld [vmem:[#allocation7 + $0x8] sm:$0xff]
        %v608 = vld [vmem:[#allocation7 + $0x10] sm:$0xff]
        %v609 = vld [vmem:[#allocation7 + $0x18] sm:$0xff]
        %v610 = vld [vmem:[#allocation7 + $0x20] sm:$0xff]
        %v611 = vld [vmem:[#allocation7 + $0x28] sm:$0xff]
        %v612 = vld [vmem:[#allocation7 + $0x30] sm:$0x3]
        %v613 = vld [vmem:[#allocation7 + $0x38] sm:$0x3]
        %v614 = vld [vmem:[#allocation7 + $0x40] sm:$0x3]
        %v616 = vsel %vm525, %v605, 0
        %v619 = vsel %vm529, %v612, 0
        %v622 = vsel %vm529, %v613, 0
        %v625 = vsel %vm529, %v614, 0
        %627 = vmatpush.msra.mxu0 0.0
        %628 = vmatpush.msra.mxu0 0.0
        %629 = vmatpush.msra.mxu0 0.0
        %630 = vmatpush.msra.mxu0 0.0
        %631 = vmatpush.msra.mxu0 0.0
        %632 = vmatpush.msra.mxu0 0.0
        %633 = vmatpush.msra.mxu0 0.0
        %634 = vmatpush.msra.mxu0 0.0
        %635 = vmatpush.msra.mxu0 0.0
        %636 = vmatpush.msra.mxu0 0.0
        %637 = vmatpush.msra.mxu0 0.0
        %638 = vmatpush.msra.mxu0 0.0
        %639 = vmatpush.msra.mxu0 0.0
        %640 = vmatpush.msra.mxu0 %v619
        %641 = vmatpush.msra.mxu0 %v609
        %642 = vmatpush.msra.mxu0 %v606
        %643 = vmatmul.f32.gmra.mxu0 %v616
        %v644 = vpop.f32.mrf.mxu0
        %v645 = vadd.f32 0.0, %v644
        %646 = vdwg.mxu0
        %647 = vmatpush.msra.mxu0 0.0
        %648 = vmatpush.msra.mxu0 0.0
        %649 = vmatpush.msra.mxu0 0.0
        %650 = vmatpush.msra.mxu0 0.0
        %651 = vmatpush.msra.mxu0 0.0
        %652 = vmatpush.msra.mxu0 0.0
        %653 = vmatpush.msra.mxu0 0.0
        %654 = vmatpush.msra.mxu0 0.0
        %655 = vmatpush.msra.mxu0 0.0
        %656 = vmatpush.msra.mxu0 0.0
        %657 = vmatpush.msra.mxu0 0.0
        %658 = vmatpush.msra.mxu0 0.0
        %659 = vmatpush.msra.mxu0 0.0
        %660 = vmatpush.msra.mxu0 %v622
        %661 = vmatpush.msra.mxu0 %v610
        %662 = vmatpush.msra.mxu0 %v607
        %663 = vmatmul.f32.gmra.mxu0 %v616
        %v664 = vpop.f32.mrf.mxu0
        %v665 = vadd.f32 0.0, %v664
        %666 = vdwg.mxu0
        %667 = vmatpush.msra.mxu0 0.0
        %668 = vmatpush.msra.mxu0 0.0
        %669 = vmatpush.msra.mxu0 0.0
        %670 = vmatpush.msra.mxu0 0.0
        %671 = vmatpush.msra.mxu0 0.0
        %672 = vmatpush.msra.mxu0 0.0
        %673 = vmatpush.msra.mxu0 0.0
        %674 = vmatpush.msra.mxu0 0.0
        %675 = vmatpush.msra.mxu0 0.0
        %676 = vmatpush.msra.mxu0 0.0
        %677 = vmatpush.msra.mxu0 0.0
        %678 = vmatpush.msra.mxu0 0.0
        %679 = vmatpush.msra.mxu0 0.0
        %680 = vmatpush.msra.mxu0 %v625
        %681 = vmatpush.msra.mxu0 %v611
        %682 = vmatpush.msra.mxu0 %v608
        %683 = vmatmul.f32.gmra.mxu0 %v616
        %v684 = vpop.f32.mrf.mxu0
        %v685 = vadd.f32 0.0, %v684
        %686 = vdwg.mxu0
        %v690 = vrot.slane %v645, 7
        %v691 = vrot.slane %v665, 7
        %v692 = vrot.slane %v685, 7
        %v696 = vadd.f32 %v602, %v690
        %v697 = vadd.f32 %v603, %v691
        %v698 = vadd.f32 %v604, %v692
        %699 = vst [vmem:[#allocation2] sm:$0x3e] %v696
        %700 = vst [vmem:[#allocation2 + $0x8] sm:$0x3e] %v697
        %701 = vst [vmem:[#allocation2 + $0x10] sm:$0x3e] %v698
        %v702 = vld [vmem:[#allocation2] sm:$0x1f]
        %v703 = vld [vmem:[#allocation2 + $0x8] sm:$0x1f]
        %v704 = vld [vmem:[#allocation2 + $0x10] sm:$0x1f]
        %v705 = vld [vmem:[%s513 + $0x1] sm:$0x1f]
        %s706 = scalar_lea.vmem [#allocation7], 144
        %v707 = vld [vmem:[%s706] sm:$0xff]
        %v708 = vld [vmem:[%s706 + $0x8] sm:$0xff]
        %v709 = vld [vmem:[%s706 + $0x10] sm:$0xff]
        %v710 = vld [vmem:[%s706 + $0x18] sm:$0xff]
        %v711 = vld [vmem:[%s706 + $0x20] sm:$0xff]
        %v712 = vld [vmem:[%s706 + $0x28] sm:$0xff]
        %v713 = vld [vmem:[%s706 + $0x30] sm:$0x3]
        %v714 = vld [vmem:[%s706 + $0x38] sm:$0x3]
        %v715 = vld [vmem:[%s706 + $0x40] sm:$0x3]
        %v717 = vsel %vm525, %v705, 0
        %v720 = vsel %vm529, %v713, 0
        %v723 = vsel %vm529, %v714, 0
        %v726 = vsel %vm529, %v715, 0
        %728 = vmatpush.msra.mxu0 0.0
        %729 = vmatpush.msra.mxu0 0.0
        %730 = vmatpush.msra.mxu0 0.0
        %731 = vmatpush.msra.mxu0 0.0
        %732 = vmatpush.msra.mxu0 0.0
        %733 = vmatpush.msra.mxu0 0.0
        %734 = vmatpush.msra.mxu0 0.0
        %735 = vmatpush.msra.mxu0 0.0
        %736 = vmatpush.msra.mxu0 0.0
        %737 = vmatpush.msra.mxu0 0.0
        %738 = vmatpush.msra.mxu0 0.0
        %739 = vmatpush.msra.mxu0 0.0
        %740 = vmatpush.msra.mxu0 0.0
        %741 = vmatpush.msra.mxu0 %v720
        %742 = vmatpush.msra.mxu0 %v710
        %743 = vmatpush.msra.mxu0 %v707
        %744 = vmatmul.f32.gmra.mxu0 %v717
        %v745 = vpop.f32.mrf.mxu0
        %v746 = vadd.f32 0.0, %v745
        %747 = vdwg.mxu0
        %748 = vmatpush.msra.mxu0 0.0
        %749 = vmatpush.msra.mxu0 0.0
        %750 = vmatpush.msra.mxu0 0.0
        %751 = vmatpush.msra.mxu0 0.0
        %752 = vmatpush.msra.mxu0 0.0
        %753 = vmatpush.msra.mxu0 0.0
        %754 = vmatpush.msra.mxu0 0.0
        %755 = vmatpush.msra.mxu0 0.0
        %756 = vmatpush.msra.mxu0 0.0
        %757 = vmatpush.msra.mxu0 0.0
        %758 = vmatpush.msra.mxu0 0.0
        %759 = vmatpush.msra.mxu0 0.0
        %760 = vmatpush.msra.mxu0 0.0
        %761 = vmatpush.msra.mxu0 %v723
        %762 = vmatpush.msra.mxu0 %v711
        %763 = vmatpush.msra.mxu0 %v708
        %764 = vmatmul.f32.gmra.mxu0 %v717
        %v765 = vpop.f32.mrf.mxu0
        %v766 = vadd.f32 0.0, %v765
        %767 = vdwg.mxu0
        %768 = vmatpush.msra.mxu0 0.0
        %769 = vmatpush.msra.mxu0 0.0
        %770 = vmatpush.msra.mxu0 0.0
        %771 = vmatpush.msra.mxu0 0.0
        %772 = vmatpush.msra.mxu0 0.0
        %773 = vmatpush.msra.mxu0 0.0
        %774 = vmatpush.msra.mxu0 0.0
        %775 = vmatpush.msra.mxu0 0.0
        %776 = vmatpush.msra.mxu0 0.0
        %777 = vmatpush.msra.mxu0 0.0
        %778 = vmatpush.msra.mxu0 0.0
        %779 = vmatpush.msra.mxu0 0.0
        %780 = vmatpush.msra.mxu0 0.0
        %781 = vmatpush.msra.mxu0 %v726
        %782 = vmatpush.msra.mxu0 %v712
        %783 = vmatpush.msra.mxu0 %v709
        %784 = vmatmul.f32.gmra.mxu0 %v717
        %v785 = vpop.f32.mrf.mxu0
        %v786 = vadd.f32 0.0, %v785
        %787 = vdwg.mxu0
        %v788 = vadd.f32 %v702, %v746
        %v789 = vadd.f32 %v703, %v766
        %v790 = vadd.f32 %v704, %v786
        %791 = vst [vmem:[#allocation2] sm:$0x1f] %v788
        %792 = vst [vmem:[#allocation2 + $0x8] sm:$0x1f] %v789
        %793 = vst [vmem:[#allocation2 + $0x10] sm:$0x1f] %v790
        %v794 = vld [vmem:[#allocation2] sm:$0x3f]
        %v795 = vld [vmem:[#allocation2 + $0x8] sm:$0x3f]
        %v796 = vld [vmem:[#allocation2 + $0x10] sm:$0x3f]
        %v797 = vld [vmem:[%s2] sm:$0x7]
        %v799 = vperm.slane %v797, 0
        %v800 = vperm.slane %v797, 1
        %v801 = vperm.slane %v797, 2
        %v805 = vadd.f32 %v794, %v799
        %v806 = vadd.f32 %v795, %v800
        %v807 = vadd.f32 %v796, %v801
        %v808 = vmax.f32 %v805, 0.0
        %v809 = vmax.f32 %v806, 0.0
        %v810 = vmax.f32 %v807, 0.0
        %811 = vst [vmem:[#allocation2] sm:$0x3f] %v808
        %812 = vst [vmem:[#allocation2 + $0x8] sm:$0x3f] %v809
        %813 = vst [vmem:[#allocation2 + $0x10] sm:$0x3f] %v810
        %v814 = vld [vmem:[#allocation2] ss:$0 sm:$0xff]
        %v815 = vld [vmem:[#allocation2 + $0x1] ss:$0 sm:$0xff]
        %817 = vrot.lane.b32.xlu0 %v814, 64
        %v818 = vpop.permute.xlu0 %817
        %v820 = vmax.f32 %v814, %v818
        %822 = vrot.lane.b32.xlu0 %v815, 64
        %v823 = vpop.permute.xlu0 %822
        %v825 = vmax.f32 %v815, %v823
        %v826 = vmax.f32 %v820, %v825
        %vm827 = vcmask 516096
        %828 = vst.msk [vmem:[#allocation3] sm:$0x1] %vm827, %v826
        %v829 = vld [vmem:[#allocation2 + $0x8] ss:$0 sm:$0xff]
        %v830 = vld [vmem:[#allocation2 + $0x9] ss:$0 sm:$0xff]
        %832 = vrot.lane.b32.xlu0 %v829, 64
        %v833 = vpop.permute.xlu0 %832
        %v835 = vmax.f32 %v829, %v833
        %837 = vrot.lane.b32.xlu0 %v830, 64
        %v838 = vpop.permute.xlu0 %837
        %v840 = vmax.f32 %v830, %v838
        %v841 = vmax.f32 %v835, %v840
        %843 = vrot.lane.b32.xlu0 %v841, 64
        %v844 = vpop.permute.xlu0 %843
        %vm846 = vcmask 1040896
        %847 = vst.msk [vmem:[#allocation3] sm:$0x1] %vm846, %v844
        %v848 = vld [vmem:[#allocation2 + $0x10] ss:$0 sm:$0xff]
        %v849 = vld [vmem:[#allocation2 + $0x11] ss:$0 sm:$0xff]
        %851 = vrot.lane.b32.xlu0 %v848, 64
        %v852 = vpop.permute.xlu0 %851
        %v854 = vmax.f32 %v848, %v852
        %856 = vrot.lane.b32.xlu0 %v849, 64
        %v857 = vpop.permute.xlu0 %856
        %v859 = vmax.f32 %v849, %v857
        %v860 = vmax.f32 %v854, %v859
        %861 = vst.msk [vmem:[#allocation3 + $0x4] sm:$0x1] %vm827, %v860
        %v862 = vld [vmem:[#allocation2 + $0x2] ss:$0 sm:$0xff]
        %v863 = vld [vmem:[#allocation2 + $0x3] ss:$0 sm:$0xff]
        %865 = vrot.lane.b32.xlu0 %v862, 64
        %v866 = vpop.permute.xlu0 %865
        %v868 = vmax.f32 %v862, %v866
        %870 = vrot.lane.b32.xlu0 %v863, 64
        %v871 = vpop.permute.xlu0 %870
        %v873 = vmax.f32 %v863, %v871
        %v874 = vmax.f32 %v868, %v873
        %875 = vst.msk [vmem:[#allocation3 + $0x1] sm:$0x1] %vm827, %v874
        %v876 = vld [vmem:[#allocation2 + $0xa] ss:$0 sm:$0xff]
        %v877 = vld [vmem:[#allocation2 + $0xb] ss:$0 sm:$0xff]
        %879 = vrot.lane.b32.xlu0 %v876, 64
        %v880 = vpop.permute.xlu0 %879
        %v882 = vmax.f32 %v876, %v880
        %884 = vrot.lane.b32.xlu0 %v877, 64
        %v885 = vpop.permute.xlu0 %884
        %v887 = vmax.f32 %v877, %v885
        %v888 = vmax.f32 %v882, %v887
        %890 = vrot.lane.b32.xlu0 %v888, 64
        %v891 = vpop.permute.xlu0 %890
        %893 = vst.msk [vmem:[#allocation3 + $0x1] sm:$0x1] %vm846, %v891
        %v894 = vld [vmem:[#allocation2 + $0x12] ss:$0 sm:$0xff]
        %v895 = vld [vmem:[#allocation2 + $0x13] ss:$0 sm:$0xff]
        %897 = vrot.lane.b32.xlu0 %v894, 64
        %v898 = vpop.permute.xlu0 %897
        %v900 = vmax.f32 %v894, %v898
        %902 = vrot.lane.b32.xlu0 %v895, 64
        %v903 = vpop.permute.xlu0 %902
        %v905 = vmax.f32 %v895, %v903
        %v906 = vmax.f32 %v900, %v905
        %907 = vst.msk [vmem:[#allocation3 + $0x5] sm:$0x1] %vm827, %v906
        %v908 = vld [vmem:[#allocation2 + $0x4] ss:$0 sm:$0xff]
        %v909 = vld [vmem:[#allocation2 + $0x5] ss:$0 sm:$0xff]
        %911 = vrot.lane.b32.xlu0 %v908, 64
        %v912 = vpop.permute.xlu0 %911
        %v914 = vmax.f32 %v908, %v912
        %916 = vrot.lane.b32.xlu0 %v909, 64
        %v917 = vpop.permute.xlu0 %916
        %v919 = vmax.f32 %v909, %v917
        %v920 = vmax.f32 %v914, %v919
        %921 = vst.msk [vmem:[#allocation3 + $0x2] sm:$0x1] %vm827, %v920
        %v922 = vld [vmem:[#allocation2 + $0xc] ss:$0 sm:$0xff]
        %v923 = vld [vmem:[#allocation2 + $0xd] ss:$0 sm:$0xff]
        %925 = vrot.lane.b32.xlu0 %v922, 64
        %v926 = vpop.permute.xlu0 %925
        %v928 = vmax.f32 %v922, %v926
        %930 = vrot.lane.b32.xlu0 %v923, 64
        %v931 = vpop.permute.xlu0 %930
        %v933 = vmax.f32 %v923, %v931
        %v934 = vmax.f32 %v928, %v933
        %936 = vrot.lane.b32.xlu0 %v934, 64
        %v937 = vpop.permute.xlu0 %936
        %939 = vst.msk [vmem:[#allocation3 + $0x2] sm:$0x1] %vm846, %v937
        %v940 = vld [vmem:[#allocation2 + $0x14] ss:$0 sm:$0xff]
        %v941 = vld [vmem:[#allocation2 + $0x15] ss:$0 sm:$0xff]
        %943 = vrot.lane.b32.xlu0 %v940, 64
        %v944 = vpop.permute.xlu0 %943
        %v946 = vmax.f32 %v940, %v944
        %948 = vrot.lane.b32.xlu0 %v941, 64
        %v949 = vpop.permute.xlu0 %948
        %v951 = vmax.f32 %v941, %v949
        %v952 = vmax.f32 %v946, %v951
        %953 = vst.msk [vmem:[#allocation3 + $0x6] sm:$0x1] %vm827, %v952
        %v954 = vld [vmem:[#allocation3] sm:$0x77]
        %s955 = scalar_lea.vmem [#allocation10], 384
        %v956 = vld [vmem:[%s955] sm:$0xff]
        %v957 = vld [vmem:[%s955 + $0x8] sm:$0xff]
        %v958 = vld [vmem:[%s955 + $0x10] sm:$0xff]
        %v959 = vld [vmem:[%s955 + $0x18] sm:$0xff]
        %v960 = vld [vmem:[%s955 + $0x20] sm:$0xff]
        %v961 = vld [vmem:[%s955 + $0x28] sm:$0xff]
        %v962 = vld [vmem:[%s955 + $0x30] sm:$0xff]
        %v963 = vld [vmem:[%s955 + $0x38] sm:$0xff]
        %v964 = vld [vmem:[%s955 + $0x40] sm:$0xff]
        %v965 = vld [vmem:[%s955 + $0x48] sm:$0xff]
        %v966 = vld [vmem:[%s955 + $0x50] sm:$0xff]
        %v967 = vld [vmem:[%s955 + $0x58] sm:$0xff]
        %v968 = vld [vmem:[%s955 + $0x60] sm:$0xff]
        %v969 = vld [vmem:[%s955 + $0x68] sm:$0xff]
        %v970 = vld [vmem:[%s955 + $0x70] sm:$0xff]
        %v971 = vld [vmem:[%s955 + $0x78] sm:$0xff]
        %v972 = vld [vmem:[%s955 + $0x80] sm:$0xff]
        %v973 = vld [vmem:[%s955 + $0x88] sm:$0xff]
        %v974 = vld [vmem:[%s955 + $0x90] sm:$0xff]
        %v975 = vld [vmem:[%s955 + $0x98] sm:$0xff]
        %v976 = vld [vmem:[%s955 + $0xa0] sm:$0xff]
        %v977 = vld [vmem:[%s955 + $0xa8] sm:$0xff]
        %v978 = vld [vmem:[%s955 + $0xb0] sm:$0xff]
        %v979 = vld [vmem:[%s955 + $0xb8] sm:$0xff]
        %v980 = vld [vmem:[%s955 + $0xc0] sm:$0xff]
        %v981 = vld [vmem:[%s955 + $0xc8] sm:$0xff]
        %v982 = vld [vmem:[%s955 + $0xd0] sm:$0xff]
        %v983 = vld [vmem:[%s955 + $0xd8] sm:$0xff]
        %v984 = vld [vmem:[%s955 + $0xe0] sm:$0xff]
        %v985 = vld [vmem:[%s955 + $0xe8] sm:$0xff]
        %v986 = vld [vmem:[%s955 + $0xf0] sm:$0xff]
        %v987 = vld [vmem:[%s955 + $0xf8] sm:$0xff]
        %v988 = vld [vmem:[%s955 + $0x100] sm:$0xff]
        %v989 = vld [vmem:[%s955 + $0x108] sm:$0xff]
        %v990 = vld [vmem:[%s955 + $0x110] sm:$0xff]
        %v991 = vld [vmem:[%s955 + $0x118] sm:$0xff]
        %v992 = vld [vmem:[%s955 + $0x120] sm:$0xff]
        %v993 = vld [vmem:[%s955 + $0x128] sm:$0xff]
        %v994 = vld [vmem:[%s955 + $0x130] sm:$0xff]
        %v995 = vld [vmem:[%s955 + $0x138] sm:$0xff]
        %v996 = vld [vmem:[%s955 + $0x140] sm:$0xff]
        %v997 = vld [vmem:[%s955 + $0x148] sm:$0xff]
        %v998 = vld [vmem:[%s955 + $0x150] sm:$0xff]
        %v999 = vld [vmem:[%s955 + $0x158] sm:$0xff]
        %v1000 = vld [vmem:[%s955 + $0x160] sm:$0xff]
        %v1001 = vld [vmem:[%s955 + $0x168] sm:$0xff]
        %v1002 = vld [vmem:[%s955 + $0x170] sm:$0xff]
        %v1003 = vld [vmem:[%s955 + $0x178] sm:$0xff]
        %1005 = vst [vmem:[#allocation1] ss:$2 sm:$0xff] %v954
        %v1006 = vld.sshfl [vmem:[#allocation1] sm:$0xff pattern:$0x75316420]
        %v1007 = vld.sshfl [vmem:[#allocation1 + $0x8] sm:$0xff pattern:$0x75316420]
        %vm1009 = vcmask 523264
        %v1010 = vsel %vm1009, %v1007, 0
        %1012 = vmatpush.msra.mxu0 %v986
        %1013 = vmatpush.msra.mxu0 %v984
        %1014 = vmatpush.msra.mxu0 %v982
        %1015 = vmatpush.msra.mxu0 %v980
        %1016 = vmatpush.msra.mxu0 %v978
        %1017 = vmatpush.msra.mxu0 %v976
        %1018 = vmatpush.msra.mxu0 %v974
        %1019 = vmatpush.msra.mxu0 %v972
        %1020 = vmatpush.msra.mxu0 %v970
        %1021 = vmatpush.msra.mxu0 %v968
        %1022 = vmatpush.msra.mxu0 %v966
        %1023 = vmatpush.msra.mxu0 %v964
        %1024 = vmatpush.msra.mxu0 %v962
        %1025 = vmatpush.msra.mxu0 %v960
        %1026 = vmatpush.msra.mxu0 %v958
        %1027 = vmatpush.msra.mxu0 %v956
        %1028 = vmatmul.f32.gmra.mxu0 %v1006
        %v1029 = vpop.f32.mrf.mxu0
        %v1030 = vadd.f32 0.0, %v1029
        %1031 = vdwg.mxu0
        %1032 = vmatpush.msra.mxu0 0.0
        %1033 = vmatpush.msra.mxu0 0.0
        %1034 = vmatpush.msra.mxu0 0.0
        %1035 = vmatpush.msra.mxu0 0.0
        %1036 = vmatpush.msra.mxu0 0.0
        %1037 = vmatpush.msra.mxu0 0.0
        %1038 = vmatpush.msra.mxu0 0.0
        %1039 = vmatpush.msra.mxu0 0.0
        %1040 = vmatpush.msra.mxu0 %v1002
        %1041 = vmatpush.msra.mxu0 %v1000
        %1042 = vmatpush.msra.mxu0 %v998
        %1043 = vmatpush.msra.mxu0 %v996
        %1044 = vmatpush.msra.mxu0 %v994
        %1045 = vmatpush.msra.mxu0 %v992
        %1046 = vmatpush.msra.mxu0 %v990
        %1047 = vmatpush.msra.mxu0 %v988
        %1048 = vmatmul.f32.gmra.mxu0 %v1010
        %v1049 = vpop.f32.mrf.mxu0
        %v1050 = vadd.f32 %v1030, %v1049
        %1051 = vdwg.mxu0
        %1052 = vmatpush.msra.mxu0 %v987
        %1053 = vmatpush.msra.mxu0 %v985
        %1054 = vmatpush.msra.mxu0 %v983
        %1055 = vmatpush.msra.mxu0 %v981
        %1056 = vmatpush.msra.mxu0 %v979
        %1057 = vmatpush.msra.mxu0 %v977
        %1058 = vmatpush.msra.mxu0 %v975
        %1059 = vmatpush.msra.mxu0 %v973
        %1060 = vmatpush.msra.mxu0 %v971
        %1061 = vmatpush.msra.mxu0 %v969
        %1062 = vmatpush.msra.mxu0 %v967
        %1063 = vmatpush.msra.mxu0 %v965
        %1064 = vmatpush.msra.mxu0 %v963
        %1065 = vmatpush.msra.mxu0 %v961
        %1066 = vmatpush.msra.mxu0 %v959
        %1067 = vmatpush.msra.mxu0 %v957
        %1068 = vmatmul.f32.gmra.mxu0 %v1006
        %v1069 = vpop.f32.mrf.mxu0
        %v1070 = vadd.f32 0.0, %v1069
        %1071 = vdwg.mxu0
        %1072 = vmatpush.msra.mxu0 0.0
        %1073 = vmatpush.msra.mxu0 0.0
        %1074 = vmatpush.msra.mxu0 0.0
        %1075 = vmatpush.msra.mxu0 0.0
        %1076 = vmatpush.msra.mxu0 0.0
        %1077 = vmatpush.msra.mxu0 0.0
        %1078 = vmatpush.msra.mxu0 0.0
        %1079 = vmatpush.msra.mxu0 0.0
        %1080 = vmatpush.msra.mxu0 %v1003
        %1081 = vmatpush.msra.mxu0 %v1001
        %1082 = vmatpush.msra.mxu0 %v999
        %1083 = vmatpush.msra.mxu0 %v997
        %1084 = vmatpush.msra.mxu0 %v995
        %1085 = vmatpush.msra.mxu0 %v993
        %1086 = vmatpush.msra.mxu0 %v991
        %1087 = vmatpush.msra.mxu0 %v989
        %1088 = vmatmul.f32.gmra.mxu0 %v1010
        %v1089 = vpop.f32.mrf.mxu0
        %v1090 = vadd.f32 %v1070, %v1089
        %1091 = vdwg.mxu0
        %v1094 = vrot.slane %v1090, 4
        %vm1095 = vcmask 1043456
        %v1096 = vsel %vm1095, %v1050, %v1094
        %vm1098 = vcmask 1042432
        %vm1099 = vcmask 522244
        %vm1100 = vmor %vm1099, %vm1098
        %1101 = vst.msk [vmem:[#allocation4] sm:$0x77] %vm1100, %v1096
        %v1102 = vld [vmem:[#allocation4] sm:$0x66]
        %v1103 = vld [vmem:[#allocation3] sm:$0x33]
        %v1104 = vld [vmem:[#allocation10] sm:$0xff]
        %v1105 = vld [vmem:[#allocation10 + $0x8] sm:$0xff]
        %v1106 = vld [vmem:[#allocation10 + $0x10] sm:$0xff]
        %v1107 = vld [vmem:[#allocation10 + $0x18] sm:$0xff]
        %v1108 = vld [vmem:[#allocation10 + $0x20] sm:$0xff]
        %v1109 = vld [vmem:[#allocation10 + $0x28] sm:$0xff]
        %v1110 = vld [vmem:[#allocation10 + $0x30] sm:$0xff]
        %v1111 = vld [vmem:[#allocation10 + $0x38] sm:$0xff]
        %v1112 = vld [vmem:[#allocation10 + $0x40] sm:$0xff]
        %v1113 = vld [vmem:[#allocation10 + $0x48] sm:$0xff]
        %v1114 = vld [vmem:[#allocation10 + $0x50] sm:$0xff]
        %v1115 = vld [vmem:[#allocation10 + $0x58] sm:$0xff]
        %v1116 = vld [vmem:[#allocation10 + $0x60] sm:$0xff]
        %v1117 = vld [vmem:[#allocation10 + $0x68] sm:$0xff]
        %v1118 = vld [vmem:[#allocation10 + $0x70] sm:$0xff]
        %v1119 = vld [vmem:[#allocation10 + $0x78] sm:$0xff]
        %v1120 = vld [vmem:[#allocation10 + $0x80] sm:$0xff]
        %v1121 = vld [vmem:[#allocation10 + $0x88] sm:$0xff]
        %v1122 = vld [vmem:[#allocation10 + $0x90] sm:$0xff]
        %v1123 = vld [vmem:[#allocation10 + $0x98] sm:$0xff]
        %v1124 = vld [vmem:[#allocation10 + $0xa0] sm:$0xff]
        %v1125 = vld [vmem:[#allocation10 + $0xa8] sm:$0xff]
        %v1126 = vld [vmem:[#allocation10 + $0xb0] sm:$0xff]
        %v1127 = vld [vmem:[#allocation10 + $0xb8] sm:$0xff]
        %v1128 = vld [vmem:[#allocation10 + $0xc0] sm:$0xff]
        %v1129 = vld [vmem:[#allocation10 + $0xc8] sm:$0xff]
        %v1130 = vld [vmem:[#allocation10 + $0xd0] sm:$0xff]
        %v1131 = vld [vmem:[#allocation10 + $0xd8] sm:$0xff]
        %v1132 = vld [vmem:[#allocation10 + $0xe0] sm:$0xff]
        %v1133 = vld [vmem:[#allocation10 + $0xe8] sm:$0xff]
        %v1134 = vld [vmem:[#allocation10 + $0xf0] sm:$0xff]
        %v1135 = vld [vmem:[#allocation10 + $0xf8] sm:$0xff]
        %v1136 = vld [vmem:[#allocation10 + $0x100] sm:$0xff]
        %v1137 = vld [vmem:[#allocation10 + $0x108] sm:$0xff]
        %v1138 = vld [vmem:[#allocation10 + $0x110] sm:$0xff]
        %v1139 = vld [vmem:[#allocation10 + $0x118] sm:$0xff]
        %v1140 = vld [vmem:[#allocation10 + $0x120] sm:$0xff]
        %v1141 = vld [vmem:[#allocation10 + $0x128] sm:$0xff]
        %v1142 = vld [vmem:[#allocation10 + $0x130] sm:$0xff]
        %v1143 = vld [vmem:[#allocation10 + $0x138] sm:$0xff]
        %v1144 = vld [vmem:[#allocation10 + $0x140] sm:$0xff]
        %v1145 = vld [vmem:[#allocation10 + $0x148] sm:$0xff]
        %v1146 = vld [vmem:[#allocation10 + $0x150] sm:$0xff]
        %v1147 = vld [vmem:[#allocation10 + $0x158] sm:$0xff]
        %v1148 = vld [vmem:[#allocation10 + $0x160] sm:$0xff]
        %v1149 = vld [vmem:[#allocation10 + $0x168] sm:$0xff]
        %v1150 = vld [vmem:[#allocation10 + $0x170] sm:$0xff]
        %v1151 = vld [vmem:[#allocation10 + $0x178] sm:$0xff]
        %1153 = vst [vmem:[#allocation1] ss:$2 sm:$0xff] %v1103
        %v1154 = vld.sshfl [vmem:[#allocation1] sm:$0xff pattern:$0x75316420]
        %v1155 = vld.sshfl [vmem:[#allocation1 + $0x8] sm:$0xff pattern:$0x75316420]
        %v1157 = vsel %vm1009, %v1155, 0
        %1159 = vmatpush.msra.mxu0 %v1134
        %1160 = vmatpush.msra.mxu0 %v1132
        %1161 = vmatpush.msra.mxu0 %v1130
        %1162 = vmatpush.msra.mxu0 %v1128
        %1163 = vmatpush.msra.mxu0 %v1126
        %1164 = vmatpush.msra.mxu0 %v1124
        %1165 = vmatpush.msra.mxu0 %v1122
        %1166 = vmatpush.msra.mxu0 %v1120
        %1167 = vmatpush.msra.mxu0 %v1118
        %1168 = vmatpush.msra.mxu0 %v1116
        %1169 = vmatpush.msra.mxu0 %v1114
        %1170 = vmatpush.msra.mxu0 %v1112
        %1171 = vmatpush.msra.mxu0 %v1110
        %1172 = vmatpush.msra.mxu0 %v1108
        %1173 = vmatpush.msra.mxu0 %v1106
        %1174 = vmatpush.msra.mxu0 %v1104
        %1175 = vmatmul.f32.gmra.mxu0 %v1154
        %v1176 = vpop.f32.mrf.mxu0
        %v1177 = vadd.f32 0.0, %v1176
        %1178 = vdwg.mxu0
        %1179 = vmatpush.msra.mxu0 0.0
        %1180 = vmatpush.msra.mxu0 0.0
        %1181 = vmatpush.msra.mxu0 0.0
        %1182 = vmatpush.msra.mxu0 0.0
        %1183 = vmatpush.msra.mxu0 0.0
        %1184 = vmatpush.msra.mxu0 0.0
        %1185 = vmatpush.msra.mxu0 0.0
        %1186 = vmatpush.msra.mxu0 0.0
        %1187 = vmatpush.msra.mxu0 %v1150
        %1188 = vmatpush.msra.mxu0 %v1148
        %1189 = vmatpush.msra.mxu0 %v1146
        %1190 = vmatpush.msra.mxu0 %v1144
        %1191 = vmatpush.msra.mxu0 %v1142
        %1192 = vmatpush.msra.mxu0 %v1140
        %1193 = vmatpush.msra.mxu0 %v1138
        %1194 = vmatpush.msra.mxu0 %v1136
        %1195 = vmatmul.f32.gmra.mxu0 %v1157
        %v1196 = vpop.f32.mrf.mxu0
        %v1197 = vadd.f32 %v1177, %v1196
        %1198 = vdwg.mxu0
        %1199 = vmatpush.msra.mxu0 %v1135
        %1200 = vmatpush.msra.mxu0 %v1133
        %1201 = vmatpush.msra.mxu0 %v1131
        %1202 = vmatpush.msra.mxu0 %v1129
        %1203 = vmatpush.msra.mxu0 %v1127
        %1204 = vmatpush.msra.mxu0 %v1125
        %1205 = vmatpush.msra.mxu0 %v1123
        %1206 = vmatpush.msra.mxu0 %v1121
        %1207 = vmatpush.msra.mxu0 %v1119
        %1208 = vmatpush.msra.mxu0 %v1117
        %1209 = vmatpush.msra.mxu0 %v1115
        %1210 = vmatpush.msra.mxu0 %v1113
        %1211 = vmatpush.msra.mxu0 %v1111
        %1212 = vmatpush.msra.mxu0 %v1109
        %1213 = vmatpush.msra.mxu0 %v1107
        %1214 = vmatpush.msra.mxu0 %v1105
        %1215 = vmatmul.f32.gmra.mxu0 %v1154
        %v1216 = vpop.f32.mrf.mxu0
        %v1217 = vadd.f32 0.0, %v1216
        %1218 = vdwg.mxu0
        %1219 = vmatpush.msra.mxu0 0.0
        %1220 = vmatpush.msra.mxu0 0.0
        %1221 = vmatpush.msra.mxu0 0.0
        %1222 = vmatpush.msra.mxu0 0.0
        %1223 = vmatpush.msra.mxu0 0.0
        %1224 = vmatpush.msra.mxu0 0.0
        %1225 = vmatpush.msra.mxu0 0.0
        %1226 = vmatpush.msra.mxu0 0.0
        %1227 = vmatpush.msra.mxu0 %v1151
        %1228 = vmatpush.msra.mxu0 %v1149
        %1229 = vmatpush.msra.mxu0 %v1147
        %1230 = vmatpush.msra.mxu0 %v1145
        %1231 = vmatpush.msra.mxu0 %v1143
        %1232 = vmatpush.msra.mxu0 %v1141
        %1233 = vmatpush.msra.mxu0 %v1139
        %1234 = vmatpush.msra.mxu0 %v1137
        %1235 = vmatmul.f32.gmra.mxu0 %v1157
        %v1236 = vpop.f32.mrf.mxu0
        %v1237 = vadd.f32 %v1217, %v1236
        %1238 = vdwg.mxu0
        %v1241 = vrot.slane %v1237, 4
        %v1242 = vsel %vm1095, %v1197, %v1241
        %v1243 = vrot.slane %v1242, 7
        %v1245 = vadd.f32 %v1102, %v1243
        %vm1246 = vcmask 1042433
        %vm1247 = vcmask 522245
        %vm1248 = vmor %vm1247, %vm1246
        %1249 = vst.msk [vmem:[#allocation4] sm:$0x66] %vm1248, %v1245
        %v1250 = vld [vmem:[#allocation4] sm:$0x33]
        %v1251 = vld [vmem:[#allocation3] sm:$0x66]
        %s1252 = scalar_lea.vmem [#allocation10], 768
        %v1253 = vld [vmem:[%s1252] sm:$0xff]
        %v1254 = vld [vmem:[%s1252 + $0x8] sm:$0xff]
        %v1255 = vld [vmem:[%s1252 + $0x10] sm:$0xff]
        %v1256 = vld [vmem:[%s1252 + $0x18] sm:$0xff]
        %v1257 = vld [vmem:[%s1252 + $0x20] sm:$0xff]
        %v1258 = vld [vmem:[%s1252 + $0x28] sm:$0xff]
        %v1259 = vld [vmem:[%s1252 + $0x30] sm:$0xff]
        %v1260 = vld [vmem:[%s1252 + $0x38] sm:$0xff]
        %v1261 = vld [vmem:[%s1252 + $0x40] sm:$0xff]
        %v1262 = vld [vmem:[%s1252 + $0x48] sm:$0xff]
        %v1263 = vld [vmem:[%s1252 + $0x50] sm:$0xff]
        %v1264 = vld [vmem:[%s1252 + $0x58] sm:$0xff]
        %v1265 = vld [vmem:[%s1252 + $0x60] sm:$0xff]
        %v1266 = vld [vmem:[%s1252 + $0x68] sm:$0xff]
        %v1267 = vld [vmem:[%s1252 + $0x70] sm:$0xff]
        %v1268 = vld [vmem:[%s1252 + $0x78] sm:$0xff]
        %v1269 = vld [vmem:[%s1252 + $0x80] sm:$0xff]
        %v1270 = vld [vmem:[%s1252 + $0x88] sm:$0xff]
        %v1271 = vld [vmem:[%s1252 + $0x90] sm:$0xff]
        %v1272 = vld [vmem:[%s1252 + $0x98] sm:$0xff]
        %v1273 = vld [vmem:[%s1252 + $0xa0] sm:$0xff]
        %v1274 = vld [vmem:[%s1252 + $0xa8] sm:$0xff]
        %v1275 = vld [vmem:[%s1252 + $0xb0] sm:$0xff]
        %v1276 = vld [vmem:[%s1252 + $0xb8] sm:$0xff]
        %v1277 = vld [vmem:[%s1252 + $0xc0] sm:$0xff]
        %v1278 = vld [vmem:[%s1252 + $0xc8] sm:$0xff]
        %v1279 = vld [vmem:[%s1252 + $0xd0] sm:$0xff]
        %v1280 = vld [vmem:[%s1252 + $0xd8] sm:$0xff]
        %v1281 = vld [vmem:[%s1252 + $0xe0] sm:$0xff]
        %v1282 = vld [vmem:[%s1252 + $0xe8] sm:$0xff]
        %v1283 = vld [vmem:[%s1252 + $0xf0] sm:$0xff]
        %v1284 = vld [vmem:[%s1252 + $0xf8] sm:$0xff]
        %v1285 = vld [vmem:[%s1252 + $0x100] sm:$0xff]
        %v1286 = vld [vmem:[%s1252 + $0x108] sm:$0xff]
        %v1287 = vld [vmem:[%s1252 + $0x110] sm:$0xff]
        %v1288 = vld [vmem:[%s1252 + $0x118] sm:$0xff]
        %v1289 = vld [vmem:[%s1252 + $0x120] sm:$0xff]
        %v1290 = vld [vmem:[%s1252 + $0x128] sm:$0xff]
        %v1291 = vld [vmem:[%s1252 + $0x130] sm:$0xff]
        %v1292 = vld [vmem:[%s1252 + $0x138] sm:$0xff]
        %v1293 = vld [vmem:[%s1252 + $0x140] sm:$0xff]
        %v1294 = vld [vmem:[%s1252 + $0x148] sm:$0xff]
        %v1295 = vld [vmem:[%s1252 + $0x150] sm:$0xff]
        %v1296 = vld [vmem:[%s1252 + $0x158] sm:$0xff]
        %v1297 = vld [vmem:[%s1252 + $0x160] sm:$0xff]
        %v1298 = vld [vmem:[%s1252 + $0x168] sm:$0xff]
        %v1299 = vld [vmem:[%s1252 + $0x170] sm:$0xff]
        %v1300 = vld [vmem:[%s1252 + $0x178] sm:$0xff]
        %1302 = vst [vmem:[#allocation1] ss:$2 sm:$0xff] %v1251
        %v1303 = vld.sshfl [vmem:[#allocation1] sm:$0xff pattern:$0x75316420]
        %v1304 = vld.sshfl [vmem:[#allocation1 + $0x8] sm:$0xff pattern:$0x75316420]
        %v1305 = vrot.slane %v1303, 1
        %v1306 = vrot.slane %v1304, 1
        %v1308 = vsel %vm1009, %v1306, 0
        %1310 = vmatpush.msra.mxu0 %v1283
        %1311 = vmatpush.msra.mxu0 %v1281
        %1312 = vmatpush.msra.mxu0 %v1279
        %1313 = vmatpush.msra.mxu0 %v1277
        %1314 = vmatpush.msra.mxu0 %v1275
        %1315 = vmatpush.msra.mxu0 %v1273
        %1316 = vmatpush.msra.mxu0 %v1271
        %1317 = vmatpush.msra.mxu0 %v1269
        %1318 = vmatpush.msra.mxu0 %v1267
        %1319 = vmatpush.msra.mxu0 %v1265
        %1320 = vmatpush.msra.mxu0 %v1263
        %1321 = vmatpush.msra.mxu0 %v1261
        %1322 = vmatpush.msra.mxu0 %v1259
        %1323 = vmatpush.msra.mxu0 %v1257
        %1324 = vmatpush.msra.mxu0 %v1255
        %1325 = vmatpush.msra.mxu0 %v1253
        %1326 = vmatmul.f32.gmra.mxu0 %v1305
        %v1327 = vpop.f32.mrf.mxu0
        %v1328 = vadd.f32 0.0, %v1327
        %1329 = vdwg.mxu0
        %1330 = vmatpush.msra.mxu0 0.0
        %1331 = vmatpush.msra.mxu0 0.0
        %1332 = vmatpush.msra.mxu0 0.0
        %1333 = vmatpush.msra.mxu0 0.0
        %1334 = vmatpush.msra.mxu0 0.0
        %1335 = vmatpush.msra.mxu0 0.0
        %1336 = vmatpush.msra.mxu0 0.0
        %1337 = vmatpush.msra.mxu0 0.0
        %1338 = vmatpush.msra.mxu0 %v1299
        %1339 = vmatpush.msra.mxu0 %v1297
        %1340 = vmatpush.msra.mxu0 %v1295
        %1341 = vmatpush.msra.mxu0 %v1293
        %1342 = vmatpush.msra.mxu0 %v1291
        %1343 = vmatpush.msra.mxu0 %v1289
        %1344 = vmatpush.msra.mxu0 %v1287
        %1345 = vmatpush.msra.mxu0 %v1285
        %1346 = vmatmul.f32.gmra.mxu0 %v1308
        %v1347 = vpop.f32.mrf.mxu0
        %v1348 = vadd.f32 %v1328, %v1347
        %1349 = vdwg.mxu0
        %1350 = vmatpush.msra.mxu0 %v1284
        %1351 = vmatpush.msra.mxu0 %v1282
        %1352 = vmatpush.msra.mxu0 %v1280
        %1353 = vmatpush.msra.mxu0 %v1278
        %1354 = vmatpush.msra.mxu0 %v1276
        %1355 = vmatpush.msra.mxu0 %v1274
        %1356 = vmatpush.msra.mxu0 %v1272
        %1357 = vmatpush.msra.mxu0 %v1270
        %1358 = vmatpush.msra.mxu0 %v1268
        %1359 = vmatpush.msra.mxu0 %v1266
        %1360 = vmatpush.msra.mxu0 %v1264
        %1361 = vmatpush.msra.mxu0 %v1262
        %1362 = vmatpush.msra.mxu0 %v1260
        %1363 = vmatpush.msra.mxu0 %v1258
        %1364 = vmatpush.msra.mxu0 %v1256
        %1365 = vmatpush.msra.mxu0 %v1254
        %1366 = vmatmul.f32.gmra.mxu0 %v1305
        %v1367 = vpop.f32.mrf.mxu0
        %v1368 = vadd.f32 0.0, %v1367
        %1369 = vdwg.mxu0
        %1370 = vmatpush.msra.mxu0 0.0
        %1371 = vmatpush.msra.mxu0 0.0
        %1372 = vmatpush.msra.mxu0 0.0
        %1373 = vmatpush.msra.mxu0 0.0
        %1374 = vmatpush.msra.mxu0 0.0
        %1375 = vmatpush.msra.mxu0 0.0
        %1376 = vmatpush.msra.mxu0 0.0
        %1377 = vmatpush.msra.mxu0 0.0
        %1378 = vmatpush.msra.mxu0 %v1300
        %1379 = vmatpush.msra.mxu0 %v1298
        %1380 = vmatpush.msra.mxu0 %v1296
        %1381 = vmatpush.msra.mxu0 %v1294
        %1382 = vmatpush.msra.mxu0 %v1292
        %1383 = vmatpush.msra.mxu0 %v1290
        %1384 = vmatpush.msra.mxu0 %v1288
        %1385 = vmatpush.msra.mxu0 %v1286
        %1386 = vmatmul.f32.gmra.mxu0 %v1308
        %v1387 = vpop.f32.mrf.mxu0
        %v1388 = vadd.f32 %v1368, %v1387
        %1389 = vdwg.mxu0
        %v1392 = vrot.slane %v1388, 4
        %v1393 = vsel %vm1095, %v1348, %v1392
        %v1395 = vadd.f32 %v1250, %v1393
        %vm1396 = vcmask 521220
        %vm1397 = vmor %vm1396, %vm529
        %1398 = vst.msk [vmem:[#allocation4] sm:$0x33] %vm1397, %v1395
        %v1399 = vld [vmem:[#allocation4] sm:$0x77]
        %v1400 = vld [vmem:[%s4] sm:$0x3]
        %v1402 = vperm.slane %v1400, 0
        %v1403 = vperm.slane %v1400, 1
        %v1404 = vrot.slane %v1403, 4
        %v1405 = vsel %vm1095, %v1402, %v1404
        %v1407 = vadd.f32 %v1399, %v1405
        %v1408 = vmax.f32 %v1407, 0.0
        %1409 = vst.msk [vmem:[#allocation4] sm:$0x77] %vm1100, %v1408
        %v1410 = vld [vmem:[#allocation4] sm:$0x1]
        %v1411 = vld [vmem:[#allocation4 + $0x1] sm:$0x1]
        %1413 = vrot.lane.b32.xlu0 %v1410, 64
        %v1414 = vpop.permute.xlu0 %1413
        %v1416 = vmax.f32 %v1410, %v1414
        %1418 = vrot.lane.b32.xlu0 %v1411, 64
        %v1419 = vpop.permute.xlu0 %1418
        %v1421 = vmax.f32 %v1411, %v1419
        %v1422 = vmax.f32 %v1416, %v1421
        %v1423 = vld [vmem:[#allocation3] sm:$0x7]
        %v1424 = vperm.slane %v1422, 0
        %v1425 = vadd.f32 %v1423, %v1424
        %vm1426 = vcmask 518144
        %1427 = vst.msk [vmem:[#allocation5] sm:$0x7] %vm1426, %v1425
        %v1428 = vld [vmem:[#allocation3] sm:$0x7]
        %1430 = vrot.lane.b32.xlu0 %v1424, 64
        %v1431 = vpop.permute.xlu0 %1430
        %v1433 = vadd.f32 %v1428, %v1431
        %vm1434 = vcmask 1042944
        %1435 = vst.msk [vmem:[#allocation5] sm:$0x7] %vm1434, %v1433
        %v1436 = vld [vmem:[#allocation3 + $0x4] sm:$0x7]
        %v1437 = vadd.f32 %v1436, %v1424
        %1438 = vst.msk [vmem:[#allocation5 + $0x4] sm:$0x7] %vm1426, %v1437
        %v1439 = vld [vmem:[#allocation5] sm:$0x77]
        %s1440 = scalar_lea.vmem [#allocation12], 384
        %v1441 = vld [vmem:[%s1440] sm:$0xff]
        %v1442 = vld [vmem:[%s1440 + $0x8] sm:$0xff]
        %v1443 = vld [vmem:[%s1440 + $0x10] sm:$0xff]
        %v1444 = vld [vmem:[%s1440 + $0x18] sm:$0xff]
        %v1445 = vld [vmem:[%s1440 + $0x20] sm:$0xff]
        %v1446 = vld [vmem:[%s1440 + $0x28] sm:$0xff]
        %v1447 = vld [vmem:[%s1440 + $0x30] sm:$0xff]
        %v1448 = vld [vmem:[%s1440 + $0x38] sm:$0xff]
        %v1449 = vld [vmem:[%s1440 + $0x40] sm:$0xff]
        %v1450 = vld [vmem:[%s1440 + $0x48] sm:$0xff]
        %v1451 = vld [vmem:[%s1440 + $0x50] sm:$0xff]
        %v1452 = vld [vmem:[%s1440 + $0x58] sm:$0xff]
        %v1453 = vld [vmem:[%s1440 + $0x60] sm:$0xff]
        %v1454 = vld [vmem:[%s1440 + $0x68] sm:$0xff]
        %v1455 = vld [vmem:[%s1440 + $0x70] sm:$0xff]
        %v1456 = vld [vmem:[%s1440 + $0x78] sm:$0xff]
        %v1457 = vld [vmem:[%s1440 + $0x80] sm:$0xff]
        %v1458 = vld [vmem:[%s1440 + $0x88] sm:$0xff]
        %v1459 = vld [vmem:[%s1440 + $0x90] sm:$0xff]
        %v1460 = vld [vmem:[%s1440 + $0x98] sm:$0xff]
        %v1461 = vld [vmem:[%s1440 + $0xa0] sm:$0xff]
        %v1462 = vld [vmem:[%s1440 + $0xa8] sm:$0xff]
        %v1463 = vld [vmem:[%s1440 + $0xb0] sm:$0xff]
        %v1464 = vld [vmem:[%s1440 + $0xb8] sm:$0xff]
        %v1465 = vld [vmem:[%s1440 + $0xc0] sm:$0xff]
        %v1466 = vld [vmem:[%s1440 + $0xc8] sm:$0xff]
        %v1467 = vld [vmem:[%s1440 + $0xd0] sm:$0xff]
        %v1468 = vld [vmem:[%s1440 + $0xd8] sm:$0xff]
        %v1469 = vld [vmem:[%s1440 + $0xe0] sm:$0xff]
        %v1470 = vld [vmem:[%s1440 + $0xe8] sm:$0xff]
        %v1471 = vld [vmem:[%s1440 + $0xf0] sm:$0xff]
        %v1472 = vld [vmem:[%s1440 + $0xf8] sm:$0xff]
        %v1473 = vld [vmem:[%s1440 + $0x100] sm:$0xff]
        %v1474 = vld [vmem:[%s1440 + $0x108] sm:$0xff]
        %v1475 = vld [vmem:[%s1440 + $0x110] sm:$0xff]
        %v1476 = vld [vmem:[%s1440 + $0x118] sm:$0xff]
        %v1477 = vld [vmem:[%s1440 + $0x120] sm:$0xff]
        %v1478 = vld [vmem:[%s1440 + $0x128] sm:$0xff]
        %v1479 = vld [vmem:[%s1440 + $0x130] sm:$0xff]
        %v1480 = vld [vmem:[%s1440 + $0x138] sm:$0xff]
        %v1481 = vld [vmem:[%s1440 + $0x140] sm:$0xff]
        %v1482 = vld [vmem:[%s1440 + $0x148] sm:$0xff]
        %v1483 = vld [vmem:[%s1440 + $0x150] sm:$0xff]
        %v1484 = vld [vmem:[%s1440 + $0x158] sm:$0xff]
        %v1485 = vld [vmem:[%s1440 + $0x160] sm:$0xff]
        %v1486 = vld [vmem:[%s1440 + $0x168] sm:$0xff]
        %v1487 = vld [vmem:[%s1440 + $0x170] sm:$0xff]
        %v1488 = vld [vmem:[%s1440 + $0x178] sm:$0xff]
        %1490 = vst [vmem:[#allocation1] ss:$2 sm:$0xff] %v1439
        %v1491 = vld.sshfl [vmem:[#allocation1] sm:$0xff pattern:$0x75316420]
        %v1492 = vld.sshfl [vmem:[#allocation1 + $0x8] sm:$0xff pattern:$0x75316420]
        %v1494 = vsel %vm1009, %v1492, 0
        %1496 = vmatpush.msra.mxu0 %v1471
        %1497 = vmatpush.msra.mxu0 %v1469
        %1498 = vmatpush.msra.mxu0 %v1467
        %1499 = vmatpush.msra.mxu0 %v1465
        %1500 = vmatpush.msra.mxu0 %v1463
        %1501 = vmatpush.msra.mxu0 %v1461
        %1502 = vmatpush.msra.mxu0 %v1459
        %1503 = vmatpush.msra.mxu0 %v1457
        %1504 = vmatpush.msra.mxu0 %v1455
        %1505 = vmatpush.msra.mxu0 %v1453
        %1506 = vmatpush.msra.mxu0 %v1451
        %1507 = vmatpush.msra.mxu0 %v1449
        %1508 = vmatpush.msra.mxu0 %v1447
        %1509 = vmatpush.msra.mxu0 %v1445
        %1510 = vmatpush.msra.mxu0 %v1443
        %1511 = vmatpush.msra.mxu0 %v1441
        %1512 = vmatmul.f32.gmra.mxu0 %v1491
        %v1513 = vpop.f32.mrf.mxu0
        %v1514 = vadd.f32 0.0, %v1513
        %1515 = vdwg.mxu0
        %1516 = vmatpush.msra.mxu0 0.0
        %1517 = vmatpush.msra.mxu0 0.0
        %1518 = vmatpush.msra.mxu0 0.0
        %1519 = vmatpush.msra.mxu0 0.0
        %1520 = vmatpush.msra.mxu0 0.0
        %1521 = vmatpush.msra.mxu0 0.0
        %1522 = vmatpush.msra.mxu0 0.0
        %1523 = vmatpush.msra.mxu0 0.0
        %1524 = vmatpush.msra.mxu0 %v1487
        %1525 = vmatpush.msra.mxu0 %v1485
        %1526 = vmatpush.msra.mxu0 %v1483
        %1527 = vmatpush.msra.mxu0 %v1481
        %1528 = vmatpush.msra.mxu0 %v1479
        %1529 = vmatpush.msra.mxu0 %v1477
        %1530 = vmatpush.msra.mxu0 %v1475
        %1531 = vmatpush.msra.mxu0 %v1473
        %1532 = vmatmul.f32.gmra.mxu0 %v1494
        %v1533 = vpop.f32.mrf.mxu0
        %v1534 = vadd.f32 %v1514, %v1533
        %1535 = vdwg.mxu0
        %1536 = vmatpush.msra.mxu0 %v1472
        %1537 = vmatpush.msra.mxu0 %v1470
        %1538 = vmatpush.msra.mxu0 %v1468
        %1539 = vmatpush.msra.mxu0 %v1466
        %1540 = vmatpush.msra.mxu0 %v1464
        %1541 = vmatpush.msra.mxu0 %v1462
        %1542 = vmatpush.msra.mxu0 %v1460
        %1543 = vmatpush.msra.mxu0 %v1458
        %1544 = vmatpush.msra.mxu0 %v1456
        %1545 = vmatpush.msra.mxu0 %v1454
        %1546 = vmatpush.msra.mxu0 %v1452
        %1547 = vmatpush.msra.mxu0 %v1450
        %1548 = vmatpush.msra.mxu0 %v1448
        %1549 = vmatpush.msra.mxu0 %v1446
        %1550 = vmatpush.msra.mxu0 %v1444
        %1551 = vmatpush.msra.mxu0 %v1442
        %1552 = vmatmul.f32.gmra.mxu0 %v1491
        %v1553 = vpop.f32.mrf.mxu0
        %v1554 = vadd.f32 0.0, %v1553
        %1555 = vdwg.mxu0
        %1556 = vmatpush.msra.mxu0 0.0
        %1557 = vmatpush.msra.mxu0 0.0
        %1558 = vmatpush.msra.mxu0 0.0
        %1559 = vmatpush.msra.mxu0 0.0
        %1560 = vmatpush.msra.mxu0 0.0
        %1561 = vmatpush.msra.mxu0 0.0
        %1562 = vmatpush.msra.mxu0 0.0
        %1563 = vmatpush.msra.mxu0 0.0
        %1564 = vmatpush.msra.mxu0 %v1488
        %1565 = vmatpush.msra.mxu0 %v1486
        %1566 = vmatpush.msra.mxu0 %v1484
        %1567 = vmatpush.msra.mxu0 %v1482
        %1568 = vmatpush.msra.mxu0 %v1480
        %1569 = vmatpush.msra.mxu0 %v1478
        %1570 = vmatpush.msra.mxu0 %v1476
        %1571 = vmatpush.msra.mxu0 %v1474
        %1572 = vmatmul.f32.gmra.mxu0 %v1494
        %v1573 = vpop.f32.mrf.mxu0
        %v1574 = vadd.f32 %v1554, %v1573
        %1575 = vdwg.mxu0
        %v1578 = vrot.slane %v1574, 4
        %v1579 = vsel %vm1095, %v1534, %v1578
        %1581 = vst.msk [vmem:[#allocation4] sm:$0x77] %vm1100, %v1579
        %v1582 = vld [vmem:[#allocation4] sm:$0x66]
        %v1583 = vld [vmem:[#allocation5] sm:$0x33]
        %v1584 = vld [vmem:[#allocation12] sm:$0xff]
        %v1585 = vld [vmem:[#allocation12 + $0x8] sm:$0xff]
        %v1586 = vld [vmem:[#allocation12 + $0x10] sm:$0xff]
        %v1587 = vld [vmem:[#allocation12 + $0x18] sm:$0xff]
        %v1588 = vld [vmem:[#allocation12 + $0x20] sm:$0xff]
        %v1589 = vld [vmem:[#allocation12 + $0x28] sm:$0xff]
        %v1590 = vld [vmem:[#allocation12 + $0x30] sm:$0xff]
        %v1591 = vld [vmem:[#allocation12 + $0x38] sm:$0xff]
        %v1592 = vld [vmem:[#allocation12 + $0x40] sm:$0xff]
        %v1593 = vld [vmem:[#allocation12 + $0x48] sm:$0xff]
        %v1594 = vld [vmem:[#allocation12 + $0x50] sm:$0xff]
        %v1595 = vld [vmem:[#allocation12 + $0x58] sm:$0xff]
        %v1596 = vld [vmem:[#allocation12 + $0x60] sm:$0xff]
        %v1597 = vld [vmem:[#allocation12 + $0x68] sm:$0xff]
        %v1598 = vld [vmem:[#allocation12 + $0x70] sm:$0xff]
        %v1599 = vld [vmem:[#allocation12 + $0x78] sm:$0xff]
        %v1600 = vld [vmem:[#allocation12 + $0x80] sm:$0xff]
        %v1601 = vld [vmem:[#allocation12 + $0x88] sm:$0xff]
        %v1602 = vld [vmem:[#allocation12 + $0x90] sm:$0xff]
        %v1603 = vld [vmem:[#allocation12 + $0x98] sm:$0xff]
        %v1604 = vld [vmem:[#allocation12 + $0xa0] sm:$0xff]
        %v1605 = vld [vmem:[#allocation12 + $0xa8] sm:$0xff]
        %v1606 = vld [vmem:[#allocation12 + $0xb0] sm:$0xff]
        %v1607 = vld [vmem:[#allocation12 + $0xb8] sm:$0xff]
        %v1608 = vld [vmem:[#allocation12 + $0xc0] sm:$0xff]
        %v1609 = vld [vmem:[#allocation12 + $0xc8] sm:$0xff]
        %v1610 = vld [vmem:[#allocation12 + $0xd0] sm:$0xff]
        %v1611 = vld [vmem:[#allocation12 + $0xd8] sm:$0xff]
        %v1612 = vld [vmem:[#allocation12 + $0xe0] sm:$0xff]
        %v1613 = vld [vmem:[#allocation12 + $0xe8] sm:$0xff]
        %v1614 = vld [vmem:[#allocation12 + $0xf0] sm:$0xff]
        %v1615 = vld [vmem:[#allocation12 + $0xf8] sm:$0xff]
        %v1616 = vld [vmem:[#allocation12 + $0x100] sm:$0xff]
        %v1617 = vld [vmem:[#allocation12 + $0x108] sm:$0xff]
        %v1618 = vld [vmem:[#allocation12 + $0x110] sm:$0xff]
        %v1619 = vld [vmem:[#allocation12 + $0x118] sm:$0xff]
        %v1620 = vld [vmem:[#allocation12 + $0x120] sm:$0xff]
        %v1621 = vld [vmem:[#allocation12 + $0x128] sm:$0xff]
        %v1622 = vld [vmem:[#allocation12 + $0x130] sm:$0xff]
        %v1623 = vld [vmem:[#allocation12 + $0x138] sm:$0xff]
        %v1624 = vld [vmem:[#allocation12 + $0x140] sm:$0xff]
        %v1625 = vld [vmem:[#allocation12 + $0x148] sm:$0xff]
        %v1626 = vld [vmem:[#allocation12 + $0x150] sm:$0xff]
        %v1627 = vld [vmem:[#allocation12 + $0x158] sm:$0xff]
        %v1628 = vld [vmem:[#allocation12 + $0x160] sm:$0xff]
        %v1629 = vld [vmem:[#allocation12 + $0x168] sm:$0xff]
        %v1630 = vld [vmem:[#allocation12 + $0x170] sm:$0xff]
        %v1631 = vld [vmem:[#allocation12 + $0x178] sm:$0xff]
        %1633 = vst [vmem:[#allocation1] ss:$2 sm:$0xff] %v1583
        %v1634 = vld.sshfl [vmem:[#allocation1] sm:$0xff pattern:$0x75316420]
        %v1635 = vld.sshfl [vmem:[#allocation1 + $0x8] sm:$0xff pattern:$0x75316420]
        %v1637 = vsel %vm1009, %v1635, 0
        %1639 = vmatpush.msra.mxu0 %v1614
        %1640 = vmatpush.msra.mxu0 %v1612
        %1641 = vmatpush.msra.mxu0 %v1610
        %1642 = vmatpush.msra.mxu0 %v1608
        %1643 = vmatpush.msra.mxu0 %v1606
        %1644 = vmatpush.msra.mxu0 %v1604
        %1645 = vmatpush.msra.mxu0 %v1602
        %1646 = vmatpush.msra.mxu0 %v1600
        %1647 = vmatpush.msra.mxu0 %v1598
        %1648 = vmatpush.msra.mxu0 %v1596
        %1649 = vmatpush.msra.mxu0 %v1594
        %1650 = vmatpush.msra.mxu0 %v1592
        %1651 = vmatpush.msra.mxu0 %v1590
        %1652 = vmatpush.msra.mxu0 %v1588
        %1653 = vmatpush.msra.mxu0 %v1586
        %1654 = vmatpush.msra.mxu0 %v1584
        %1655 = vmatmul.f32.gmra.mxu0 %v1634
        %v1656 = vpop.f32.mrf.mxu0
        %v1657 = vadd.f32 0.0, %v1656
        %1658 = vdwg.mxu0
        %1659 = vmatpush.msra.mxu0 0.0
        %1660 = vmatpush.msra.mxu0 0.0
        %1661 = vmatpush.msra.mxu0 0.0
        %1662 = vmatpush.msra.mxu0 0.0
        %1663 = vmatpush.msra.mxu0 0.0
        %1664 = vmatpush.msra.mxu0 0.0
        %1665 = vmatpush.msra.mxu0 0.0
        %1666 = vmatpush.msra.mxu0 0.0
        %1667 = vmatpush.msra.mxu0 %v1630
        %1668 = vmatpush.msra.mxu0 %v1628
        %1669 = vmatpush.msra.mxu0 %v1626
        %1670 = vmatpush.msra.mxu0 %v1624
        %1671 = vmatpush.msra.mxu0 %v1622
        %1672 = vmatpush.msra.mxu0 %v1620
        %1673 = vmatpush.msra.mxu0 %v1618
        %1674 = vmatpush.msra.mxu0 %v1616
        %1675 = vmatmul.f32.gmra.mxu0 %v1637
        %v1676 = vpop.f32.mrf.mxu0
        %v1677 = vadd.f32 %v1657, %v1676
        %1678 = vdwg.mxu0
        %1679 = vmatpush.msra.mxu0 %v1615
        %1680 = vmatpush.msra.mxu0 %v1613
        %1681 = vmatpush.msra.mxu0 %v1611
        %1682 = vmatpush.msra.mxu0 %v1609
        %1683 = vmatpush.msra.mxu0 %v1607
        %1684 = vmatpush.msra.mxu0 %v1605
        %1685 = vmatpush.msra.mxu0 %v1603
        %1686 = vmatpush.msra.mxu0 %v1601
        %1687 = vmatpush.msra.mxu0 %v1599
        %1688 = vmatpush.msra.mxu0 %v1597
        %1689 = vmatpush.msra.mxu0 %v1595
        %1690 = vmatpush.msra.mxu0 %v1593
        %1691 = vmatpush.msra.mxu0 %v1591
        %1692 = vmatpush.msra.mxu0 %v1589
        %1693 = vmatpush.msra.mxu0 %v1587
        %1694 = vmatpush.msra.mxu0 %v1585
        %1695 = vmatmul.f32.gmra.mxu0 %v1634
        %v1696 = vpop.f32.mrf.mxu0
        %v1697 = vadd.f32 0.0, %v1696
        %1698 = vdwg.mxu0
        %1699 = vmatpush.msra.mxu0 0.0
        %1700 = vmatpush.msra.mxu0 0.0
        %1701 = vmatpush.msra.mxu0 0.0
        %1702 = vmatpush.msra.mxu0 0.0
        %1703 = vmatpush.msra.mxu0 0.0
        %1704 = vmatpush.msra.mxu0 0.0
        %1705 = vmatpush.msra.mxu0 0.0
        %1706 = vmatpush.msra.mxu0 0.0
        %1707 = vmatpush.msra.mxu0 %v1631
        %1708 = vmatpush.msra.mxu0 %v1629
        %1709 = vmatpush.msra.mxu0 %v1627
        %1710 = vmatpush.msra.mxu0 %v1625
        %1711 = vmatpush.msra.mxu0 %v1623
        %1712 = vmatpush.msra.mxu0 %v1621
        %1713 = vmatpush.msra.mxu0 %v1619
        %1714 = vmatpush.msra.mxu0 %v1617
        %1715 = vmatmul.f32.gmra.mxu0 %v1637
        %v1716 = vpop.f32.mrf.mxu0
        %v1717 = vadd.f32 %v1697, %v1716
        %1718 = vdwg.mxu0
        %v1721 = vrot.slane %v1717, 4
        %v1722 = vsel %vm1095, %v1677, %v1721
        %v1723 = vrot.slane %v1722, 7
        %v1725 = vadd.f32 %v1582, %v1723
        %1726 = vst.msk [vmem:[#allocation4] sm:$0x66] %vm1248, %v1725
        %v1727 = vld [vmem:[#allocation4] sm:$0x33]
        %v1728 = vld [vmem:[#allocation5] sm:$0x66]
        %s1729 = scalar_lea.vmem [#allocation12], 768
        %v1730 = vld [vmem:[%s1729] sm:$0xff]
        %v1731 = vld [vmem:[%s1729 + $0x8] sm:$0xff]
        %v1732 = vld [vmem:[%s1729 + $0x10] sm:$0xff]
        %v1733 = vld [vmem:[%s1729 + $0x18] sm:$0xff]
        %v1734 = vld [vmem:[%s1729 + $0x20] sm:$0xff]
        %v1735 = vld [vmem:[%s1729 + $0x28] sm:$0xff]
        %v1736 = vld [vmem:[%s1729 + $0x30] sm:$0xff]
        %v1737 = vld [vmem:[%s1729 + $0x38] sm:$0xff]
        %v1738 = vld [vmem:[%s1729 + $0x40] sm:$0xff]
        %v1739 = vld [vmem:[%s1729 + $0x48] sm:$0xff]
        %v1740 = vld [vmem:[%s1729 + $0x50] sm:$0xff]
        %v1741 = vld [vmem:[%s1729 + $0x58] sm:$0xff]
        %v1742 = vld [vmem:[%s1729 + $0x60] sm:$0xff]
        %v1743 = vld [vmem:[%s1729 + $0x68] sm:$0xff]
        %v1744 = vld [vmem:[%s1729 + $0x70] sm:$0xff]
        %v1745 = vld [vmem:[%s1729 + $0x78] sm:$0xff]
        %v1746 = vld [vmem:[%s1729 + $0x80] sm:$0xff]
        %v1747 = vld [vmem:[%s1729 + $0x88] sm:$0xff]
        %v1748 = vld [vmem:[%s1729 + $0x90] sm:$0xff]
        %v1749 = vld [vmem:[%s1729 + $0x98] sm:$0xff]
        %v1750 = vld [vmem:[%s1729 + $0xa0] sm:$0xff]
        %v1751 = vld [vmem:[%s1729 + $0xa8] sm:$0xff]
        %v1752 = vld [vmem:[%s1729 + $0xb0] sm:$0xff]
        %v1753 = vld [vmem:[%s1729 + $0xb8] sm:$0xff]
        %v1754 = vld [vmem:[%s1729 + $0xc0] sm:$0xff]
        %v1755 = vld [vmem:[%s1729 + $0xc8] sm:$0xff]
        %v1756 = vld [vmem:[%s1729 + $0xd0] sm:$0xff]
        %v1757 = vld [vmem:[%s1729 + $0xd8] sm:$0xff]
        %v1758 = vld [vmem:[%s1729 + $0xe0] sm:$0xff]
        %v1759 = vld [vmem:[%s1729 + $0xe8] sm:$0xff]
        %v1760 = vld [vmem:[%s1729 + $0xf0] sm:$0xff]
        %v1761 = vld [vmem:[%s1729 + $0xf8] sm:$0xff]
        %v1762 = vld [vmem:[%s1729 + $0x100] sm:$0xff]
        %v1763 = vld [vmem:[%s1729 + $0x108] sm:$0xff]
        %v1764 = vld [vmem:[%s1729 + $0x110] sm:$0xff]
        %v1765 = vld [vmem:[%s1729 + $0x118] sm:$0xff]
        %v1766 = vld [vmem:[%s1729 + $0x120] sm:$0xff]
        %v1767 = vld [vmem:[%s1729 + $0x128] sm:$0xff]
        %v1768 = vld [vmem:[%s1729 + $0x130] sm:$0xff]
        %v1769 = vld [vmem:[%s1729 + $0x138] sm:$0xff]
        %v1770 = vld [vmem:[%s1729 + $0x140] sm:$0xff]
        %v1771 = vld [vmem:[%s1729 + $0x148] sm:$0xff]
        %v1772 = vld [vmem:[%s1729 + $0x150] sm:$0xff]
        %v1773 = vld [vmem:[%s1729 + $0x158] sm:$0xff]
        %v1774 = vld [vmem:[%s1729 + $0x160] sm:$0xff]
        %v1775 = vld [vmem:[%s1729 + $0x168] sm:$0xff]
        %v1776 = vld [vmem:[%s1729 + $0x170] sm:$0xff]
        %v1777 = vld [vmem:[%s1729 + $0x178] sm:$0xff]
        %1779 = vst [vmem:[#allocation1] ss:$2 sm:$0xff] %v1728
        %v1780 = vld.sshfl [vmem:[#allocation1] sm:$0xff pattern:$0x75316420]
        %v1781 = vld.sshfl [vmem:[#allocation1 + $0x8] sm:$0xff pattern:$0x75316420]
        %v1782 = vrot.slane %v1780, 1
        %v1783 = vrot.slane %v1781, 1
        %v1785 = vsel %vm1009, %v1783, 0
        %1787 = vmatpush.msra.mxu0 %v1760
        %1788 = vmatpush.msra.mxu0 %v1758
        %1789 = vmatpush.msra.mxu0 %v1756
        %1790 = vmatpush.msra.mxu0 %v1754
        %1791 = vmatpush.msra.mxu0 %v1752
        %1792 = vmatpush.msra.mxu0 %v1750
        %1793 = vmatpush.msra.mxu0 %v1748
        %1794 = vmatpush.msra.mxu0 %v1746
        %1795 = vmatpush.msra.mxu0 %v1744
        %1796 = vmatpush.msra.mxu0 %v1742
        %1797 = vmatpush.msra.mxu0 %v1740
        %1798 = vmatpush.msra.mxu0 %v1738
        %1799 = vmatpush.msra.mxu0 %v1736
        %1800 = vmatpush.msra.mxu0 %v1734
        %1801 = vmatpush.msra.mxu0 %v1732
        %1802 = vmatpush.msra.mxu0 %v1730
        %1803 = vmatmul.f32.gmra.mxu0 %v1782
        %v1804 = vpop.f32.mrf.mxu0
        %v1805 = vadd.f32 0.0, %v1804
        %1806 = vdwg.mxu0
        %1807 = vmatpush.msra.mxu0 0.0
        %1808 = vmatpush.msra.mxu0 0.0
        %1809 = vmatpush.msra.mxu0 0.0
        %1810 = vmatpush.msra.mxu0 0.0
        %1811 = vmatpush.msra.mxu0 0.0
        %1812 = vmatpush.msra.mxu0 0.0
        %1813 = vmatpush.msra.mxu0 0.0
        %1814 = vmatpush.msra.mxu0 0.0
        %1815 = vmatpush.msra.mxu0 %v1776
        %1816 = vmatpush.msra.mxu0 %v1774
        %1817 = vmatpush.msra.mxu0 %v1772
        %1818 = vmatpush.msra.mxu0 %v1770
        %1819 = vmatpush.msra.mxu0 %v1768
        %1820 = vmatpush.msra.mxu0 %v1766
        %1821 = vmatpush.msra.mxu0 %v1764
        %1822 = vmatpush.msra.mxu0 %v1762
        %1823 = vmatmul.f32.gmra.mxu0 %v1785
        %v1824 = vpop.f32.mrf.mxu0
        %v1825 = vadd.f32 %v1805, %v1824
        %1826 = vdwg.mxu0
        %1827 = vmatpush.msra.mxu0 %v1761
        %1828 = vmatpush.msra.mxu0 %v1759
        %1829 = vmatpush.msra.mxu0 %v1757
        %1830 = vmatpush.msra.mxu0 %v1755
        %1831 = vmatpush.msra.mxu0 %v1753
        %1832 = vmatpush.msra.mxu0 %v1751
        %1833 = vmatpush.msra.mxu0 %v1749
        %1834 = vmatpush.msra.mxu0 %v1747
        %1835 = vmatpush.msra.mxu0 %v1745
        %1836 = vmatpush.msra.mxu0 %v1743
        %1837 = vmatpush.msra.mxu0 %v1741
        %1838 = vmatpush.msra.mxu0 %v1739
        %1839 = vmatpush.msra.mxu0 %v1737
        %1840 = vmatpush.msra.mxu0 %v1735
        %1841 = vmatpush.msra.mxu0 %v1733
        %1842 = vmatpush.msra.mxu0 %v1731
        %1843 = vmatmul.f32.gmra.mxu0 %v1782
        %v1844 = vpop.f32.mrf.mxu0
        %v1845 = vadd.f32 0.0, %v1844
        %1846 = vdwg.mxu0
        %1847 = vmatpush.msra.mxu0 0.0
        %1848 = vmatpush.msra.mxu0 0.0
        %1849 = vmatpush.msra.mxu0 0.0
        %1850 = vmatpush.msra.mxu0 0.0
        %1851 = vmatpush.msra.mxu0 0.0
        %1852 = vmatpush.msra.mxu0 0.0
        %1853 = vmatpush.msra.mxu0 0.0
        %1854 = vmatpush.msra.mxu0 0.0
        %1855 = vmatpush.msra.mxu0 %v1777
        %1856 = vmatpush.msra.mxu0 %v1775
        %1857 = vmatpush.msra.mxu0 %v1773
        %1858 = vmatpush.msra.mxu0 %v1771
        %1859 = vmatpush.msra.mxu0 %v1769
        %1860 = vmatpush.msra.mxu0 %v1767
        %1861 = vmatpush.msra.mxu0 %v1765
        %1862 = vmatpush.msra.mxu0 %v1763
        %1863 = vmatmul.f32.gmra.mxu0 %v1785
        %v1864 = vpop.f32.mrf.mxu0
        %v1865 = vadd.f32 %v1845, %v1864
        %1866 = vdwg.mxu0
        %v1869 = vrot.slane %v1865, 4
        %v1870 = vsel %vm1095, %v1825, %v1869
        %v1872 = vadd.f32 %v1727, %v1870
        %1873 = vst.msk [vmem:[#allocation4] sm:$0x33] %vm1397, %v1872
        %v1874 = vld [vmem:[#allocation4] sm:$0x77]
        %v1875 = vld [vmem:[#allocation13] sm:$0x3]
        %v1877 = vperm.slane %v1875, 0
        %v1878 = vperm.slane %v1875, 1
        %v1879 = vrot.slane %v1878, 4
        %v1880 = vsel %vm1095, %v1877, %v1879
        %v1882 = vadd.f32 %v1874, %v1880
        %v1883 = vmax.f32 %v1882, 0.0
        %1884 = vst.msk [vmem:[#allocation4] sm:$0x77] %vm1100, %v1883
        %v1885 = vld [vmem:[#allocation4] sm:$0x1]
        %v1886 = vld [vmem:[#allocation4 + $0x1] sm:$0x1]
        %1888 = vrot.lane.b32.xlu0 %v1885, 64
        %v1889 = vpop.permute.xlu0 %1888
        %v1891 = vmax.f32 %v1885, %v1889
        %1893 = vrot.lane.b32.xlu0 %v1886, 64
        %v1894 = vpop.permute.xlu0 %1893
        %v1896 = vmax.f32 %v1886, %v1894
        %v1897 = vmax.f32 %v1891, %v1896
        %v1898 = vld [vmem:[#allocation5] sm:$0x7]
        %v1899 = vperm.slane %v1897, 0
        %v1900 = vadd.f32 %v1898, %v1899
        %1901 = vst.msk [vmem:[#allocation6] sm:$0x7] %vm1426, %v1900
        %v1902 = vld [vmem:[#allocation5] sm:$0x7]
        %1904 = vrot.lane.b32.xlu0 %v1899, 64
        %v1905 = vpop.permute.xlu0 %1904
        %v1907 = vadd.f32 %v1902, %v1905
        %1908 = vst.msk [vmem:[#allocation6] sm:$0x7] %vm1434, %v1907
        %v1909 = vld [vmem:[#allocation5 + $0x4] sm:$0x7]
        %v1910 = vadd.f32 %v1909, %v1899
        %1911 = vst.msk [vmem:[#allocation6 + $0x4] sm:$0x7] %vm1426, %v1910
        %v1912 = vld [vmem:[%s8] sm:$0x1]
        %v1913 = vld [vmem:[#allocation6] ss:$4 sm:$0x3]
        %v1914 = vld [vmem:[#allocation15] sm:$0xff]
        %v1915 = vld [vmem:[#allocation15 + $0x8] sm:$0xff]
        %v1916 = vld [vmem:[#allocation15 + $0x10] sm:$0xff]
        %v1917 = vld [vmem:[#allocation15 + $0x18] sm:$0xff]
        %v1918 = vld [vmem:[#allocation15 + $0x20] sm:$0xff]
        %v1919 = vld [vmem:[#allocation15 + $0x28] sm:$0xff]
        %v1920 = vld [vmem:[#allocation15 + $0x30] sm:$0xff]
        %v1921 = vld [vmem:[#allocation15 + $0x38] sm:$0xff]
        %v1922 = vld [vmem:[#allocation15 + $0x40] sm:$0xff]
        %v1923 = vld [vmem:[#allocation15 + $0x48] sm:$0xff]
        %v1924 = vld [vmem:[#allocation15 + $0x50] sm:$0xff]
        %v1925 = vld [vmem:[#allocation15 + $0x58] sm:$0xff]
        %v1926 = vld [vmem:[#allocation15 + $0x60] sm:$0xff]
        %v1927 = vld [vmem:[#allocation15 + $0x68] sm:$0xff]
        %v1928 = vld [vmem:[#allocation15 + $0x70] sm:$0xff]
        %v1929 = vld [vmem:[#allocation15 + $0x78] sm:$0xff]
        %v1930 = vld [vmem:[#allocation15 + $0x80] sm:$0xff]
        %v1931 = vld [vmem:[#allocation15 + $0x88] sm:$0xff]
        %v1932 = vld [vmem:[#allocation15 + $0x90] sm:$0xff]
        %v1933 = vld [vmem:[#allocation15 + $0x98] sm:$0xff]
        %v1934 = vld [vmem:[#allocation15 + $0xa0] sm:$0xff]
        %v1935 = vld [vmem:[#allocation15 + $0xa8] sm:$0xff]
        %v1936 = vld [vmem:[#allocation15 + $0xb0] sm:$0xff]
        %v1937 = vld [vmem:[#allocation15 + $0xb8] sm:$0xff]
        %v1939 = vperm.slane %v1913, 0
        %v1940 = vperm.slane %v1913, 1
        %v1942 = vsel %vm1009, %v1940, 0
        %1944 = vmatpush.msra.mxu0 %v1929
        %1945 = vmatpush.msra.mxu0 %v1928
        %1946 = vmatpush.msra.mxu0 %v1927
        %1947 = vmatpush.msra.mxu0 %v1926
        %1948 = vmatpush.msra.mxu0 %v1925
        %1949 = vmatpush.msra.mxu0 %v1924
        %1950 = vmatpush.msra.mxu0 %v1923
        %1951 = vmatpush.msra.mxu0 %v1922
        %1952 = vmatpush.msra.mxu0 %v1921
        %1953 = vmatpush.msra.mxu0 %v1920
        %1954 = vmatpush.msra.mxu0 %v1919
        %1955 = vmatpush.msra.mxu0 %v1918
        %1956 = vmatpush.msra.mxu0 %v1917
        %1957 = vmatpush.msra.mxu0 %v1916
        %1958 = vmatpush.msra.mxu0 %v1915
        %1959 = vmatpush.msra.mxu0 %v1914
        %1960 = vmatmul.f32.gmra.mxu0 %v1939
        %v1961 = vpop.f32.mrf.mxu0
        %v1962 = vadd.f32 0.0, %v1961
        %1963 = vdwg.mxu0
        %1964 = vmatpush.msra.mxu0 0.0
        %1965 = vmatpush.msra.mxu0 0.0
        %1966 = vmatpush.msra.mxu0 0.0
        %1967 = vmatpush.msra.mxu0 0.0
        %1968 = vmatpush.msra.mxu0 0.0
        %1969 = vmatpush.msra.mxu0 0.0
        %1970 = vmatpush.msra.mxu0 0.0
        %1971 = vmatpush.msra.mxu0 0.0
        %1972 = vmatpush.msra.mxu0 %v1937
        %1973 = vmatpush.msra.mxu0 %v1936
        %1974 = vmatpush.msra.mxu0 %v1935
        %1975 = vmatpush.msra.mxu0 %v1934
        %1976 = vmatpush.msra.mxu0 %v1933
        %1977 = vmatpush.msra.mxu0 %v1932
        %1978 = vmatpush.msra.mxu0 %v1931
        %1979 = vmatpush.msra.mxu0 %v1930
        %1980 = vmatmul.f32.gmra.mxu0 %v1942
        %v1981 = vpop.f32.mrf.mxu0
        %v1982 = vadd.f32 %v1962, %v1981
        %1983 = vdwg.mxu0
        %v1984 = vadd.f32 %v1912, %v1982
        %s1985 = scalar_lea.vmem [#allocation6], 1
        %v1986 = vld [vmem:[%s1985] ss:$4 sm:$0x3]
        %s1987 = scalar_lea.vmem [#allocation15], 192
        %v1988 = vld [vmem:[%s1987] sm:$0xff]
        %v1989 = vld [vmem:[%s1987 + $0x8] sm:$0xff]
        %v1990 = vld [vmem:[%s1987 + $0x10] sm:$0xff]
        %v1991 = vld [vmem:[%s1987 + $0x18] sm:$0xff]
        %v1992 = vld [vmem:[%s1987 + $0x20] sm:$0xff]
        %v1993 = vld [vmem:[%s1987 + $0x28] sm:$0xff]
        %v1994 = vld [vmem:[%s1987 + $0x30] sm:$0xff]
        %v1995 = vld [vmem:[%s1987 + $0x38] sm:$0xff]
        %v1996 = vld [vmem:[%s1987 + $0x40] sm:$0xff]
        %v1997 = vld [vmem:[%s1987 + $0x48] sm:$0xff]
        %v1998 = vld [vmem:[%s1987 + $0x50] sm:$0xff]
        %v1999 = vld [vmem:[%s1987 + $0x58] sm:$0xff]
        %v2000 = vld [vmem:[%s1987 + $0x60] sm:$0xff]
        %v2001 = vld [vmem:[%s1987 + $0x68] sm:$0xff]
        %v2002 = vld [vmem:[%s1987 + $0x70] sm:$0xff]
        %v2003 = vld [vmem:[%s1987 + $0x78] sm:$0xff]
        %v2004 = vld [vmem:[%s1987 + $0x80] sm:$0xff]
        %v2005 = vld [vmem:[%s1987 + $0x88] sm:$0xff]
        %v2006 = vld [vmem:[%s1987 + $0x90] sm:$0xff]
        %v2007 = vld [vmem:[%s1987 + $0x98] sm:$0xff]
        %v2008 = vld [vmem:[%s1987 + $0xa0] sm:$0xff]
        %v2009 = vld [vmem:[%s1987 + $0xa8] sm:$0xff]
        %v2010 = vld [vmem:[%s1987 + $0xb0] sm:$0xff]
        %v2011 = vld [vmem:[%s1987 + $0xb8] sm:$0xff]
        %v2013 = vperm.slane %v1986, 0
        %v2014 = vperm.slane %v1986, 1
        %v2016 = vsel %vm1009, %v2014, 0
        %2018 = vmatpush.msra.mxu0 %v2003
        %2019 = vmatpush.msra.mxu0 %v2002
        %2020 = vmatpush.msra.mxu0 %v2001
        %2021 = vmatpush.msra.mxu0 %v2000
        %2022 = vmatpush.msra.mxu0 %v1999
        %2023 = vmatpush.msra.mxu0 %v1998
        %2024 = vmatpush.msra.mxu0 %v1997
        %2025 = vmatpush.msra.mxu0 %v1996
        %2026 = vmatpush.msra.mxu0 %v1995
        %2027 = vmatpush.msra.mxu0 %v1994
        %2028 = vmatpush.msra.mxu0 %v1993
        %2029 = vmatpush.msra.mxu0 %v1992
        %2030 = vmatpush.msra.mxu0 %v1991
        %2031 = vmatpush.msra.mxu0 %v1990
        %2032 = vmatpush.msra.mxu0 %v1989
        %2033 = vmatpush.msra.mxu0 %v1988
        %2034 = vmatmul.f32.gmra.mxu0 %v2013
        %v2035 = vpop.f32.mrf.mxu0
        %v2036 = vadd.f32 0.0, %v2035
        %2037 = vdwg.mxu0
        %2038 = vmatpush.msra.mxu0 0.0
        %2039 = vmatpush.msra.mxu0 0.0
        %2040 = vmatpush.msra.mxu0 0.0
        %2041 = vmatpush.msra.mxu0 0.0
        %2042 = vmatpush.msra.mxu0 0.0
        %2043 = vmatpush.msra.mxu0 0.0
        %2044 = vmatpush.msra.mxu0 0.0
        %2045 = vmatpush.msra.mxu0 0.0
        %2046 = vmatpush.msra.mxu0 %v2011
        %2047 = vmatpush.msra.mxu0 %v2010
        %2048 = vmatpush.msra.mxu0 %v2009
        %2049 = vmatpush.msra.mxu0 %v2008
        %2050 = vmatpush.msra.mxu0 %v2007
        %2051 = vmatpush.msra.mxu0 %v2006
        %2052 = vmatpush.msra.mxu0 %v2005
        %2053 = vmatpush.msra.mxu0 %v2004
        %2054 = vmatmul.f32.gmra.mxu0 %v2016
        %v2055 = vpop.f32.mrf.mxu0
        %v2056 = vadd.f32 %v2036, %v2055
        %2057 = vdwg.mxu0
        %v2058 = vadd.f32 %v1984, %v2056
        %s2059 = scalar_lea.vmem [#allocation6], 2
        %v2060 = vld [vmem:[%s2059] ss:$4 sm:$0x3]
        %s2061 = scalar_lea.vmem [#allocation15], 384
        %v2062 = vld [vmem:[%s2061] sm:$0xff]
        %v2063 = vld [vmem:[%s2061 + $0x8] sm:$0xff]
        %v2064 = vld [vmem:[%s2061 + $0x10] sm:$0xff]
        %v2065 = vld [vmem:[%s2061 + $0x18] sm:$0xff]
        %v2066 = vld [vmem:[%s2061 + $0x20] sm:$0xff]
        %v2067 = vld [vmem:[%s2061 + $0x28] sm:$0xff]
        %v2068 = vld [vmem:[%s2061 + $0x30] sm:$0xff]
        %v2069 = vld [vmem:[%s2061 + $0x38] sm:$0xff]
        %v2070 = vld [vmem:[%s2061 + $0x40] sm:$0xff]
        %v2071 = vld [vmem:[%s2061 + $0x48] sm:$0xff]
        %v2072 = vld [vmem:[%s2061 + $0x50] sm:$0xff]
        %v2073 = vld [vmem:[%s2061 + $0x58] sm:$0xff]
        %v2074 = vld [vmem:[%s2061 + $0x60] sm:$0xff]
        %v2075 = vld [vmem:[%s2061 + $0x68] sm:$0xff]
        %v2076 = vld [vmem:[%s2061 + $0x70] sm:$0xff]
        %v2077 = vld [vmem:[%s2061 + $0x78] sm:$0xff]
        %v2078 = vld [vmem:[%s2061 + $0x80] sm:$0xff]
        %v2079 = vld [vmem:[%s2061 + $0x88] sm:$0xff]
        %v2080 = vld [vmem:[%s2061 + $0x90] sm:$0xff]
        %v2081 = vld [vmem:[%s2061 + $0x98] sm:$0xff]
        %v2082 = vld [vmem:[%s2061 + $0xa0] sm:$0xff]
        %v2083 = vld [vmem:[%s2061 + $0xa8] sm:$0xff]
        %v2084 = vld [vmem:[%s2061 + $0xb0] sm:$0xff]
        %v2085 = vld [vmem:[%s2061 + $0xb8] sm:$0xff]
        %v2087 = vperm.slane %v2060, 0
        %v2088 = vperm.slane %v2060, 1
        %v2090 = vsel %vm1009, %v2088, 0
        %2092 = vmatpush.msra.mxu0 %v2077
        %2093 = vmatpush.msra.mxu0 %v2076
        %2094 = vmatpush.msra.mxu0 %v2075
        %2095 = vmatpush.msra.mxu0 %v2074
        %2096 = vmatpush.msra.mxu0 %v2073
        %2097 = vmatpush.msra.mxu0 %v2072
        %2098 = vmatpush.msra.mxu0 %v2071
        %2099 = vmatpush.msra.mxu0 %v2070
        %2100 = vmatpush.msra.mxu0 %v2069
        %2101 = vmatpush.msra.mxu0 %v2068
        %2102 = vmatpush.msra.mxu0 %v2067
        %2103 = vmatpush.msra.mxu0 %v2066
        %2104 = vmatpush.msra.mxu0 %v2065
        %2105 = vmatpush.msra.mxu0 %v2064
        %2106 = vmatpush.msra.mxu0 %v2063
        %2107 = vmatpush.msra.mxu0 %v2062
        %2108 = vmatmul.f32.gmra.mxu0 %v2087
        %v2109 = vpop.f32.mrf.mxu0
        %v2110 = vadd.f32 0.0, %v2109
        %2111 = vdwg.mxu0
        %2112 = vmatpush.msra.mxu0 0.0
        %2113 = vmatpush.msra.mxu0 0.0
        %2114 = vmatpush.msra.mxu0 0.0
        %2115 = vmatpush.msra.mxu0 0.0
        %2116 = vmatpush.msra.mxu0 0.0
        %2117 = vmatpush.msra.mxu0 0.0
        %2118 = vmatpush.msra.mxu0 0.0
        %2119 = vmatpush.msra.mxu0 0.0
        %2120 = vmatpush.msra.mxu0 %v2085
        %2121 = vmatpush.msra.mxu0 %v2084
        %2122 = vmatpush.msra.mxu0 %v2083
        %2123 = vmatpush.msra.mxu0 %v2082
        %2124 = vmatpush.msra.mxu0 %v2081
        %2125 = vmatpush.msra.mxu0 %v2080
        %2126 = vmatpush.msra.mxu0 %v2079
        %2127 = vmatpush.msra.mxu0 %v2078
        %2128 = vmatmul.f32.gmra.mxu0 %v2090
        %v2129 = vpop.f32.mrf.mxu0
        %v2130 = vadd.f32 %v2110, %v2129
        %2131 = vdwg.mxu0
        %v2132 = vadd.f32 %v2058, %v2130
        %2133 = vst [vmem:[%s509] sm:$0x1] %v2132
        %v2134 = vmax.f32 %v2132, 0.0
        %v2135 = vld [vmem:[%s9] sm:$0xff]
        %v2136 = vld [vmem:[%s9 + $0x8] sm:$0xff]
        %v2137 = vld [vmem:[%s9 + $0x10] sm:$0xff]
        %v2138 = vld [vmem:[%s9 + $0x18] sm:$0xff]
        %v2139 = vld [vmem:[%s9 + $0x20] sm:$0xff]
        %v2140 = vld [vmem:[%s9 + $0x28] sm:$0xff]
        %v2141 = vld [vmem:[%s9 + $0x30] sm:$0xff]
        %v2142 = vld [vmem:[%s9 + $0x38] sm:$0xff]
        %v2143 = vld [vmem:[%s9 + $0x40] sm:$0xff]
        %v2144 = vld [vmem:[%s9 + $0x48] sm:$0xff]
        %v2145 = vld [vmem:[%s9 + $0x50] sm:$0xff]
        %v2146 = vld [vmem:[%s9 + $0x58] sm:$0xff]
        %v2147 = vld [vmem:[%s9 + $0x60] sm:$0xff]
        %v2148 = vld [vmem:[%s9 + $0x68] sm:$0xff]
        %v2149 = vld [vmem:[%s9 + $0x70] sm:$0xff]
        %v2150 = vld [vmem:[%s9 + $0x78] sm:$0xff]
        %v2151 = vld [vmem:[#allocation16] sm:$0x1]
        %2152 = vmatpush.msra.mxu0 %v2150
        %2153 = vmatpush.msra.mxu0 %v2149
        %2154 = vmatpush.msra.mxu0 %v2148
        %2155 = vmatpush.msra.mxu0 %v2147
        %2156 = vmatpush.msra.mxu0 %v2146
        %2157 = vmatpush.msra.mxu0 %v2145
        %2158 = vmatpush.msra.mxu0 %v2144
        %2159 = vmatpush.msra.mxu0 %v2143
        %2160 = vmatpush.msra.mxu0 %v2142
        %2161 = vmatpush.msra.mxu0 %v2141
        %2162 = vmatpush.msra.mxu0 %v2140
        %2163 = vmatpush.msra.mxu0 %v2139
        %2164 = vmatpush.msra.mxu0 %v2138
        %2165 = vmatpush.msra.mxu0 %v2137
        %2166 = vmatpush.msra.mxu0 %v2136
        %2167 = vmatpush.msra.mxu0 %v2135
        %2168 = vmatmul.f32.gmra.mxu0 %v2134
        %v2169 = vpop.f32.mrf.mxu0
        %v2170 = vadd.f32 %v2151, %v2169
        %2171 = vdwg.mxu0
        %2172 = vst [vmem:[%s503] sm:$0x1] %v2170
        %s2173 = sand.u32 %s278, 1
        %s2174 = scalar_lea.sflag [#allocation9], %s2173
        %s2175 = sand.u32 %s278, 1
        %s2176 = scalar_lea.vmem [#allocation18], %s2175
        %s2177 = sand.u32 %s304, 1
        %s2178 = scalar_lea.sflag [#allocation20], %s2177
        %s2179 = sand.u32 %s304, 1
        %s2180 = scalar_lea.vmem [#allocation19], %s2179
        // Predicated region
        $region89: #{resnet1_forward.1} parent=63 // pred_check
          %p2181 = pneg %p288
        $region90: #{resnet1_forward.1} parent=63 // pred_check_branch
          %2183 = sbr.rel (%p2181) target = $region92
        $region91: #{resnet1_forward.1} parent=63 // pred_region
          %2185 = vsyncadd %s2174, 0
          %s2186 = scalar_lea.hbm %s11, %s34
          %s2188 = sshll.u32 %s2176, 4
          %s2189 = int_to_ptr.vmem [resolvable:$true] %s2188
          %s2190 = sshll.u32 %s2186, 4
          %s2191 = int_to_ptr.hbm [resolvable:$true] %s2190
          %2193 = dma.vmem_to_hbm [thread:$0]  %s2189, 16, %s2191, %s2174
        $region92: #{resnet1_forward.1} parent=63 // pred_fallthru
          _
        // Predicated region
        $region93: #{resnet1_forward.1} parent=63 // pred_check
          %p2194 = pneg %p314
        $region94: #{resnet1_forward.1} parent=63 // pred_check_branch
          %2196 = sbr.rel (%p2194) target = $region96
        $region95: #{resnet1_forward.1} parent=63 // pred_region
          %2198 = vsyncadd %s2178, 0
          %s2199 = scalar_lea.hbm %s12, %s34
          %s2201 = sshll.u32 %s2180, 4
          %s2202 = int_to_ptr.vmem [resolvable:$true] %s2201
          %s2203 = sshll.u32 %s2199, 4
          %s2204 = int_to_ptr.hbm [resolvable:$true] %s2203
          %2206 = dma.vmem_to_hbm [thread:$0]  %s2202, 16, %s2204, %s2178
        $region96: #{resnet1_forward.1} parent=63 // pred_fallthru
          _
      $region64: #{resnet1_forward.1} parent=5 // pred_fallthru
        _
      %p2207 = scmp.le.s32.totalorder 2, %s29
      // Predicated region
      $region97: #{resnet1_forward.1} parent=5 // pred_check
        %p2208 = pneg %p2207
      $region98: #{resnet1_forward.1} parent=5 // pred_check_branch
        %2210 = sbr.rel (%p2208) target = $region100
      $region99: #{resnet1_forward.1} parent=5 // pred_region
        %s2211 = ssub.s32 %s29, 2
        // Predicated region
        $region101: #{resnet1_forward.1} parent=99 // pred_check
          %p2212 = pneg %p294
        $region102: #{resnet1_forward.1} parent=99 // pred_check_branch
          %2214 = sbr.rel (%p2212) target = $region104
        $region103: #{resnet1_forward.1} parent=99 // pred_region
          %s2215 = sand.u32 %s279, 1
          %s2216 = scalar_lea.sflag [#allocation9], %s2215
          %s2217 = sand.u32 %s279, 1
          %s2218 = scalar_lea.vmem [#allocation18], %s2217
          %2220 = dma.done %s2216, 16
        $region104: #{resnet1_forward.1} parent=99 // pred_fallthru
          _
        // Predicated region
        $region105: #{resnet1_forward.1} parent=99 // pred_check
          %p2221 = pneg %p320
        $region106: #{resnet1_forward.1} parent=99 // pred_check_branch
          %2223 = sbr.rel (%p2221) target = $region108
        $region107: #{resnet1_forward.1} parent=99 // pred_region
          %s2224 = sand.u32 %s305, 1
          %s2225 = scalar_lea.sflag [#allocation20], %s2224
          %s2226 = sand.u32 %s305, 1
          %s2227 = scalar_lea.vmem [#allocation19], %s2226
          %2229 = dma.done %s2225, 16
        $region108: #{resnet1_forward.1} parent=99 // pred_fallthru
          _
      $region100: #{resnet1_forward.1} parent=5 // pred_fallthru
        _
    $region6: #{resnet1_forward.1} parent=1 // loop_footer
      %s33 = sadd.s32 1, %s29
    $region7: #{resnet1_forward.1} parent=1 // loop_footer_branch
      %28 = sbr.rel target = $region3
    $region8: #{resnet1_forward.1} parent=1 // loop_exit
      _
    %2230 = vsyncpa [#allocation8], 1
    %s2231 = scalar_lea.sflag [#allocation8], 1
    %2232 = vsyncpa %s2231, 1
    %2233 = vsyncpa [#allocation11], 1
    %2234 = vsyncpa [#allocation14], 1
    %2235 = vsyncpa [#allocation17], 1
    %2236 = vsyncpa [#allocation9], 1
    %s2237 = scalar_lea.sflag [#allocation9], 1
    %2238 = vsyncpa %s2237, 1
    %2239 = vsyncpa [#allocation20], 1
    %s2240 = scalar_lea.sflag [#allocation20], 1
    %2241 = vsyncpa %s2240, 1

</llo_original>
